<compile_context>
chip_gen: v7x
topology: tpu7x:2x2x1
jax: 0.10.0
libtpu: 0.0.40
codegen_flags: <defaults>
</compile_context>

<pallas_src>
import jax
import jax.numpy as jnp
from jax.experimental import pallas as pl
from jax.experimental.pallas import tpu as pltpu

# ---- model sizes (small, consistent with the module's forward) -------------
B = 2       # batch
T = 8       # sequence length
V = 32      # vocab size
E = 16      # embedding size
H = 32      # encoder GRU hidden size
Z = 16      # latent size
C = 4       # condition size
HD = 32     # decoder GRU hidden size
# NOTE: the slab packing below relies on 3*H == 3*HD == 96 and H == HD == V == 2*Z == 32,
# which holds for this configuration.

# ---- packed weight slab layouts (row offsets; all sub-arrays padded to 8-row boundaries) ----
# slab96: lane width 96 (= 3*H = 3*HD)
R96_WEMBENC = 0      # emb @ enc_W_ih                       (V, 3H)
R96_ENC_WH  = 32     # enc_W_hh                             (H, 3H)
R96_WEMBDEC = 64     # emb @ dec_W_ih[embedding rows]       (V, 3HD)
R96_DEC_WH  = 96     # dec_W_hh                             (HD, 3HD)
R96_DEC_WXZ = 128    # dec_W_ih[z rows]                     (Z, 3HD)
R96_DEC_WXC = 144    # dec_W_ih[cond rows]                  (C, 3HD)   pad -> 8 rows
R96_ENC_BX  = 152    # enc b_ih + b_hh[r|u] folded          (1, 3H)    pad -> 8 rows
R96_DEC_BX  = 160    # dec b_ih + b_hh[r|u] folded          (1, 3HD)   pad -> 8 rows
W96_ROWS    = 168

# slab32: lane width 32 (= H = HD = V = 2*Z)
R32_ENC_WO   = 0     # hidden -> (mu | logvar)              (H, 2Z)
R32_WZ2H_Z   = 32    # z -> h0                              (Z, HD)
R32_WZ2H_C   = 48    # cond -> h0                           (C, HD)    pad -> 8 rows
R32_DEC_WOUT = 56    # hd -> vocab                          (HD, V)
R32_ENC_BO   = 88    # (1, 2Z)                              pad -> 8 rows
R32_DEC_BZ2H = 96    # (1, HD)                              pad -> 8 rows
R32_DEC_BOUT = 104   # (1, V)                               pad -> 8 rows
R32_ENC_BHN  = 112   # enc b_hh[n]                          (1, H)     pad -> 8 rows
R32_DEC_BHN  = 120   # dec b_hh[n]                          (1, HD)    pad -> 8 rows
W32_ROWS     = 128


# ------------------------- fused encoder+decoder kernel ----------------------
def vae_kernel(ids_ref, be_ref, w96_ref, w32_ref, itemp_ref,
               mlz_ref, logp_ref, hd_sc):
    f32 = jnp.float32

    # ---- in-kernel embedding "gather": one-hot @ (emb @ W_ih), both sequences at once ----
    ids = ids_ref[...]                                              # (2*T*B, 1) int32
    iota = jax.lax.broadcasted_iota(jnp.int32, (2 * T * B, V), 1)
    onehot = (ids == iota).astype(f32)                              # (2*T*B, V)
    oh_enc = onehot[0:T * B, :]                                     # encoder tokens (T*B, V)
    oh_dec = onehot[T * B:2 * T * B, :]                             # decoder tokens (T*B, V)

    cond = be_ref[:, 0:C]                                           # (B, C)
    eps = be_ref[:, C:C + Z]                                        # (B, Z)

    # ---- carve parameter slabs (static, sublane-aligned views -> two input DMAs total) ----
    w_embenc = w96_ref[R96_WEMBENC:R96_WEMBENC + V, :]              # (V, 3H)
    enc_wh   = w96_ref[R96_ENC_WH:R96_ENC_WH + H, :]                # (H, 3H)
    w_embdec = w96_ref[R96_WEMBDEC:R96_WEMBDEC + V, :]              # (V, 3HD)
    dec_wh   = w96_ref[R96_DEC_WH:R96_DEC_WH + HD, :]               # (HD, 3HD)
    dec_wx_z = w96_ref[R96_DEC_WXZ:R96_DEC_WXZ + Z, :]              # (Z, 3HD)
    dec_wx_c = w96_ref[R96_DEC_WXC:R96_DEC_WXC + C, :]              # (C, 3HD)
    enc_bx   = w96_ref[R96_ENC_BX:R96_ENC_BX + 1, :]                # (1, 3H)  (b_hh r/u folded in)
    dec_bx   = w96_ref[R96_DEC_BX:R96_DEC_BX + 1, :]                # (1, 3HD) (b_hh r/u folded in)

    enc_wo   = w32_ref[R32_ENC_WO:R32_ENC_WO + H, :]                # (H, 2Z)
    wz2h_z   = w32_ref[R32_WZ2H_Z:R32_WZ2H_Z + Z, :]                # (Z, HD)
    wz2h_c   = w32_ref[R32_WZ2H_C:R32_WZ2H_C + C, :]                # (C, HD)
    dec_wout = w32_ref[R32_DEC_WOUT:R32_DEC_WOUT + HD, :]           # (HD, V)
    enc_bo   = w32_ref[R32_ENC_BO:R32_ENC_BO + 1, :]                # (1, 2Z)
    dec_bz2h = w32_ref[R32_DEC_BZ2H:R32_DEC_BZ2H + 1, :]            # (1, HD)
    dec_bout = w32_ref[R32_DEC_BOUT:R32_DEC_BOUT + 1, :]            # (1, V)
    # hoist the b_hn broadcasts out of the unrolled loops (JAX does not CSE broadcast_in_dim)
    enc_bhn  = jnp.broadcast_to(w32_ref[R32_ENC_BHN:R32_ENC_BHN + 1, :], (B, H))
    dec_bhn  = jnp.broadcast_to(w32_ref[R32_DEC_BHN:R32_DEC_BHN + 1, :], (B, HD))

    # ---- encoder: input-gate matmul batched over all T steps (off the serial chain) ----
    gx_enc = jnp.dot(oh_enc, w_embenc, preferred_element_type=f32) + enc_bx   # (T*B, 3H)

    h = jnp.zeros((B, H), f32)
    for t in range(T):            # static unroll; only h @ W_hh remains on the recurrence
        gx = gx_enc[t * B:(t + 1) * B, :]
        gh = jnp.dot(h, enc_wh, preferred_element_type=f32)
        r = jax.nn.sigmoid(gx[:, 0:H] + gh[:, 0:H])
        u = jax.nn.sigmoid(gx[:, H:2 * H] + gh[:, H:2 * H])
        n = jnp.tanh(gx[:, 2 * H:3 * H] + r * (gh[:, 2 * H:3 * H] + enc_bhn))
        h = (1.0 - u) * n + u * h

    # hidden -> (mu | logvar); reparameterize z = mu + exp(0.5*logvar) * eps
    p = jnp.dot(h, enc_wo, preferred_element_type=f32) + enc_bo               # (B, 2Z)
    mu = p[:, 0:Z]
    logvar = p[:, Z:2 * Z]
    z = mu + jnp.exp(0.5 * logvar) * eps
    mlz_ref[:, 0:2 * Z] = p                                                   # mu | logvar
    mlz_ref[:, 2 * Z:3 * Z] = z

    # ---- decoder prologue: h0 and the step-invariant (z ++ cond) input-gate contribution ----
    h0 = jnp.tanh(jnp.dot(z, wz2h_z, preferred_element_type=f32)
                  + jnp.dot(cond, wz2h_c, preferred_element_type=f32) + dec_bz2h)
    gx_zc = (jnp.dot(z, dec_wx_z, preferred_element_type=f32)
             + jnp.dot(cond, dec_wx_c, preferred_element_type=f32))           # (B, 3HD)
    # embedded-target input-gate matmul batched over all T steps (off the serial chain)
    gx_dec = jnp.dot(oh_dec, w_embdec, preferred_element_type=f32) + dec_bx   # (T*B, 3HD)

    hd = h0
    for t in range(T):            # static unroll; only hd @ W_hh remains on the recurrence
        gx = gx_dec[t * B:(t + 1) * B, :] + gx_zc
        gh = jnp.dot(hd, dec_wh, preferred_element_type=f32)
        r = jax.nn.sigmoid(gx[:, 0:HD] + gh[:, 0:HD])
        u = jax.nn.sigmoid(gx[:, HD:2 * HD] + gh[:, HD:2 * HD])
        n = jnp.tanh(gx[:, 2 * HD:3 * HD] + r * (gh[:, 2 * HD:3 * HD] + dec_bhn))
        hd = (1.0 - u) * n + u * hd
        hd_sc[t * B:(t + 1) * B, :] = hd        # stash; projection/log-softmax happen once below

    # ---- batched epilogue: one projection + temperature scale + log-softmax, one store ----
    hd_all = hd_sc[...]                                                       # (T*B, HD)
    logits = (jnp.dot(hd_all, dec_wout, preferred_element_type=f32)
              + dec_bout) * itemp_ref[...]                                    # * (1/temperature)
    mx = jnp.max(logits, axis=-1, keepdims=True)
    lse = mx + jnp.log(jnp.sum(jnp.exp(logits - mx), axis=-1, keepdims=True))
    logp_ref[...] = logits - lse                                              # (T*B, V)


# ------------------------------- wrapper -------------------------------------
def _full(shape):
    nd = len(shape)
    return pl.BlockSpec(tuple(shape), lambda i, nd=nd: (0,) * nd)


def vae_forward(packed, inputs, targets, condition, eps, temperature=1.0):
    """packed = prepare_params(params); inputs/targets are (B, T) int32 token ids."""
    w96, w32 = packed
    # token ids, time-major (row t*B + b), encoder tokens then decoder tokens
    ids = jnp.concatenate(
        [inputs.astype(jnp.int32).T.reshape(-1),
         targets.astype(jnp.int32).T.reshape(-1)]).reshape(2 * T * B, 1)
    be = jnp.concatenate([condition, eps], axis=1).astype(jnp.float32)        # (B, C+Z)
    inv_t = (1.0 / jnp.asarray(temperature, jnp.float32)).reshape(1, 1)       # runtime scalar

    mlz, logp = pl.pallas_call(
        vae_kernel,
        out_shape=(jax.ShapeDtypeStruct((B, 3 * Z), jnp.float32),
                   jax.ShapeDtypeStruct((T * B, V), jnp.float32)),
        grid_spec=pltpu.PrefetchScalarGridSpec(
            num_scalar_prefetch=0,
            grid=(1,),                                    # single invocation; loops are in-body
            in_specs=[_full(ids.shape), _full(be.shape), _full(w96.shape),
                      _full(w32.shape), _full((1, 1))],
            out_specs=[_full((B, 3 * Z)), _full((T * B, V))],
            scratch_shapes=[pltpu.VMEM((T * B, HD), jnp.float32)]),
        compiler_params=pltpu.CompilerParams(dimension_semantics=("arbitrary",)),
    )(ids, be, w96, w32, inv_t)

    m = mlz[:, 0:Z]
    l = mlz[:, Z:2 * Z]
    z = mlz[:, 2 * Z:3 * Z]
    decoded = logp.reshape(T, B, V)                       # row t*B+b -> (t, b, :)
    return m, l, z, decoded


# ---------------------------- parameter packing ------------------------------
def _pad_rows(a, rows):
    return jnp.pad(a, ((0, rows - a.shape[0]), (0, 0)))


def prepare_params(params):
    """One-time host-side packing/folding:
       * embedding table folded into the GRU input-gate weights (one-hot matmul in kernel),
       * r/u halves of b_hh folded into b_ih (n half kept separate, PyTorch GRU semantics),
       * everything concatenated into two fp32 slabs -> two input DMAs."""
    w_embenc = params["emb"] @ params["enc_wx"]                    # (V, 3H)
    w_embdec = params["emb"] @ params["dec_wx_e"]                  # (V, 3HD)
    enc_bx_f = params["enc_bx"].at[:, 0:2 * H].add(params["enc_bh"][:, 0:2 * H])
    dec_bx_f = params["dec_bx"].at[:, 0:2 * HD].add(params["dec_bh"][:, 0:2 * HD])
    enc_bhn = params["enc_bh"][:, 2 * H:3 * H]
    dec_bhn = params["dec_bh"][:, 2 * HD:3 * HD]

    w96 = jnp.concatenate([
        w_embenc,                                                  # R96_WEMBENC
        params["enc_wh"],                                          # R96_ENC_WH
        w_embdec,                                                  # R96_WEMBDEC
        params["dec_wh"],                                          # R96_DEC_WH
        params["dec_wx_z"],                                        # R96_DEC_WXZ
        _pad_rows(params["dec_wx_c"], 8),                          # R96_DEC_WXC
        _pad_rows(enc_bx_f, 8),                                    # R96_ENC_BX
        _pad_rows(dec_bx_f, 8),                                    # R96_DEC_BX
    ], axis=0).astype(jnp.float32)

    w32 = jnp.concatenate([
        params["enc_wo"],                                          # R32_ENC_WO
        params["dec_wz2h_z"],                                      # R32_WZ2H_Z
        _pad_rows(params["dec_wz2h_c"], 8),                        # R32_WZ2H_C
        params["dec_wout"],                                        # R32_DEC_WOUT
        _pad_rows(params["enc_bo"], 8),                            # R32_ENC_BO
        _pad_rows(params["dec_bz2h"], 8),                          # R32_DEC_BZ2H
        _pad_rows(params["dec_bout"], 8),                          # R32_DEC_BOUT
        _pad_rows(enc_bhn, 8),                                     # R32_ENC_BHN
        _pad_rows(dec_bhn, 8),                                     # R32_DEC_BHN
    ], axis=0).astype(jnp.float32)

    assert w96.shape == (W96_ROWS, 3 * H)
    assert w32.shape == (W32_ROWS, 2 * Z)
    return w96, w32


# ---------------------------- parameter init --------------------------------
def init_params(key):
    ks = jax.random.split(key, 18)
    s = 0.1

    def rnd(i, shape):
        return jax.random.normal(ks[i], shape, jnp.float32) * s

    return {
        "emb":        rnd(0, (V, E)),
        # encoder GRU + hidden->(mu|logvar)
        "enc_wx":     rnd(1, (E, 3 * H)),
        "enc_wh":     rnd(2, (H, 3 * H)),
        "enc_bx":     rnd(3, (1, 3 * H)),
        "enc_bh":     rnd(4, (1, 3 * H)),
        "enc_wo":     rnd(5, (H, 2 * Z)),
        "enc_bo":     rnd(6, (1, 2 * Z)),
        # decoder (z ++ cond) -> h0
        "dec_wz2h_z": rnd(7, (Z, HD)),
        "dec_wz2h_c": rnd(8, (C, HD)),
        "dec_bz2h":   rnd(9, (1, HD)),
        # decoder GRU input weights stored split by (embedding | z | cond) rows
        "dec_wx_e":   rnd(10, (E, 3 * HD)),
        "dec_wx_z":   rnd(11, (Z, 3 * HD)),
        "dec_wx_c":   rnd(12, (C, 3 * HD)),
        "dec_wh":     rnd(13, (HD, 3 * HD)),
        "dec_bx":     rnd(14, (1, 3 * HD)),
        "dec_bh":     rnd(15, (1, 3 * HD)),
        "dec_wout":   rnd(16, (HD, V)),
        "dec_bout":   rnd(17, (1, V)),
    }


# --------------------- pure-JAX reference (unfused) --------------------------
def vae_forward_ref(params, inputs, targets, condition, eps, temperature=1.0):
    xemb = jnp.take(params["emb"], inputs.T, axis=0)   # (T, B, E)
    temb = jnp.take(params["emb"], targets.T, axis=0)  # (T, B, E)

    def gru_cell(x, h, wx, wh, bx, bh, hid):
        gx = x @ wx + bx
        gh = h @ wh + bh
        r = jax.nn.sigmoid(gx[:, 0:hid] + gh[:, 0:hid])
        u = jax.nn.sigmoid(gx[:, hid:2 * hid] + gh[:, hid:2 * hid])
        n = jnp.tanh(gx[:, 2 * hid:3 * hid] + r * gh[:, 2 * hid:3 * hid])
        return (1.0 - u) * n + u * h

    h = jnp.zeros((B, H), jnp.float32)
    for t in range(T):
        h = gru_cell(xemb[t], h, params["enc_wx"], params["enc_wh"],
                     params["enc_bx"], params["enc_bh"], H)
    p = h @ params["enc_wo"] + params["enc_bo"]
    mu, logvar = p[:, 0:Z], p[:, Z:2 * Z]
    z = mu + jnp.exp(0.5 * logvar) * eps

    h0 = jnp.tanh(z @ params["dec_wz2h_z"] + condition @ params["dec_wz2h_c"]
                  + params["dec_bz2h"])
    wx = jnp.concatenate([params["dec_wx_e"], params["dec_wx_z"], params["dec_wx_c"]], axis=0)
    hd = h0
    outs = []
    for t in range(T):
        xin = jnp.concatenate([temb[t], z, condition], axis=1)
        hd = gru_cell(xin, hd, wx, params["dec_wh"], params["dec_bx"], params["dec_bh"], HD)
        logit = (hd @ params["dec_wout"] + params["dec_bout"]) / temperature
        outs.append(jax.nn.log_softmax(logit, axis=-1))
    return mu, logvar, z, jnp.stack(outs, axis=0)


if __name__ == "__main__":
    key = jax.random.PRNGKey(0)
    k_par, k_in, k_tg, k_cond, k_eps = jax.random.split(key, 5)

    params = init_params(k_par)
    packed = prepare_params(params)       # one-time packing / folding (not on the per-call path)

    inputs = jax.random.randint(k_in, (B, T), 0, V, dtype=jnp.int32)
    targets = jax.random.randint(k_tg, (B, T), 0, V, dtype=jnp.int32)
    condition = jax.random.normal(k_cond, (B, C), jnp.float32)
    eps = jax.random.normal(k_eps, (B, Z), jnp.float32)

    fwd = jax.jit(vae_forward)
    m, l, z, decoded = fwd(packed, inputs, targets, condition, eps, jnp.float32(1.0))
    jax.block_until_ready((m, l, z, decoded))

    assert m.shape == (B, Z) and l.shape == (B, Z) and z.shape == (B, Z)
    assert decoded.shape == (T, B, V)
    assert bool(jnp.all(jnp.isfinite(decoded)))
    # log-softmax sanity: each (t, b) row of log-probs sums to ~1 in prob space
    assert bool(jnp.allclose(jnp.sum(jnp.exp(decoded), axis=-1), 1.0, atol=1e-4))

    # numerical check of the fused/folded kernel against the unfused pure-JAX reference
    m_r, l_r, z_r, d_r = vae_forward_ref(params, inputs, targets, condition, eps, 1.0)
    assert bool(jnp.allclose(m, m_r, atol=5e-3, rtol=5e-3))
    assert bool(jnp.allclose(l, l_r, atol=5e-3, rtol=5e-3))
    assert bool(jnp.allclose(z, z_r, atol=5e-3, rtol=5e-3))
    assert bool(jnp.allclose(decoded, d_r, atol=5e-3, rtol=5e-3))

    print("KERNEL_OK")
</pallas_src>

<mosaic_0001>
module attributes {stable_mosaic.version = 11 : i64} {
  func.func @vae_kernel(%arg0: i32, %arg1: memref<32x1xi32, #tpu.memory_space<vmem>>, %arg2: memref<2x20xf32, #tpu.memory_space<vmem>>, %arg3: memref<168x96xf32, #tpu.memory_space<vmem>>, %arg4: memref<128x32xf32, #tpu.memory_space<vmem>>, %arg5: memref<1x1xf32, #tpu.memory_space<vmem>>, %arg6: memref<2x48xf32, #tpu.memory_space<vmem>>, %arg7: memref<16x32xf32, #tpu.memory_space<vmem>>, %arg8: memref<16x32xf32, #tpu.memory_space<vmem>>) attributes {dimension_semantics = [#tpu.dimension_semantics<arbitrary>], iteration_bounds = array<i64: 1>, scalar_prefetch = 0 : i64, scratch_operands = 1 : i64, tpu.core_type = #tpu.core_type<tc>, window_params = [{pipeline_mode = #tpu.pipeline_mode<synchronous>, transform_indices = @transform_0, window_bounds = array<i64: 32, 1>}, {pipeline_mode = #tpu.pipeline_mode<synchronous>, transform_indices = @transform_1, window_bounds = array<i64: 2, 20>}, {pipeline_mode = #tpu.pipeline_mode<synchronous>, transform_indices = @transform_2, window_bounds = array<i64: 168, 96>}, {pipeline_mode = #tpu.pipeline_mode<synchronous>, transform_indices = @transform_3, window_bounds = array<i64: 128, 32>}, {pipeline_mode = #tpu.pipeline_mode<synchronous>, transform_indices = @transform_4, window_bounds = array<i64: 1, 1>}, {pipeline_mode = #tpu.pipeline_mode<synchronous>, transform_indices = @transform_5, window_bounds = array<i64: 2, 48>}, {pipeline_mode = #tpu.pipeline_mode<synchronous>, transform_indices = @transform_6, window_bounds = array<i64: 16, 32>}]} {
    %c0 = arith.constant 0 : index
    %c0_0 = arith.constant 0 : index
    %0 = vector.load %arg1[%c0, %c0_0] : memref<32x1xi32, #tpu.memory_space<vmem>>, vector<32x1xi32>
    %1 = tpu.iota {dimensions = array<i32: 1>} : vector<32x32xi32>
    %2 = vector.broadcast %0 : vector<32x1xi32> to vector<32x32xi32>
    %3 = arith.cmpi eq, %2, %1 : vector<32x32xi32>
    %4 = arith.extui %3 : vector<32x32xi1> to vector<32x32xi32>
    %5 = arith.sitofp %4 : vector<32x32xi32> to vector<32x32xf32>
    %6 = vector.extract_strided_slice %5 {offsets = [0, 0], sizes = [16, 32], strides = [1, 1]} : vector<32x32xf32> to vector<16x32xf32>
    %7 = vector.extract_strided_slice %5 {offsets = [16, 0], sizes = [16, 32], strides = [1, 1]} : vector<32x32xf32> to vector<16x32xf32>
    %c0_1 = arith.constant 0 : index
    %c0_2 = arith.constant 0 : index
    %8 = vector.load %arg2[%c0_1, %c0_2] : memref<2x20xf32, #tpu.memory_space<vmem>>, vector<2x4xf32>
    %c0_3 = arith.constant 0 : index
    %c4 = arith.constant 4 : index
    %9 = vector.load %arg2[%c0_3, %c4] : memref<2x20xf32, #tpu.memory_space<vmem>>, vector<2x16xf32>
    %c0_4 = arith.constant 0 : index
    %c0_5 = arith.constant 0 : index
    %10 = vector.load %arg3[%c0_4, %c0_5] : memref<168x96xf32, #tpu.memory_space<vmem>>, vector<32x96xf32>
    %c32 = arith.constant 32 : index
    %c0_6 = arith.constant 0 : index
    %11 = vector.load %arg3[%c32, %c0_6] : memref<168x96xf32, #tpu.memory_space<vmem>>, vector<32x96xf32>
    %c64 = arith.constant 64 : index
    %c0_7 = arith.constant 0 : index
    %12 = vector.load %arg3[%c64, %c0_7] : memref<168x96xf32, #tpu.memory_space<vmem>>, vector<32x96xf32>
    %c96 = arith.constant 96 : index
    %c0_8 = arith.constant 0 : index
    %13 = vector.load %arg3[%c96, %c0_8] : memref<168x96xf32, #tpu.memory_space<vmem>>, vector<32x96xf32>
    %c128 = arith.constant 128 : index
    %c0_9 = arith.constant 0 : index
    %14 = vector.load %arg3[%c128, %c0_9] : memref<168x96xf32, #tpu.memory_space<vmem>>, vector<16x96xf32>
    %c144 = arith.constant 144 : index
    %c0_10 = arith.constant 0 : index
    %15 = vector.load %arg3[%c144, %c0_10] : memref<168x96xf32, #tpu.memory_space<vmem>>, vector<4x96xf32>
    %c152 = arith.constant 152 : index
    %c0_11 = arith.constant 0 : index
    %16 = vector.load %arg3[%c152, %c0_11] : memref<168x96xf32, #tpu.memory_space<vmem>>, vector<1x96xf32>
    %c160 = arith.constant 160 : index
    %c0_12 = arith.constant 0 : index
    %17 = vector.load %arg3[%c160, %c0_12] : memref<168x96xf32, #tpu.memory_space<vmem>>, vector<1x96xf32>
    %c0_13 = arith.constant 0 : index
    %c0_14 = arith.constant 0 : index
    %18 = vector.load %arg4[%c0_13, %c0_14] : memref<128x32xf32, #tpu.memory_space<vmem>>, vector<32x32xf32>
    %c32_15 = arith.constant 32 : index
    %c0_16 = arith.constant 0 : index
    %19 = vector.load %arg4[%c32_15, %c0_16] : memref<128x32xf32, #tpu.memory_space<vmem>>, vector<16x32xf32>
    %c48 = arith.constant 48 : index
    %c0_17 = arith.constant 0 : index
    %20 = vector.load %arg4[%c48, %c0_17] : memref<128x32xf32, #tpu.memory_space<vmem>>, vector<4x32xf32>
    %c56 = arith.constant 56 : index
    %c0_18 = arith.constant 0 : index
    %21 = vector.load %arg4[%c56, %c0_18] : memref<128x32xf32, #tpu.memory_space<vmem>>, vector<32x32xf32>
    %c88 = arith.constant 88 : index
    %c0_19 = arith.constant 0 : index
    %22 = vector.load %arg4[%c88, %c0_19] : memref<128x32xf32, #tpu.memory_space<vmem>>, vector<1x32xf32>
    %c96_20 = arith.constant 96 : index
    %c0_21 = arith.constant 0 : index
    %23 = vector.load %arg4[%c96_20, %c0_21] : memref<128x32xf32, #tpu.memory_space<vmem>>, vector<1x32xf32>
    %c104 = arith.constant 104 : index
    %c0_22 = arith.constant 0 : index
    %24 = vector.load %arg4[%c104, %c0_22] : memref<128x32xf32, #tpu.memory_space<vmem>>, vector<1x32xf32>
    %c112 = arith.constant 112 : index
    %c0_23 = arith.constant 0 : index
    %25 = vector.load %arg4[%c112, %c0_23] : memref<128x32xf32, #tpu.memory_space<vmem>>, vector<1x32xf32>
    %26 = vector.shape_cast %25 : vector<1x32xf32> to vector<1x32xf32>
    %27 = vector.broadcast %26 : vector<1x32xf32> to vector<2x32xf32>
    %c120 = arith.constant 120 : index
    %c0_24 = arith.constant 0 : index
    %28 = vector.load %arg4[%c120, %c0_24] : memref<128x32xf32, #tpu.memory_space<vmem>>, vector<1x32xf32>
    %29 = vector.shape_cast %28 : vector<1x32xf32> to vector<1x32xf32>
    %30 = vector.broadcast %29 : vector<1x32xf32> to vector<2x32xf32>
    %cst = arith.constant dense<0.000000e+00> : vector<16x96xf32>
    %31 = tpu.matmul %6, %10, %cst {dimension_numbers = #tpu.dot_dimension_numbers<[1], [0], [0], [1], [0, 0, 1, 1], [], []>} : vector<16x32xf32>, vector<32x96xf32>, vector<16x96xf32> -> vector<16x96xf32>
    %32 = vector.broadcast %16 : vector<1x96xf32> to vector<16x96xf32>
    %33 = arith.addf %31, %32 : vector<16x96xf32>
    %cst_25 = arith.constant 0.000000e+00 : f32
    %34 = vector.broadcast %cst_25 : f32 to vector<2x32xf32>
    %35 = vector.extract_strided_slice %33 {offsets = [0, 0], sizes = [2, 96], strides = [1, 1]} : vector<16x96xf32> to vector<2x96xf32>
    %cst_26 = arith.constant dense<0.000000e+00> : vector<2x96xf32>
    %36 = tpu.matmul %34, %11, %cst_26 {dimension_numbers = #tpu.dot_dimension_numbers<[1], [0], [0], [1], [0, 0, 1, 1], [], []>} : vector<2x32xf32>, vector<32x96xf32>, vector<2x96xf32> -> vector<2x96xf32>
    %37 = vector.extract_strided_slice %35 {offsets = [0, 0], sizes = [2, 32], strides = [1, 1]} : vector<2x96xf32> to vector<2x32xf32>
    %38 = vector.extract_strided_slice %36 {offsets = [0, 0], sizes = [2, 32], strides = [1, 1]} : vector<2x96xf32> to vector<2x32xf32>
    %39 = arith.addf %37, %38 : vector<2x32xf32>
    %40 = arith.negf %39 : vector<2x32xf32>
    %41 = math.exp %40 : vector<2x32xf32>
    %cst_27 = arith.constant 1.000000e+00 : f32
    %42 = vector.broadcast %cst_27 : f32 to vector<2x32xf32>
    %43 = arith.addf %42, %41 : vector<2x32xf32>
    %44 = arith.divf %42, %43 : vector<2x32xf32>
    %45 = vector.extract_strided_slice %35 {offsets = [0, 32], sizes = [2, 32], strides = [1, 1]} : vector<2x96xf32> to vector<2x32xf32>
    %46 = vector.extract_strided_slice %36 {offsets = [0, 32], sizes = [2, 32], strides = [1, 1]} : vector<2x96xf32> to vector<2x32xf32>
    %47 = arith.addf %45, %46 : vector<2x32xf32>
    %48 = arith.negf %47 : vector<2x32xf32>
    %49 = math.exp %48 : vector<2x32xf32>
    %cst_28 = arith.constant 1.000000e+00 : f32
    %50 = vector.broadcast %cst_28 : f32 to vector<2x32xf32>
    %51 = arith.addf %50, %49 : vector<2x32xf32>
    %52 = arith.divf %50, %51 : vector<2x32xf32>
    %53 = vector.extract_strided_slice %35 {offsets = [0, 64], sizes = [2, 32], strides = [1, 1]} : vector<2x96xf32> to vector<2x32xf32>
    %54 = vector.extract_strided_slice %36 {offsets = [0, 64], sizes = [2, 32], strides = [1, 1]} : vector<2x96xf32> to vector<2x32xf32>
    %55 = arith.addf %54, %27 : vector<2x32xf32>
    %56 = arith.mulf %44, %55 : vector<2x32xf32>
    %57 = arith.addf %53, %56 : vector<2x32xf32>
    %58 = math.tanh %57 : vector<2x32xf32>
    %cst_29 = arith.constant 1.000000e+00 : f32
    %59 = vector.broadcast %cst_29 : f32 to vector<2x32xf32>
    %60 = arith.subf %59, %52 : vector<2x32xf32>
    %61 = arith.mulf %60, %58 : vector<2x32xf32>
    %62 = arith.mulf %52, %34 : vector<2x32xf32>
    %63 = arith.addf %61, %62 : vector<2x32xf32>
    %64 = vector.extract_strided_slice %33 {offsets = [2, 0], sizes = [2, 96], strides = [1, 1]} : vector<16x96xf32> to vector<2x96xf32>
    %cst_30 = arith.constant dense<0.000000e+00> : vector<2x96xf32>
    %65 = tpu.matmul %63, %11, %cst_30 {dimension_numbers = #tpu.dot_dimension_numbers<[1], [0], [0], [1], [0, 0, 1, 1], [], []>} : vector<2x32xf32>, vector<32x96xf32>, vector<2x96xf32> -> vector<2x96xf32>
    %66 = vector.extract_strided_slice %64 {offsets = [0, 0], sizes = [2, 32], strides = [1, 1]} : vector<2x96xf32> to vector<2x32xf32>
    %67 = vector.extract_strided_slice %65 {offsets = [0, 0], sizes = [2, 32], strides = [1, 1]} : vector<2x96xf32> to vector<2x32xf32>
    %68 = arith.addf %66, %67 : vector<2x32xf32>
    %69 = arith.negf %68 : vector<2x32xf32>
    %70 = math.exp %69 : vector<2x32xf32>
    %cst_31 = arith.constant 1.000000e+00 : f32
    %71 = vector.broadcast %cst_31 : f32 to vector<2x32xf32>
    %72 = arith.addf %71, %70 : vector<2x32xf32>
    %73 = arith.divf %71, %72 : vector<2x32xf32>
    %74 = vector.extract_strided_slice %64 {offsets = [0, 32], sizes = [2, 32], strides = [1, 1]} : vector<2x96xf32> to vector<2x32xf32>
    %75 = vector.extract_strided_slice %65 {offsets = [0, 32], sizes = [2, 32], strides = [1, 1]} : vector<2x96xf32> to vector<2x32xf32>
    %76 = arith.addf %74, %75 : vector<2x32xf32>
    %77 = arith.negf %76 : vector<2x32xf32>
    %78 = math.exp %77 : vector<2x32xf32>
    %cst_32 = arith.constant 1.000000e+00 : f32
    %79 = vector.broadcast %cst_32 : f32 to vector<2x32xf32>
    %80 = arith.addf %79, %78 : vector<2x32xf32>
    %81 = arith.divf %79, %80 : vector<2x32xf32>
    %82 = vector.extract_strided_slice %64 {offsets = [0, 64], sizes = [2, 32], strides = [1, 1]} : vector<2x96xf32> to vector<2x32xf32>
    %83 = vector.extract_strided_slice %65 {offsets = [0, 64], sizes = [2, 32], strides = [1, 1]} : vector<2x96xf32> to vector<2x32xf32>
    %84 = arith.addf %83, %27 : vector<2x32xf32>
    %85 = arith.mulf %73, %84 : vector<2x32xf32>
    %86 = arith.addf %82, %85 : vector<2x32xf32>
    %87 = math.tanh %86 : vector<2x32xf32>
    %cst_33 = arith.constant 1.000000e+00 : f32
    %88 = vector.broadcast %cst_33 : f32 to vector<2x32xf32>
    %89 = arith.subf %88, %81 : vector<2x32xf32>
    %90 = arith.mulf %89, %87 : vector<2x32xf32>
    %91 = arith.mulf %81, %63 : vector<2x32xf32>
    %92 = arith.addf %90, %91 : vector<2x32xf32>
    %93 = vector.extract_strided_slice %33 {offsets = [4, 0], sizes = [2, 96], strides = [1, 1]} : vector<16x96xf32> to vector<2x96xf32>
    %cst_34 = arith.constant dense<0.000000e+00> : vector<2x96xf32>
    %94 = tpu.matmul %92, %11, %cst_34 {dimension_numbers = #tpu.dot_dimension_numbers<[1], [0], [0], [1], [0, 0, 1, 1], [], []>} : vector<2x32xf32>, vector<32x96xf32>, vector<2x96xf32> -> vector<2x96xf32>
    %95 = vector.extract_strided_slice %93 {offsets = [0, 0], sizes = [2, 32], strides = [1, 1]} : vector<2x96xf32> to vector<2x32xf32>
    %96 = vector.extract_strided_slice %94 {offsets = [0, 0], sizes = [2, 32], strides = [1, 1]} : vector<2x96xf32> to vector<2x32xf32>
    %97 = arith.addf %95, %96 : vector<2x32xf32>
    %98 = arith.negf %97 : vector<2x32xf32>
    %99 = math.exp %98 : vector<2x32xf32>
    %cst_35 = arith.constant 1.000000e+00 : f32
    %100 = vector.broadcast %cst_35 : f32 to vector<2x32xf32>
    %101 = arith.addf %100, %99 : vector<2x32xf32>
    %102 = arith.divf %100, %101 : vector<2x32xf32>
    %103 = vector.extract_strided_slice %93 {offsets = [0, 32], sizes = [2, 32], strides = [1, 1]} : vector<2x96xf32> to vector<2x32xf32>
    %104 = vector.extract_strided_slice %94 {offsets = [0, 32], sizes = [2, 32], strides = [1, 1]} : vector<2x96xf32> to vector<2x32xf32>
    %105 = arith.addf %103, %104 : vector<2x32xf32>
    %106 = arith.negf %105 : vector<2x32xf32>
    %107 = math.exp %106 : vector<2x32xf32>
    %cst_36 = arith.constant 1.000000e+00 : f32
    %108 = vector.broadcast %cst_36 : f32 to vector<2x32xf32>
    %109 = arith.addf %108, %107 : vector<2x32xf32>
    %110 = arith.divf %108, %109 : vector<2x32xf32>
    %111 = vector.extract_strided_slice %93 {offsets = [0, 64], sizes = [2, 32], strides = [1, 1]} : vector<2x96xf32> to vector<2x32xf32>
    %112 = vector.extract_strided_slice %94 {offsets = [0, 64], sizes = [2, 32], strides = [1, 1]} : vector<2x96xf32> to vector<2x32xf32>
    %113 = arith.addf %112, %27 : vector<2x32xf32>
    %114 = arith.mulf %102, %113 : vector<2x32xf32>
    %115 = arith.addf %111, %114 : vector<2x32xf32>
    %116 = math.tanh %115 : vector<2x32xf32>
    %cst_37 = arith.constant 1.000000e+00 : f32
    %117 = vector.broadcast %cst_37 : f32 to vector<2x32xf32>
    %118 = arith.subf %117, %110 : vector<2x32xf32>
    %119 = arith.mulf %118, %116 : vector<2x32xf32>
    %120 = arith.mulf %110, %92 : vector<2x32xf32>
    %121 = arith.addf %119, %120 : vector<2x32xf32>
    %122 = vector.extract_strided_slice %33 {offsets = [6, 0], sizes = [2, 96], strides = [1, 1]} : vector<16x96xf32> to vector<2x96xf32>
    %cst_38 = arith.constant dense<0.000000e+00> : vector<2x96xf32>
    %123 = tpu.matmul %121, %11, %cst_38 {dimension_numbers = #tpu.dot_dimension_numbers<[1], [0], [0], [1], [0, 0, 1, 1], [], []>} : vector<2x32xf32>, vector<32x96xf32>, vector<2x96xf32> -> vector<2x96xf32>
    %124 = vector.extract_strided_slice %122 {offsets = [0, 0], sizes = [2, 32], strides = [1, 1]} : vector<2x96xf32> to vector<2x32xf32>
    %125 = vector.extract_strided_slice %123 {offsets = [0, 0], sizes = [2, 32], strides = [1, 1]} : vector<2x96xf32> to vector<2x32xf32>
    %126 = arith.addf %124, %125 : vector<2x32xf32>
    %127 = arith.negf %126 : vector<2x32xf32>
    %128 = math.exp %127 : vector<2x32xf32>
    %cst_39 = arith.constant 1.000000e+00 : f32
    %129 = vector.broadcast %cst_39 : f32 to vector<2x32xf32>
    %130 = arith.addf %129, %128 : vector<2x32xf32>
    %131 = arith.divf %129, %130 : vector<2x32xf32>
    %132 = vector.extract_strided_slice %122 {offsets = [0, 32], sizes = [2, 32], strides = [1, 1]} : vector<2x96xf32> to vector<2x32xf32>
    %133 = vector.extract_strided_slice %123 {offsets = [0, 32], sizes = [2, 32], strides = [1, 1]} : vector<2x96xf32> to vector<2x32xf32>
    %134 = arith.addf %132, %133 : vector<2x32xf32>
    %135 = arith.negf %134 : vector<2x32xf32>
    %136 = math.exp %135 : vector<2x32xf32>
    %cst_40 = arith.constant 1.000000e+00 : f32
    %137 = vector.broadcast %cst_40 : f32 to vector<2x32xf32>
    %138 = arith.addf %137, %136 : vector<2x32xf32>
    %139 = arith.divf %137, %138 : vector<2x32xf32>
    %140 = vector.extract_strided_slice %122 {offsets = [0, 64], sizes = [2, 32], strides = [1, 1]} : vector<2x96xf32> to vector<2x32xf32>
    %141 = vector.extract_strided_slice %123 {offsets = [0, 64], sizes = [2, 32], strides = [1, 1]} : vector<2x96xf32> to vector<2x32xf32>
    %142 = arith.addf %141, %27 : vector<2x32xf32>
    %143 = arith.mulf %131, %142 : vector<2x32xf32>
    %144 = arith.addf %140, %143 : vector<2x32xf32>
    %145 = math.tanh %144 : vector<2x32xf32>
    %cst_41 = arith.constant 1.000000e+00 : f32
    %146 = vector.broadcast %cst_41 : f32 to vector<2x32xf32>
    %147 = arith.subf %146, %139 : vector<2x32xf32>
    %148 = arith.mulf %147, %145 : vector<2x32xf32>
    %149 = arith.mulf %139, %121 : vector<2x32xf32>
    %150 = arith.addf %148, %149 : vector<2x32xf32>
    %151 = vector.extract_strided_slice %33 {offsets = [8, 0], sizes = [2, 96], strides = [1, 1]} : vector<16x96xf32> to vector<2x96xf32>
    %cst_42 = arith.constant dense<0.000000e+00> : vector<2x96xf32>
    %152 = tpu.matmul %150, %11, %cst_42 {dimension_numbers = #tpu.dot_dimension_numbers<[1], [0], [0], [1], [0, 0, 1, 1], [], []>} : vector<2x32xf32>, vector<32x96xf32>, vector<2x96xf32> -> vector<2x96xf32>
    %153 = vector.extract_strided_slice %151 {offsets = [0, 0], sizes = [2, 32], strides = [1, 1]} : vector<2x96xf32> to vector<2x32xf32>
    %154 = vector.extract_strided_slice %152 {offsets = [0, 0], sizes = [2, 32], strides = [1, 1]} : vector<2x96xf32> to vector<2x32xf32>
    %155 = arith.addf %153, %154 : vector<2x32xf32>
    %156 = arith.negf %155 : vector<2x32xf32>
    %157 = math.exp %156 : vector<2x32xf32>
    %cst_43 = arith.constant 1.000000e+00 : f32
    %158 = vector.broadcast %cst_43 : f32 to vector<2x32xf32>
    %159 = arith.addf %158, %157 : vector<2x32xf32>
    %160 = arith.divf %158, %159 : vector<2x32xf32>
    %161 = vector.extract_strided_slice %151 {offsets = [0, 32], sizes = [2, 32], strides = [1, 1]} : vector<2x96xf32> to vector<2x32xf32>
    %162 = vector.extract_strided_slice %152 {offsets = [0, 32], sizes = [2, 32], strides = [1, 1]} : vector<2x96xf32> to vector<2x32xf32>
    %163 = arith.addf %161, %162 : vector<2x32xf32>
    %164 = arith.negf %163 : vector<2x32xf32>
    %165 = math.exp %164 : vector<2x32xf32>
    %cst_44 = arith.constant 1.000000e+00 : f32
    %166 = vector.broadcast %cst_44 : f32 to vector<2x32xf32>
    %167 = arith.addf %166, %165 : vector<2x32xf32>
    %168 = arith.divf %166, %167 : vector<2x32xf32>
    %169 = vector.extract_strided_slice %151 {offsets = [0, 64], sizes = [2, 32], strides = [1, 1]} : vector<2x96xf32> to vector<2x32xf32>
    %170 = vector.extract_strided_slice %152 {offsets = [0, 64], sizes = [2, 32], strides = [1, 1]} : vector<2x96xf32> to vector<2x32xf32>
    %171 = arith.addf %170, %27 : vector<2x32xf32>
    %172 = arith.mulf %160, %171 : vector<2x32xf32>
    %173 = arith.addf %169, %172 : vector<2x32xf32>
    %174 = math.tanh %173 : vector<2x32xf32>
    %cst_45 = arith.constant 1.000000e+00 : f32
    %175 = vector.broadcast %cst_45 : f32 to vector<2x32xf32>
    %176 = arith.subf %175, %168 : vector<2x32xf32>
    %177 = arith.mulf %176, %174 : vector<2x32xf32>
    %178 = arith.mulf %168, %150 : vector<2x32xf32>
    %179 = arith.addf %177, %178 : vector<2x32xf32>
    %180 = vector.extract_strided_slice %33 {offsets = [10, 0], sizes = [2, 96], strides = [1, 1]} : vector<16x96xf32> to vector<2x96xf32>
    %cst_46 = arith.constant dense<0.000000e+00> : vector<2x96xf32>
    %181 = tpu.matmul %179, %11, %cst_46 {dimension_numbers = #tpu.dot_dimension_numbers<[1], [0], [0], [1], [0, 0, 1, 1], [], []>} : vector<2x32xf32>, vector<32x96xf32>, vector<2x96xf32> -> vector<2x96xf32>
    %182 = vector.extract_strided_slice %180 {offsets = [0, 0], sizes = [2, 32], strides = [1, 1]} : vector<2x96xf32> to vector<2x32xf32>
    %183 = vector.extract_strided_slice %181 {offsets = [0, 0], sizes = [2, 32], strides = [1, 1]} : vector<2x96xf32> to vector<2x32xf32>
    %184 = arith.addf %182, %183 : vector<2x32xf32>
    %185 = arith.negf %184 : vector<2x32xf32>
    %186 = math.exp %185 : vector<2x32xf32>
    %cst_47 = arith.constant 1.000000e+00 : f32
    %187 = vector.broadcast %cst_47 : f32 to vector<2x32xf32>
    %188 = arith.addf %187, %186 : vector<2x32xf32>
    %189 = arith.divf %187, %188 : vector<2x32xf32>
    %190 = vector.extract_strided_slice %180 {offsets = [0, 32], sizes = [2, 32], strides = [1, 1]} : vector<2x96xf32> to vector<2x32xf32>
    %191 = vector.extract_strided_slice %181 {offsets = [0, 32], sizes = [2, 32], strides = [1, 1]} : vector<2x96xf32> to vector<2x32xf32>
    %192 = arith.addf %190, %191 : vector<2x32xf32>
    %193 = arith.negf %192 : vector<2x32xf32>
    %194 = math.exp %193 : vector<2x32xf32>
    %cst_48 = arith.constant 1.000000e+00 : f32
    %195 = vector.broadcast %cst_48 : f32 to vector<2x32xf32>
    %196 = arith.addf %195, %194 : vector<2x32xf32>
    %197 = arith.divf %195, %196 : vector<2x32xf32>
    %198 = vector.extract_strided_slice %180 {offsets = [0, 64], sizes = [2, 32], strides = [1, 1]} : vector<2x96xf32> to vector<2x32xf32>
    %199 = vector.extract_strided_slice %181 {offsets = [0, 64], sizes = [2, 32], strides = [1, 1]} : vector<2x96xf32> to vector<2x32xf32>
    %200 = arith.addf %199, %27 : vector<2x32xf32>
    %201 = arith.mulf %189, %200 : vector<2x32xf32>
    %202 = arith.addf %198, %201 : vector<2x32xf32>
    %203 = math.tanh %202 : vector<2x32xf32>
    %cst_49 = arith.constant 1.000000e+00 : f32
    %204 = vector.broadcast %cst_49 : f32 to vector<2x32xf32>
    %205 = arith.subf %204, %197 : vector<2x32xf32>
    %206 = arith.mulf %205, %203 : vector<2x32xf32>
    %207 = arith.mulf %197, %179 : vector<2x32xf32>
    %208 = arith.addf %206, %207 : vector<2x32xf32>
    %209 = vector.extract_strided_slice %33 {offsets = [12, 0], sizes = [2, 96], strides = [1, 1]} : vector<16x96xf32> to vector<2x96xf32>
    %cst_50 = arith.constant dense<0.000000e+00> : vector<2x96xf32>
    %210 = tpu.matmul %208, %11, %cst_50 {dimension_numbers = #tpu.dot_dimension_numbers<[1], [0], [0], [1], [0, 0, 1, 1], [], []>} : vector<2x32xf32>, vector<32x96xf32>, vector<2x96xf32> -> vector<2x96xf32>
    %211 = vector.extract_strided_slice %209 {offsets = [0, 0], sizes = [2, 32], strides = [1, 1]} : vector<2x96xf32> to vector<2x32xf32>
    %212 = vector.extract_strided_slice %210 {offsets = [0, 0], sizes = [2, 32], strides = [1, 1]} : vector<2x96xf32> to vector<2x32xf32>
    %213 = arith.addf %211, %212 : vector<2x32xf32>
    %214 = arith.negf %213 : vector<2x32xf32>
    %215 = math.exp %214 : vector<2x32xf32>
    %cst_51 = arith.constant 1.000000e+00 : f32
    %216 = vector.broadcast %cst_51 : f32 to vector<2x32xf32>
    %217 = arith.addf %216, %215 : vector<2x32xf32>
    %218 = arith.divf %216, %217 : vector<2x32xf32>
    %219 = vector.extract_strided_slice %209 {offsets = [0, 32], sizes = [2, 32], strides = [1, 1]} : vector<2x96xf32> to vector<2x32xf32>
    %220 = vector.extract_strided_slice %210 {offsets = [0, 32], sizes = [2, 32], strides = [1, 1]} : vector<2x96xf32> to vector<2x32xf32>
    %221 = arith.addf %219, %220 : vector<2x32xf32>
    %222 = arith.negf %221 : vector<2x32xf32>
    %223 = math.exp %222 : vector<2x32xf32>
    %cst_52 = arith.constant 1.000000e+00 : f32
    %224 = vector.broadcast %cst_52 : f32 to vector<2x32xf32>
    %225 = arith.addf %224, %223 : vector<2x32xf32>
    %226 = arith.divf %224, %225 : vector<2x32xf32>
    %227 = vector.extract_strided_slice %209 {offsets = [0, 64], sizes = [2, 32], strides = [1, 1]} : vector<2x96xf32> to vector<2x32xf32>
    %228 = vector.extract_strided_slice %210 {offsets = [0, 64], sizes = [2, 32], strides = [1, 1]} : vector<2x96xf32> to vector<2x32xf32>
    %229 = arith.addf %228, %27 : vector<2x32xf32>
    %230 = arith.mulf %218, %229 : vector<2x32xf32>
    %231 = arith.addf %227, %230 : vector<2x32xf32>
    %232 = math.tanh %231 : vector<2x32xf32>
    %cst_53 = arith.constant 1.000000e+00 : f32
    %233 = vector.broadcast %cst_53 : f32 to vector<2x32xf32>
    %234 = arith.subf %233, %226 : vector<2x32xf32>
    %235 = arith.mulf %234, %232 : vector<2x32xf32>
    %236 = arith.mulf %226, %208 : vector<2x32xf32>
    %237 = arith.addf %235, %236 : vector<2x32xf32>
    %238 = vector.extract_strided_slice %33 {offsets = [14, 0], sizes = [2, 96], strides = [1, 1]} : vector<16x96xf32> to vector<2x96xf32>
    %cst_54 = arith.constant dense<0.000000e+00> : vector<2x96xf32>
    %239 = tpu.matmul %237, %11, %cst_54 {dimension_numbers = #tpu.dot_dimension_numbers<[1], [0], [0], [1], [0, 0, 1, 1], [], []>} : vector<2x32xf32>, vector<32x96xf32>, vector<2x96xf32> -> vector<2x96xf32>
    %240 = vector.extract_strided_slice %238 {offsets = [0, 0], sizes = [2, 32], strides = [1, 1]} : vector<2x96xf32> to vector<2x32xf32>
    %241 = vector.extract_strided_slice %239 {offsets = [0, 0], sizes = [2, 32], strides = [1, 1]} : vector<2x96xf32> to vector<2x32xf32>
    %242 = arith.addf %240, %241 : vector<2x32xf32>
    %243 = arith.negf %242 : vector<2x32xf32>
    %244 = math.exp %243 : vector<2x32xf32>
    %cst_55 = arith.constant 1.000000e+00 : f32
    %245 = vector.broadcast %cst_55 : f32 to vector<2x32xf32>
    %246 = arith.addf %245, %244 : vector<2x32xf32>
    %247 = arith.divf %245, %246 : vector<2x32xf32>
    %248 = vector.extract_strided_slice %238 {offsets = [0, 32], sizes = [2, 32], strides = [1, 1]} : vector<2x96xf32> to vector<2x32xf32>
    %249 = vector.extract_strided_slice %239 {offsets = [0, 32], sizes = [2, 32], strides = [1, 1]} : vector<2x96xf32> to vector<2x32xf32>
    %250 = arith.addf %248, %249 : vector<2x32xf32>
    %251 = arith.negf %250 : vector<2x32xf32>
    %252 = math.exp %251 : vector<2x32xf32>
    %cst_56 = arith.constant 1.000000e+00 : f32
    %253 = vector.broadcast %cst_56 : f32 to vector<2x32xf32>
    %254 = arith.addf %253, %252 : vector<2x32xf32>
    %255 = arith.divf %253, %254 : vector<2x32xf32>
    %256 = vector.extract_strided_slice %238 {offsets = [0, 64], sizes = [2, 32], strides = [1, 1]} : vector<2x96xf32> to vector<2x32xf32>
    %257 = vector.extract_strided_slice %239 {offsets = [0, 64], sizes = [2, 32], strides = [1, 1]} : vector<2x96xf32> to vector<2x32xf32>
    %258 = arith.addf %257, %27 : vector<2x32xf32>
    %259 = arith.mulf %247, %258 : vector<2x32xf32>
    %260 = arith.addf %256, %259 : vector<2x32xf32>
    %261 = math.tanh %260 : vector<2x32xf32>
    %cst_57 = arith.constant 1.000000e+00 : f32
    %262 = vector.broadcast %cst_57 : f32 to vector<2x32xf32>
    %263 = arith.subf %262, %255 : vector<2x32xf32>
    %264 = arith.mulf %263, %261 : vector<2x32xf32>
    %265 = arith.mulf %255, %237 : vector<2x32xf32>
    %266 = arith.addf %264, %265 : vector<2x32xf32>
    %cst_58 = arith.constant dense<0.000000e+00> : vector<2x32xf32>
    %267 = tpu.matmul %266, %18, %cst_58 {dimension_numbers = #tpu.dot_dimension_numbers<[1], [0], [0], [1], [0, 0, 1, 1], [], []>} : vector<2x32xf32>, vector<32x32xf32>, vector<2x32xf32> -> vector<2x32xf32>
    %268 = vector.broadcast %22 : vector<1x32xf32> to vector<2x32xf32>
    %269 = arith.addf %267, %268 : vector<2x32xf32>
    %270 = vector.extract_strided_slice %269 {offsets = [0, 0], sizes = [2, 16], strides = [1, 1]} : vector<2x32xf32> to vector<2x16xf32>
    %271 = vector.extract_strided_slice %269 {offsets = [0, 16], sizes = [2, 16], strides = [1, 1]} : vector<2x32xf32> to vector<2x16xf32>
    %cst_59 = arith.constant 5.000000e-01 : f32
    %272 = vector.broadcast %cst_59 : f32 to vector<2x16xf32>
    %273 = arith.mulf %272, %271 : vector<2x16xf32>
    %274 = math.exp %273 : vector<2x16xf32>
    %275 = arith.mulf %274, %9 : vector<2x16xf32>
    %276 = arith.addf %270, %275 : vector<2x16xf32>
    %c0_60 = arith.constant 0 : index
    %c0_61 = arith.constant 0 : index
    %277 = vector.load %arg6[%c0_60, %c0_61] : memref<2x48xf32, #tpu.memory_space<vmem>>, vector<2x32xf32>
    tpu.vector_store %arg6[%c0_60, %c0_61], %269 {strides = array<i32>} : memref<2x48xf32, #tpu.memory_space<vmem>>, vector<2x32xf32>,
    %c0_62 = arith.constant 0 : index
    %c32_63 = arith.constant 32 : index
    %278 = vector.load %arg6[%c0_62, %c32_63] : memref<2x48xf32, #tpu.memory_space<vmem>>, vector<2x16xf32>
    tpu.vector_store %arg6[%c0_62, %c32_63], %276 {strides = array<i32>} : memref<2x48xf32, #tpu.memory_space<vmem>>, vector<2x16xf32>,
    %cst_64 = arith.constant dense<0.000000e+00> : vector<2x32xf32>
    %279 = tpu.matmul %276, %19, %cst_64 {dimension_numbers = #tpu.dot_dimension_numbers<[1], [0], [0], [1], [0, 0, 1, 1], [], []>} : vector<2x16xf32>, vector<16x32xf32>, vector<2x32xf32> -> vector<2x32xf32>
    %cst_65 = arith.constant dense<0.000000e+00> : vector<2x32xf32>
    %280 = tpu.matmul %8, %20, %cst_65 {dimension_numbers = #tpu.dot_dimension_numbers<[1], [0], [0], [1], [0, 0, 1, 1], [], []>} : vector<2x4xf32>, vector<4x32xf32>, vector<2x32xf32> -> vector<2x32xf32>
    %281 = arith.addf %279, %280 : vector<2x32xf32>
    %282 = vector.broadcast %23 : vector<1x32xf32> to vector<2x32xf32>
    %283 = arith.addf %281, %282 : vector<2x32xf32>
    %284 = math.tanh %283 : vector<2x32xf32>
    %cst_66 = arith.constant dense<0.000000e+00> : vector<2x96xf32>
    %285 = tpu.matmul %276, %14, %cst_66 {dimension_numbers = #tpu.dot_dimension_numbers<[1], [0], [0], [1], [0, 0, 1, 1], [], []>} : vector<2x16xf32>, vector<16x96xf32>, vector<2x96xf32> -> vector<2x96xf32>
    %cst_67 = arith.constant dense<0.000000e+00> : vector<2x96xf32>
    %286 = tpu.matmul %8, %15, %cst_67 {dimension_numbers = #tpu.dot_dimension_numbers<[1], [0], [0], [1], [0, 0, 1, 1], [], []>} : vector<2x4xf32>, vector<4x96xf32>, vector<2x96xf32> -> vector<2x96xf32>
    %287 = arith.addf %285, %286 : vector<2x96xf32>
    %cst_68 = arith.constant dense<0.000000e+00> : vector<16x96xf32>
    %288 = tpu.matmul %7, %12, %cst_68 {dimension_numbers = #tpu.dot_dimension_numbers<[1], [0], [0], [1], [0, 0, 1, 1], [], []>} : vector<16x32xf32>, vector<32x96xf32>, vector<16x96xf32> -> vector<16x96xf32>
    %289 = vector.broadcast %17 : vector<1x96xf32> to vector<16x96xf32>
    %290 = arith.addf %288, %289 : vector<16x96xf32>
    %291 = vector.extract_strided_slice %290 {offsets = [0, 0], sizes = [2, 96], strides = [1, 1]} : vector<16x96xf32> to vector<2x96xf32>
    %292 = arith.addf %291, %287 : vector<2x96xf32>
    %cst_69 = arith.constant dense<0.000000e+00> : vector<2x96xf32>
    %293 = tpu.matmul %284, %13, %cst_69 {dimension_numbers = #tpu.dot_dimension_numbers<[1], [0], [0], [1], [0, 0, 1, 1], [], []>} : vector<2x32xf32>, vector<32x96xf32>, vector<2x96xf32> -> vector<2x96xf32>
    %294 = vector.extract_strided_slice %292 {offsets = [0, 0], sizes = [2, 32], strides = [1, 1]} : vector<2x96xf32> to vector<2x32xf32>
    %295 = vector.extract_strided_slice %293 {offsets = [0, 0], sizes = [2, 32], strides = [1, 1]} : vector<2x96xf32> to vector<2x32xf32>
    %296 = arith.addf %294, %295 : vector<2x32xf32>
    %297 = arith.negf %296 : vector<2x32xf32>
    %298 = math.exp %297 : vector<2x32xf32>
    %cst_70 = arith.constant 1.000000e+00 : f32
    %299 = vector.broadcast %cst_70 : f32 to vector<2x32xf32>
    %300 = arith.addf %299, %298 : vector<2x32xf32>
    %301 = arith.divf %299, %300 : vector<2x32xf32>
    %302 = vector.extract_strided_slice %292 {offsets = [0, 32], sizes = [2, 32], strides = [1, 1]} : vector<2x96xf32> to vector<2x32xf32>
    %303 = vector.extract_strided_slice %293 {offsets = [0, 32], sizes = [2, 32], strides = [1, 1]} : vector<2x96xf32> to vector<2x32xf32>
    %304 = arith.addf %302, %303 : vector<2x32xf32>
    %305 = arith.negf %304 : vector<2x32xf32>
    %306 = math.exp %305 : vector<2x32xf32>
    %cst_71 = arith.constant 1.000000e+00 : f32
    %307 = vector.broadcast %cst_71 : f32 to vector<2x32xf32>
    %308 = arith.addf %307, %306 : vector<2x32xf32>
    %309 = arith.divf %307, %308 : vector<2x32xf32>
    %310 = vector.extract_strided_slice %292 {offsets = [0, 64], sizes = [2, 32], strides = [1, 1]} : vector<2x96xf32> to vector<2x32xf32>
    %311 = vector.extract_strided_slice %293 {offsets = [0, 64], sizes = [2, 32], strides = [1, 1]} : vector<2x96xf32> to vector<2x32xf32>
    %312 = arith.addf %311, %30 : vector<2x32xf32>
    %313 = arith.mulf %301, %312 : vector<2x32xf32>
    %314 = arith.addf %310, %313 : vector<2x32xf32>
    %315 = math.tanh %314 : vector<2x32xf32>
    %cst_72 = arith.constant 1.000000e+00 : f32
    %316 = vector.broadcast %cst_72 : f32 to vector<2x32xf32>
    %317 = arith.subf %316, %309 : vector<2x32xf32>
    %318 = arith.mulf %317, %315 : vector<2x32xf32>
    %319 = arith.mulf %309, %284 : vector<2x32xf32>
    %320 = arith.addf %318, %319 : vector<2x32xf32>
    %c0_73 = arith.constant 0 : index
    %c0_74 = arith.constant 0 : index
    %321 = vector.load %arg8[%c0_73, %c0_74] : memref<16x32xf32, #tpu.memory_space<vmem>>, vector<2x32xf32>
    tpu.vector_store %arg8[%c0_73, %c0_74], %320 {strides = array<i32>} : memref<16x32xf32, #tpu.memory_space<vmem>>, vector<2x32xf32>,
    %322 = vector.extract_strided_slice %290 {offsets = [2, 0], sizes = [2, 96], strides = [1, 1]} : vector<16x96xf32> to vector<2x96xf32>
    %323 = arith.addf %322, %287 : vector<2x96xf32>
    %cst_75 = arith.constant dense<0.000000e+00> : vector<2x96xf32>
    %324 = tpu.matmul %320, %13, %cst_75 {dimension_numbers = #tpu.dot_dimension_numbers<[1], [0], [0], [1], [0, 0, 1, 1], [], []>} : vector<2x32xf32>, vector<32x96xf32>, vector<2x96xf32> -> vector<2x96xf32>
    %325 = vector.extract_strided_slice %323 {offsets = [0, 0], sizes = [2, 32], strides = [1, 1]} : vector<2x96xf32> to vector<2x32xf32>
    %326 = vector.extract_strided_slice %324 {offsets = [0, 0], sizes = [2, 32], strides = [1, 1]} : vector<2x96xf32> to vector<2x32xf32>
    %327 = arith.addf %325, %326 : vector<2x32xf32>
    %328 = arith.negf %327 : vector<2x32xf32>
    %329 = math.exp %328 : vector<2x32xf32>
    %cst_76 = arith.constant 1.000000e+00 : f32
    %330 = vector.broadcast %cst_76 : f32 to vector<2x32xf32>
    %331 = arith.addf %330, %329 : vector<2x32xf32>
    %332 = arith.divf %330, %331 : vector<2x32xf32>
    %333 = vector.extract_strided_slice %323 {offsets = [0, 32], sizes = [2, 32], strides = [1, 1]} : vector<2x96xf32> to vector<2x32xf32>
    %334 = vector.extract_strided_slice %324 {offsets = [0, 32], sizes = [2, 32], strides = [1, 1]} : vector<2x96xf32> to vector<2x32xf32>
    %335 = arith.addf %333, %334 : vector<2x32xf32>
    %336 = arith.negf %335 : vector<2x32xf32>
    %337 = math.exp %336 : vector<2x32xf32>
    %cst_77 = arith.constant 1.000000e+00 : f32
    %338 = vector.broadcast %cst_77 : f32 to vector<2x32xf32>
    %339 = arith.addf %338, %337 : vector<2x32xf32>
    %340 = arith.divf %338, %339 : vector<2x32xf32>
    %341 = vector.extract_strided_slice %323 {offsets = [0, 64], sizes = [2, 32], strides = [1, 1]} : vector<2x96xf32> to vector<2x32xf32>
    %342 = vector.extract_strided_slice %324 {offsets = [0, 64], sizes = [2, 32], strides = [1, 1]} : vector<2x96xf32> to vector<2x32xf32>
    %343 = arith.addf %342, %30 : vector<2x32xf32>
    %344 = arith.mulf %332, %343 : vector<2x32xf32>
    %345 = arith.addf %341, %344 : vector<2x32xf32>
    %346 = math.tanh %345 : vector<2x32xf32>
    %cst_78 = arith.constant 1.000000e+00 : f32
    %347 = vector.broadcast %cst_78 : f32 to vector<2x32xf32>
    %348 = arith.subf %347, %340 : vector<2x32xf32>
    %349 = arith.mulf %348, %346 : vector<2x32xf32>
    %350 = arith.mulf %340, %320 : vector<2x32xf32>
    %351 = arith.addf %349, %350 : vector<2x32xf32>
    %c2 = arith.constant 2 : index
    %c0_79 = arith.constant 0 : index
    %352 = vector.load %arg8[%c2, %c0_79] : memref<16x32xf32, #tpu.memory_space<vmem>>, vector<2x32xf32>
    tpu.vector_store %arg8[%c2, %c0_79], %351 {strides = array<i32>} : memref<16x32xf32, #tpu.memory_space<vmem>>, vector<2x32xf32>,
    %353 = vector.extract_strided_slice %290 {offsets = [4, 0], sizes = [2, 96], strides = [1, 1]} : vector<16x96xf32> to vector<2x96xf32>
    %354 = arith.addf %353, %287 : vector<2x96xf32>
    %cst_80 = arith.constant dense<0.000000e+00> : vector<2x96xf32>
    %355 = tpu.matmul %351, %13, %cst_80 {dimension_numbers = #tpu.dot_dimension_numbers<[1], [0], [0], [1], [0, 0, 1, 1], [], []>} : vector<2x32xf32>, vector<32x96xf32>, vector<2x96xf32> -> vector<2x96xf32>
    %356 = vector.extract_strided_slice %354 {offsets = [0, 0], sizes = [2, 32], strides = [1, 1]} : vector<2x96xf32> to vector<2x32xf32>
    %357 = vector.extract_strided_slice %355 {offsets = [0, 0], sizes = [2, 32], strides = [1, 1]} : vector<2x96xf32> to vector<2x32xf32>
    %358 = arith.addf %356, %357 : vector<2x32xf32>
    %359 = arith.negf %358 : vector<2x32xf32>
    %360 = math.exp %359 : vector<2x32xf32>
    %cst_81 = arith.constant 1.000000e+00 : f32
    %361 = vector.broadcast %cst_81 : f32 to vector<2x32xf32>
    %362 = arith.addf %361, %360 : vector<2x32xf32>
    %363 = arith.divf %361, %362 : vector<2x32xf32>
    %364 = vector.extract_strided_slice %354 {offsets = [0, 32], sizes = [2, 32], strides = [1, 1]} : vector<2x96xf32> to vector<2x32xf32>
    %365 = vector.extract_strided_slice %355 {offsets = [0, 32], sizes = [2, 32], strides = [1, 1]} : vector<2x96xf32> to vector<2x32xf32>
    %366 = arith.addf %364, %365 : vector<2x32xf32>
    %367 = arith.negf %366 : vector<2x32xf32>
    %368 = math.exp %367 : vector<2x32xf32>
    %cst_82 = arith.constant 1.000000e+00 : f32
    %369 = vector.broadcast %cst_82 : f32 to vector<2x32xf32>
    %370 = arith.addf %369, %368 : vector<2x32xf32>
    %371 = arith.divf %369, %370 : vector<2x32xf32>
    %372 = vector.extract_strided_slice %354 {offsets = [0, 64], sizes = [2, 32], strides = [1, 1]} : vector<2x96xf32> to vector<2x32xf32>
    %373 = vector.extract_strided_slice %355 {offsets = [0, 64], sizes = [2, 32], strides = [1, 1]} : vector<2x96xf32> to vector<2x32xf32>
    %374 = arith.addf %373, %30 : vector<2x32xf32>
    %375 = arith.mulf %363, %374 : vector<2x32xf32>
    %376 = arith.addf %372, %375 : vector<2x32xf32>
    %377 = math.tanh %376 : vector<2x32xf32>
    %cst_83 = arith.constant 1.000000e+00 : f32
    %378 = vector.broadcast %cst_83 : f32 to vector<2x32xf32>
    %379 = arith.subf %378, %371 : vector<2x32xf32>
    %380 = arith.mulf %379, %377 : vector<2x32xf32>
    %381 = arith.mulf %371, %351 : vector<2x32xf32>
    %382 = arith.addf %380, %381 : vector<2x32xf32>
    %c4_84 = arith.constant 4 : index
    %c0_85 = arith.constant 0 : index
    %383 = vector.load %arg8[%c4_84, %c0_85] : memref<16x32xf32, #tpu.memory_space<vmem>>, vector<2x32xf32>
    tpu.vector_store %arg8[%c4_84, %c0_85], %382 {strides = array<i32>} : memref<16x32xf32, #tpu.memory_space<vmem>>, vector<2x32xf32>,
    %384 = vector.extract_strided_slice %290 {offsets = [6, 0], sizes = [2, 96], strides = [1, 1]} : vector<16x96xf32> to vector<2x96xf32>
    %385 = arith.addf %384, %287 : vector<2x96xf32>
    %cst_86 = arith.constant dense<0.000000e+00> : vector<2x96xf32>
    %386 = tpu.matmul %382, %13, %cst_86 {dimension_numbers = #tpu.dot_dimension_numbers<[1], [0], [0], [1], [0, 0, 1, 1], [], []>} : vector<2x32xf32>, vector<32x96xf32>, vector<2x96xf32> -> vector<2x96xf32>
    %387 = vector.extract_strided_slice %385 {offsets = [0, 0], sizes = [2, 32], strides = [1, 1]} : vector<2x96xf32> to vector<2x32xf32>
    %388 = vector.extract_strided_slice %386 {offsets = [0, 0], sizes = [2, 32], strides = [1, 1]} : vector<2x96xf32> to vector<2x32xf32>
    %389 = arith.addf %387, %388 : vector<2x32xf32>
    %390 = arith.negf %389 : vector<2x32xf32>
    %391 = math.exp %390 : vector<2x32xf32>
    %cst_87 = arith.constant 1.000000e+00 : f32
    %392 = vector.broadcast %cst_87 : f32 to vector<2x32xf32>
    %393 = arith.addf %392, %391 : vector<2x32xf32>
    %394 = arith.divf %392, %393 : vector<2x32xf32>
    %395 = vector.extract_strided_slice %385 {offsets = [0, 32], sizes = [2, 32], strides = [1, 1]} : vector<2x96xf32> to vector<2x32xf32>
    %396 = vector.extract_strided_slice %386 {offsets = [0, 32], sizes = [2, 32], strides = [1, 1]} : vector<2x96xf32> to vector<2x32xf32>
    %397 = arith.addf %395, %396 : vector<2x32xf32>
    %398 = arith.negf %397 : vector<2x32xf32>
    %399 = math.exp %398 : vector<2x32xf32>
    %cst_88 = arith.constant 1.000000e+00 : f32
    %400 = vector.broadcast %cst_88 : f32 to vector<2x32xf32>
    %401 = arith.addf %400, %399 : vector<2x32xf32>
    %402 = arith.divf %400, %401 : vector<2x32xf32>
    %403 = vector.extract_strided_slice %385 {offsets = [0, 64], sizes = [2, 32], strides = [1, 1]} : vector<2x96xf32> to vector<2x32xf32>
    %404 = vector.extract_strided_slice %386 {offsets = [0, 64], sizes = [2, 32], strides = [1, 1]} : vector<2x96xf32> to vector<2x32xf32>
    %405 = arith.addf %404, %30 : vector<2x32xf32>
    %406 = arith.mulf %394, %405 : vector<2x32xf32>
    %407 = arith.addf %403, %406 : vector<2x32xf32>
    %408 = math.tanh %407 : vector<2x32xf32>
    %cst_89 = arith.constant 1.000000e+00 : f32
    %409 = vector.broadcast %cst_89 : f32 to vector<2x32xf32>
    %410 = arith.subf %409, %402 : vector<2x32xf32>
    %411 = arith.mulf %410, %408 : vector<2x32xf32>
    %412 = arith.mulf %402, %382 : vector<2x32xf32>
    %413 = arith.addf %411, %412 : vector<2x32xf32>
    %c6 = arith.constant 6 : index
    %c0_90 = arith.constant 0 : index
    %414 = vector.load %arg8[%c6, %c0_90] : memref<16x32xf32, #tpu.memory_space<vmem>>, vector<2x32xf32>
    tpu.vector_store %arg8[%c6, %c0_90], %413 {strides = array<i32>} : memref<16x32xf32, #tpu.memory_space<vmem>>, vector<2x32xf32>,
    %415 = vector.extract_strided_slice %290 {offsets = [8, 0], sizes = [2, 96], strides = [1, 1]} : vector<16x96xf32> to vector<2x96xf32>
    %416 = arith.addf %415, %287 : vector<2x96xf32>
    %cst_91 = arith.constant dense<0.000000e+00> : vector<2x96xf32>
    %417 = tpu.matmul %413, %13, %cst_91 {dimension_numbers = #tpu.dot_dimension_numbers<[1], [0], [0], [1], [0, 0, 1, 1], [], []>} : vector<2x32xf32>, vector<32x96xf32>, vector<2x96xf32> -> vector<2x96xf32>
    %418 = vector.extract_strided_slice %416 {offsets = [0, 0], sizes = [2, 32], strides = [1, 1]} : vector<2x96xf32> to vector<2x32xf32>
    %419 = vector.extract_strided_slice %417 {offsets = [0, 0], sizes = [2, 32], strides = [1, 1]} : vector<2x96xf32> to vector<2x32xf32>
    %420 = arith.addf %418, %419 : vector<2x32xf32>
    %421 = arith.negf %420 : vector<2x32xf32>
    %422 = math.exp %421 : vector<2x32xf32>
    %cst_92 = arith.constant 1.000000e+00 : f32
    %423 = vector.broadcast %cst_92 : f32 to vector<2x32xf32>
    %424 = arith.addf %423, %422 : vector<2x32xf32>
    %425 = arith.divf %423, %424 : vector<2x32xf32>
    %426 = vector.extract_strided_slice %416 {offsets = [0, 32], sizes = [2, 32], strides = [1, 1]} : vector<2x96xf32> to vector<2x32xf32>
    %427 = vector.extract_strided_slice %417 {offsets = [0, 32], sizes = [2, 32], strides = [1, 1]} : vector<2x96xf32> to vector<2x32xf32>
    %428 = arith.addf %426, %427 : vector<2x32xf32>
    %429 = arith.negf %428 : vector<2x32xf32>
    %430 = math.exp %429 : vector<2x32xf32>
    %cst_93 = arith.constant 1.000000e+00 : f32
    %431 = vector.broadcast %cst_93 : f32 to vector<2x32xf32>
    %432 = arith.addf %431, %430 : vector<2x32xf32>
    %433 = arith.divf %431, %432 : vector<2x32xf32>
    %434 = vector.extract_strided_slice %416 {offsets = [0, 64], sizes = [2, 32], strides = [1, 1]} : vector<2x96xf32> to vector<2x32xf32>
    %435 = vector.extract_strided_slice %417 {offsets = [0, 64], sizes = [2, 32], strides = [1, 1]} : vector<2x96xf32> to vector<2x32xf32>
    %436 = arith.addf %435, %30 : vector<2x32xf32>
    %437 = arith.mulf %425, %436 : vector<2x32xf32>
    %438 = arith.addf %434, %437 : vector<2x32xf32>
    %439 = math.tanh %438 : vector<2x32xf32>
    %cst_94 = arith.constant 1.000000e+00 : f32
    %440 = vector.broadcast %cst_94 : f32 to vector<2x32xf32>
    %441 = arith.subf %440, %433 : vector<2x32xf32>
    %442 = arith.mulf %441, %439 : vector<2x32xf32>
    %443 = arith.mulf %433, %413 : vector<2x32xf32>
    %444 = arith.addf %442, %443 : vector<2x32xf32>
    %c8 = arith.constant 8 : index
    %c0_95 = arith.constant 0 : index
    %445 = vector.load %arg8[%c8, %c0_95] : memref<16x32xf32, #tpu.memory_space<vmem>>, vector<2x32xf32>
    tpu.vector_store %arg8[%c8, %c0_95], %444 {strides = array<i32>} : memref<16x32xf32, #tpu.memory_space<vmem>>, vector<2x32xf32>,
    %446 = vector.extract_strided_slice %290 {offsets = [10, 0], sizes = [2, 96], strides = [1, 1]} : vector<16x96xf32> to vector<2x96xf32>
    %447 = arith.addf %446, %287 : vector<2x96xf32>
    %cst_96 = arith.constant dense<0.000000e+00> : vector<2x96xf32>
    %448 = tpu.matmul %444, %13, %cst_96 {dimension_numbers = #tpu.dot_dimension_numbers<[1], [0], [0], [1], [0, 0, 1, 1], [], []>} : vector<2x32xf32>, vector<32x96xf32>, vector<2x96xf32> -> vector<2x96xf32>
    %449 = vector.extract_strided_slice %447 {offsets = [0, 0], sizes = [2, 32], strides = [1, 1]} : vector<2x96xf32> to vector<2x32xf32>
    %450 = vector.extract_strided_slice %448 {offsets = [0, 0], sizes = [2, 32], strides = [1, 1]} : vector<2x96xf32> to vector<2x32xf32>
    %451 = arith.addf %449, %450 : vector<2x32xf32>
    %452 = arith.negf %451 : vector<2x32xf32>
    %453 = math.exp %452 : vector<2x32xf32>
    %cst_97 = arith.constant 1.000000e+00 : f32
    %454 = vector.broadcast %cst_97 : f32 to vector<2x32xf32>
    %455 = arith.addf %454, %453 : vector<2x32xf32>
    %456 = arith.divf %454, %455 : vector<2x32xf32>
    %457 = vector.extract_strided_slice %447 {offsets = [0, 32], sizes = [2, 32], strides = [1, 1]} : vector<2x96xf32> to vector<2x32xf32>
    %458 = vector.extract_strided_slice %448 {offsets = [0, 32], sizes = [2, 32], strides = [1, 1]} : vector<2x96xf32> to vector<2x32xf32>
    %459 = arith.addf %457, %458 : vector<2x32xf32>
    %460 = arith.negf %459 : vector<2x32xf32>
    %461 = math.exp %460 : vector<2x32xf32>
    %cst_98 = arith.constant 1.000000e+00 : f32
    %462 = vector.broadcast %cst_98 : f32 to vector<2x32xf32>
    %463 = arith.addf %462, %461 : vector<2x32xf32>
    %464 = arith.divf %462, %463 : vector<2x32xf32>
    %465 = vector.extract_strided_slice %447 {offsets = [0, 64], sizes = [2, 32], strides = [1, 1]} : vector<2x96xf32> to vector<2x32xf32>
    %466 = vector.extract_strided_slice %448 {offsets = [0, 64], sizes = [2, 32], strides = [1, 1]} : vector<2x96xf32> to vector<2x32xf32>
    %467 = arith.addf %466, %30 : vector<2x32xf32>
    %468 = arith.mulf %456, %467 : vector<2x32xf32>
    %469 = arith.addf %465, %468 : vector<2x32xf32>
    %470 = math.tanh %469 : vector<2x32xf32>
    %cst_99 = arith.constant 1.000000e+00 : f32
    %471 = vector.broadcast %cst_99 : f32 to vector<2x32xf32>
    %472 = arith.subf %471, %464 : vector<2x32xf32>
    %473 = arith.mulf %472, %470 : vector<2x32xf32>
    %474 = arith.mulf %464, %444 : vector<2x32xf32>
    %475 = arith.addf %473, %474 : vector<2x32xf32>
    %c10 = arith.constant 10 : index
    %c0_100 = arith.constant 0 : index
    %476 = vector.load %arg8[%c10, %c0_100] : memref<16x32xf32, #tpu.memory_space<vmem>>, vector<2x32xf32>
    tpu.vector_store %arg8[%c10, %c0_100], %475 {strides = array<i32>} : memref<16x32xf32, #tpu.memory_space<vmem>>, vector<2x32xf32>,
    %477 = vector.extract_strided_slice %290 {offsets = [12, 0], sizes = [2, 96], strides = [1, 1]} : vector<16x96xf32> to vector<2x96xf32>
    %478 = arith.addf %477, %287 : vector<2x96xf32>
    %cst_101 = arith.constant dense<0.000000e+00> : vector<2x96xf32>
    %479 = tpu.matmul %475, %13, %cst_101 {dimension_numbers = #tpu.dot_dimension_numbers<[1], [0], [0], [1], [0, 0, 1, 1], [], []>} : vector<2x32xf32>, vector<32x96xf32>, vector<2x96xf32> -> vector<2x96xf32>
    %480 = vector.extract_strided_slice %478 {offsets = [0, 0], sizes = [2, 32], strides = [1, 1]} : vector<2x96xf32> to vector<2x32xf32>
    %481 = vector.extract_strided_slice %479 {offsets = [0, 0], sizes = [2, 32], strides = [1, 1]} : vector<2x96xf32> to vector<2x32xf32>
    %482 = arith.addf %480, %481 : vector<2x32xf32>
    %483 = arith.negf %482 : vector<2x32xf32>
    %484 = math.exp %483 : vector<2x32xf32>
    %cst_102 = arith.constant 1.000000e+00 : f32
    %485 = vector.broadcast %cst_102 : f32 to vector<2x32xf32>
    %486 = arith.addf %485, %484 : vector<2x32xf32>
    %487 = arith.divf %485, %486 : vector<2x32xf32>
    %488 = vector.extract_strided_slice %478 {offsets = [0, 32], sizes = [2, 32], strides = [1, 1]} : vector<2x96xf32> to vector<2x32xf32>
    %489 = vector.extract_strided_slice %479 {offsets = [0, 32], sizes = [2, 32], strides = [1, 1]} : vector<2x96xf32> to vector<2x32xf32>
    %490 = arith.addf %488, %489 : vector<2x32xf32>
    %491 = arith.negf %490 : vector<2x32xf32>
    %492 = math.exp %491 : vector<2x32xf32>
    %cst_103 = arith.constant 1.000000e+00 : f32
    %493 = vector.broadcast %cst_103 : f32 to vector<2x32xf32>
    %494 = arith.addf %493, %492 : vector<2x32xf32>
    %495 = arith.divf %493, %494 : vector<2x32xf32>
    %496 = vector.extract_strided_slice %478 {offsets = [0, 64], sizes = [2, 32], strides = [1, 1]} : vector<2x96xf32> to vector<2x32xf32>
    %497 = vector.extract_strided_slice %479 {offsets = [0, 64], sizes = [2, 32], strides = [1, 1]} : vector<2x96xf32> to vector<2x32xf32>
    %498 = arith.addf %497, %30 : vector<2x32xf32>
    %499 = arith.mulf %487, %498 : vector<2x32xf32>
    %500 = arith.addf %496, %499 : vector<2x32xf32>
    %501 = math.tanh %500 : vector<2x32xf32>
    %cst_104 = arith.constant 1.000000e+00 : f32
    %502 = vector.broadcast %cst_104 : f32 to vector<2x32xf32>
    %503 = arith.subf %502, %495 : vector<2x32xf32>
    %504 = arith.mulf %503, %501 : vector<2x32xf32>
    %505 = arith.mulf %495, %475 : vector<2x32xf32>
    %506 = arith.addf %504, %505 : vector<2x32xf32>
    %c12 = arith.constant 12 : index
    %c0_105 = arith.constant 0 : index
    %507 = vector.load %arg8[%c12, %c0_105] : memref<16x32xf32, #tpu.memory_space<vmem>>, vector<2x32xf32>
    tpu.vector_store %arg8[%c12, %c0_105], %506 {strides = array<i32>} : memref<16x32xf32, #tpu.memory_space<vmem>>, vector<2x32xf32>,
    %508 = vector.extract_strided_slice %290 {offsets = [14, 0], sizes = [2, 96], strides = [1, 1]} : vector<16x96xf32> to vector<2x96xf32>
    %509 = arith.addf %508, %287 : vector<2x96xf32>
    %cst_106 = arith.constant dense<0.000000e+00> : vector<2x96xf32>
    %510 = tpu.matmul %506, %13, %cst_106 {dimension_numbers = #tpu.dot_dimension_numbers<[1], [0], [0], [1], [0, 0, 1, 1], [], []>} : vector<2x32xf32>, vector<32x96xf32>, vector<2x96xf32> -> vector<2x96xf32>
    %511 = vector.extract_strided_slice %509 {offsets = [0, 0], sizes = [2, 32], strides = [1, 1]} : vector<2x96xf32> to vector<2x32xf32>
    %512 = vector.extract_strided_slice %510 {offsets = [0, 0], sizes = [2, 32], strides = [1, 1]} : vector<2x96xf32> to vector<2x32xf32>
    %513 = arith.addf %511, %512 : vector<2x32xf32>
    %514 = arith.negf %513 : vector<2x32xf32>
    %515 = math.exp %514 : vector<2x32xf32>
    %cst_107 = arith.constant 1.000000e+00 : f32
    %516 = vector.broadcast %cst_107 : f32 to vector<2x32xf32>
    %517 = arith.addf %516, %515 : vector<2x32xf32>
    %518 = arith.divf %516, %517 : vector<2x32xf32>
    %519 = vector.extract_strided_slice %509 {offsets = [0, 32], sizes = [2, 32], strides = [1, 1]} : vector<2x96xf32> to vector<2x32xf32>
    %520 = vector.extract_strided_slice %510 {offsets = [0, 32], sizes = [2, 32], strides = [1, 1]} : vector<2x96xf32> to vector<2x32xf32>
    %521 = arith.addf %519, %520 : vector<2x32xf32>
    %522 = arith.negf %521 : vector<2x32xf32>
    %523 = math.exp %522 : vector<2x32xf32>
    %cst_108 = arith.constant 1.000000e+00 : f32
    %524 = vector.broadcast %cst_108 : f32 to vector<2x32xf32>
    %525 = arith.addf %524, %523 : vector<2x32xf32>
    %526 = arith.divf %524, %525 : vector<2x32xf32>
    %527 = vector.extract_strided_slice %509 {offsets = [0, 64], sizes = [2, 32], strides = [1, 1]} : vector<2x96xf32> to vector<2x32xf32>
    %528 = vector.extract_strided_slice %510 {offsets = [0, 64], sizes = [2, 32], strides = [1, 1]} : vector<2x96xf32> to vector<2x32xf32>
    %529 = arith.addf %528, %30 : vector<2x32xf32>
    %530 = arith.mulf %518, %529 : vector<2x32xf32>
    %531 = arith.addf %527, %530 : vector<2x32xf32>
    %532 = math.tanh %531 : vector<2x32xf32>
    %cst_109 = arith.constant 1.000000e+00 : f32
    %533 = vector.broadcast %cst_109 : f32 to vector<2x32xf32>
    %534 = arith.subf %533, %526 : vector<2x32xf32>
    %535 = arith.mulf %534, %532 : vector<2x32xf32>
    %536 = arith.mulf %526, %506 : vector<2x32xf32>
    %537 = arith.addf %535, %536 : vector<2x32xf32>
    %c14 = arith.constant 14 : index
    %c0_110 = arith.constant 0 : index
    %538 = vector.load %arg8[%c14, %c0_110] : memref<16x32xf32, #tpu.memory_space<vmem>>, vector<2x32xf32>
    tpu.vector_store %arg8[%c14, %c0_110], %537 {strides = array<i32>} : memref<16x32xf32, #tpu.memory_space<vmem>>, vector<2x32xf32>,
    %c0_111 = arith.constant 0 : index
    %c0_112 = arith.constant 0 : index
    %539 = vector.load %arg8[%c0_111, %c0_112] : memref<16x32xf32, #tpu.memory_space<vmem>>, vector<16x32xf32>
    %cst_113 = arith.constant dense<0.000000e+00> : vector<16x32xf32>
    %540 = tpu.matmul %539, %21, %cst_113 {dimension_numbers = #tpu.dot_dimension_numbers<[1], [0], [0], [1], [0, 0, 1, 1], [], []>} : vector<16x32xf32>, vector<32x32xf32>, vector<16x32xf32> -> vector<16x32xf32>
    %541 = vector.broadcast %24 : vector<1x32xf32> to vector<16x32xf32>
    %542 = arith.addf %540, %541 : vector<16x32xf32>
    %c0_114 = arith.constant 0 : index
    %c0_115 = arith.constant 0 : index
    %543 = vector.load %arg5[%c0_114, %c0_115] : memref<1x1xf32, #tpu.memory_space<vmem>>, vector<1x1xf32>
    %544 = vector.broadcast %543 : vector<1x1xf32> to vector<16x32xf32>
    %545 = arith.mulf %542, %544 : vector<16x32xf32>
    %cst_116 = arith.constant dense<0xFF800000> : vector<16xf32>
    %546 = vector.multi_reduction <maximumf>, %545, %cst_116 [1] : vector<16x32xf32> to vector<16xf32>
    %547 = vector.shape_cast %546 : vector<16xf32> to vector<16x1xf32>
    %548 = vector.broadcast %547 : vector<16x1xf32> to vector<16x32xf32>
    %549 = arith.subf %545, %548 : vector<16x32xf32>
    %550 = math.exp %549 : vector<16x32xf32>
    %cst_117 = arith.constant dense<0.000000e+00> : vector<16xf32>
    %551 = vector.multi_reduction <add>, %550, %cst_117 [1] : vector<16x32xf32> to vector<16xf32>
    %552 = vector.shape_cast %551 : vector<16xf32> to vector<16x1xf32>
    %553 = math.log %552 : vector<16x1xf32>
    %554 = arith.addf %547, %553 : vector<16x1xf32>
    %555 = vector.broadcast %554 : vector<16x1xf32> to vector<16x32xf32>
    %556 = arith.subf %545, %555 : vector<16x32xf32>
    %c0_118 = arith.constant 0 : index
    %c0_119 = arith.constant 0 : index
    %557 = vector.load %arg7[%c0_118, %c0_119] : memref<16x32xf32, #tpu.memory_space<vmem>>, vector<16x32xf32>
    tpu.vector_store %arg7[%c0_118, %c0_119], %556 {strides = array<i32>} : memref<16x32xf32, #tpu.memory_space<vmem>>, vector<16x32xf32>,
    return
  }
  func.func @transform_0(%arg0: i32) -> (i32, i32) {
    %c0_i32 = arith.constant 0 : i32
    %c0_i32_0 = arith.constant 0 : i32
    %c0_i32_1 = arith.constant 0 : i32
    return %c0_i32, %c0_i32_0 : i32, i32
  }
  func.func @transform_1(%arg0: i32) -> (i32, i32) {
    %c0_i32 = arith.constant 0 : i32
    %c0_i32_0 = arith.constant 0 : i32
    %c0_i32_1 = arith.constant 0 : i32
    return %c0_i32, %c0_i32_0 : i32, i32
  }
  func.func @transform_2(%arg0: i32) -> (i32, i32) {
    %c0_i32 = arith.constant 0 : i32
    %c0_i32_0 = arith.constant 0 : i32
    %c0_i32_1 = arith.constant 0 : i32
    return %c0_i32, %c0_i32_0 : i32, i32
  }
  func.func @transform_3(%arg0: i32) -> (i32, i32) {
    %c0_i32 = arith.constant 0 : i32
    %c0_i32_0 = arith.constant 0 : i32
    %c0_i32_1 = arith.constant 0 : i32
    return %c0_i32, %c0_i32_0 : i32, i32
  }
  func.func @transform_4(%arg0: i32) -> (i32, i32) {
    %c0_i32 = arith.constant 0 : i32
    %c0_i32_0 = arith.constant 0 : i32
    %c0_i32_1 = arith.constant 0 : i32
    return %c0_i32, %c0_i32_0 : i32, i32
  }
  func.func @transform_5(%arg0: i32) -> (i32, i32) {
    %c0_i32 = arith.constant 0 : i32
    %c0_i32_0 = arith.constant 0 : i32
    %c0_i32_1 = arith.constant 0 : i32
    return %c0_i32, %c0_i32_0 : i32, i32
  }
  func.func @transform_6(%arg0: i32) -> (i32, i32) {
    %c0_i32 = arith.constant 0 : i32
    %c0_i32_0 = arith.constant 0 : i32
    %c0_i32_1 = arith.constant 0 : i32
    return %c0_i32, %c0_i32_0 : i32, i32
  }
}

</mosaic_0001>

<llo_original>
// kernel: vae_forward.1
$region0: #{vae_forward.1}
  #allocation0 [shape = 'u32[]', space=smem, size = 0x4, offset = 0x4, fixed_abs, tag = 'smem constant byte address 0x4 - core index']
  #allocation1 [shape = 'u32[144,128]{1,0:T(1,128)}', space=vmem, size = 0x12000, scoped, tag = 'internal scratch']
  #allocation2 [shape = 'f32[16,32]{1,0:T(8,128)}', space=vmem, size = 0x2000, scoped, tag = 'scratch operand']
  #allocation3 [shape = 'f32[1,1]{1,0:T(1,128)S(1)}', space=vmem, size = 0x200, scoped, tag = 'scoped memory for vae_forward.1']
  %s0 = inlined_call_operand.vmem [shape: s32[32,1], index: 0, kind: input, shape index: {}]
  %s1 = inlined_call_operand.vmem [shape: f32[2,20], index: 1, kind: input, shape index: {}]
  %s2 = inlined_call_operand.vmem [shape: f32[168,96], index: 2, kind: input, shape index: {}]
  %s3 = inlined_call_operand.vmem [shape: f32[128,32], index: 3, kind: input, shape index: {}]
  %s4 = inlined_call_operand.<no memory space> [shape: f32[1,1], index: 4, kind: input, shape index: {}]
  %s5 = inlined_call_operand.vmem [shape: f32[2,48], index: 5, kind: output, shape index: {0}]
  %s6 = inlined_call_operand.hbm [shape: f32[16,32], index: 6, kind: output, shape index: {1}]
  %7 = xla_tuple %s5, %s6
  %s8 = sld [smem:[#allocation0]]
  $region38: #{vae_forward.1} parent=0
    _
  %s10 = ssub.s32 1, %s8
  %s11 = scalar_select 0, %s10, %s8
  %v12 = vstv %s4
  %13 = vst [vmem:[#allocation3] sm:$0x1] %v12
  $region1: #{vae_forward.1} parent=0
    #allocation4 [shape = 'u8[8192]{0}', space=vmem, size = 0x2000, scoped, tag = 'output window, operand 1, single buffered']
    #allocation5 [shape = 's32[1]{0}', space=sflag, size = 0x4, scoped, tag = 'scoped memory for vae_forward.1']
    %14 = vsyncpa [#allocation5], 0
    // Predicated region
    $region2: #{vae_forward.1} parent=1 // pred_check
      _
    $region3: #{vae_forward.1} parent=1 // pred_check_branch
      %16 = sbr.rel (0) target = $region5
    $region4: #{vae_forward.1} parent=1 // pred_region
      _
    $region5: #{vae_forward.1} parent=1 // pred_fallthru
      _
    // Predicated region
    $region6: #{vae_forward.1} parent=1 // pred_check
      _
    $region7: #{vae_forward.1} parent=1 // pred_check_branch
      %18 = sbr.rel (0) target = $region9
    $region8: #{vae_forward.1} parent=1 // pred_region
      _
    $region9: #{vae_forward.1} parent=1 // pred_fallthru
      _
    // Predicated region
    $region10: #{vae_forward.1} parent=1 // pred_check
      _
    $region11: #{vae_forward.1} parent=1 // pred_check_branch
      %20 = sbr.rel (0) target = $region13
    $region12: #{vae_forward.1} parent=1 // pred_region
      _
    $region13: #{vae_forward.1} parent=1 // pred_fallthru
      _
    // Predicated region
    $region14: #{vae_forward.1} parent=1 // pred_check
      _
    $region15: #{vae_forward.1} parent=1 // pred_check_branch
      %22 = sbr.rel (0) target = $region17
    $region16: #{vae_forward.1} parent=1 // pred_region
      _
    $region17: #{vae_forward.1} parent=1 // pred_fallthru
      _
    // Predicated region
    $region18: #{vae_forward.1} parent=1 // pred_check
      _
    $region19: #{vae_forward.1} parent=1 // pred_check_branch
      %24 = sbr.rel (0) target = $region21
    $region20: #{vae_forward.1} parent=1 // pred_region
      _
    $region21: #{vae_forward.1} parent=1 // pred_fallthru
      _
    %v25 = vld [vmem:[%s0] sm:$0xff]
    %v26 = vld [vmem:[%s0 + $0x8] sm:$0xff]
    %v27 = vld [vmem:[%s0 + $0x10] sm:$0xff]
    %v28 = vld [vmem:[%s0 + $0x18] sm:$0xff]
    %v29 = vlaneseq
    %v30 = vand.u32 %v29, 127
    %31 = vset.pattern.permute.xlu0 0
    %32 = vperm.xlu0 %31, %v25
    %v33 = vpop.permute.xlu0 %32
    %34 = vset.pattern.permute.xlu0 0
    %35 = vperm.xlu0 %34, %v26
    %v36 = vpop.permute.xlu0 %35
    %37 = vset.pattern.permute.xlu0 0
    %38 = vperm.xlu0 %37, %v27
    %v39 = vpop.permute.xlu0 %38
    %40 = vset.pattern.permute.xlu0 0
    %41 = vperm.xlu0 %40, %v28
    %v42 = vpop.permute.xlu0 %41
    %vm43 = vcmp.eq.s32.totalorder %v33, %v30
    %vm44 = vcmp.eq.s32.totalorder %v36, %v30
    %vm45 = vcmp.eq.s32.totalorder %v39, %v30
    %vm46 = vcmp.eq.s32.totalorder %v42, %v30
    %v47 = vsel %vm43, 1, 0
    %v48 = vsel %vm44, 1, 0
    %v49 = vsel %vm45, 1, 0
    %v50 = vsel %vm46, 1, 0
    %v51 = vcvt.s32.f32 %v47
    %v52 = vcvt.s32.f32 %v48
    %v53 = vcvt.s32.f32 %v49
    %v54 = vcvt.s32.f32 %v50
    %v55 = vld [vmem:[%s1] sm:$0x3]
    %v56 = vld [vmem:[%s2] sm:$0xff]
    %v57 = vld [vmem:[%s2 + $0x8] sm:$0xff]
    %v58 = vld [vmem:[%s2 + $0x10] sm:$0xff]
    %v59 = vld [vmem:[%s2 + $0x18] sm:$0xff]
    %v60 = vld [vmem:[%s2 + $0x20] sm:$0xff]
    %v61 = vld [vmem:[%s2 + $0x28] sm:$0xff]
    %v62 = vld [vmem:[%s2 + $0x30] sm:$0xff]
    %v63 = vld [vmem:[%s2 + $0x38] sm:$0xff]
    %v64 = vld [vmem:[%s2 + $0x40] sm:$0xff]
    %v65 = vld [vmem:[%s2 + $0x48] sm:$0xff]
    %v66 = vld [vmem:[%s2 + $0x50] sm:$0xff]
    %v67 = vld [vmem:[%s2 + $0x58] sm:$0xff]
    %v68 = vld [vmem:[%s2 + $0x60] sm:$0xff]
    %v69 = vld [vmem:[%s2 + $0x68] sm:$0xff]
    %v70 = vld [vmem:[%s2 + $0x70] sm:$0xff]
    %v71 = vld [vmem:[%s2 + $0x78] sm:$0xff]
    %v72 = vld [vmem:[%s2 + $0x80] sm:$0xff]
    %v73 = vld [vmem:[%s2 + $0x88] sm:$0xff]
    %v74 = vld [vmem:[%s2 + $0x90] sm:$0xf]
    %v75 = vld [vmem:[%s2 + $0x98] sm:$0x1]
    %v76 = vld [vmem:[%s2 + $0xa0] sm:$0x1]
    %v77 = vld [vmem:[%s3] sm:$0xff]
    %v78 = vld [vmem:[%s3 + $0x8] sm:$0xff]
    %v79 = vld [vmem:[%s3 + $0x10] sm:$0xff]
    %v80 = vld [vmem:[%s3 + $0x18] sm:$0xff]
    %v81 = vld [vmem:[%s3 + $0x20] sm:$0xff]
    %v82 = vld [vmem:[%s3 + $0x28] sm:$0xff]
    %v83 = vld [vmem:[%s3 + $0x30] sm:$0xf]
    %v84 = vld [vmem:[%s3 + $0x38] sm:$0xff]
    %v85 = vld [vmem:[%s3 + $0x40] sm:$0xff]
    %v86 = vld [vmem:[%s3 + $0x48] sm:$0xff]
    %v87 = vld [vmem:[%s3 + $0x50] sm:$0xff]
    %v88 = vld [vmem:[%s3 + $0x58] sm:$0x1]
    %v89 = vld [vmem:[%s3 + $0x60] sm:$0x1]
    %v90 = vld [vmem:[%s3 + $0x68] sm:$0x1]
    %v91 = vld [vmem:[%s3 + $0x70] sm:$0x1]
    %v92 = vlaneseq
    %v93 = vshrl.u32 %v92, 7
    %v94 = vsub.s32 0, %v93
    %v95 = vrot.slane %v91, %v94
    %v96 = vld [vmem:[%s3 + $0x78] sm:$0x1]
    %v97 = vlaneseq
    %v98 = vshrl.u32 %v97, 7
    %v99 = vsub.s32 0, %v98
    %v100 = vrot.slane %v96, %v99
    %v101 = vlaneseq
    %v102 = vshrl.u32 %v101, 7
    %v103 = vsub.s32 0, %v102
    %v104 = vrot.slane %v75, %v103
    %vm105 = vcmask 261120
    %v107 = vsel %vm105, %v51, 0
    %v110 = vsel %vm105, %v52, 0
    %112 = vmatprep.subr.mxu0 0.0
    %113 = vmatpush1.msra.mxu0 %v56
    %114 = vmatprep.subr.mxu0 0.0
    %115 = vmatpush1.msra.mxu0 %v57
    %116 = vmatprep.subr.mxu0 0.0
    %117 = vmatpush1.msra.mxu0 %v58
    %118 = vmatprep.subr.mxu0 0.0
    %119 = vmatpush1.msra.mxu0 %v59
    %120 = vmatprep.subr.mxu0 0.0
    %121 = vmatpush1.msra.mxu0 0.0
    %122 = vmatprep.subr.mxu0 0.0
    %123 = vmatpush1.msra.mxu0 0.0
    %124 = vmatprep.subr.mxu0 0.0
    %125 = vmatpush1.msra.mxu0 0.0
    %126 = vmatprep.subr.mxu0 0.0
    %127 = vmatpush1.msra.mxu0 0.0
    %128 = vmatprep.subr.mxu0 0.0
    %129 = vmatpush1.msra.mxu0 0.0
    %130 = vmatprep.subr.mxu0 0.0
    %131 = vmatpush1.msra.mxu0 0.0
    %132 = vmatprep.subr.mxu0 0.0
    %133 = vmatpush1.msra.mxu0 0.0
    %134 = vmatprep.subr.mxu0 0.0
    %135 = vmatpush1.msra.mxu0 0.0
    %136 = vmatprep.subr.mxu0 0.0
    %137 = vmatpush1.msra.mxu0 0.0
    %138 = vmatprep.subr.mxu0 0.0
    %139 = vmatpush1.msra.mxu0 0.0
    %140 = vmatprep.subr.mxu0 0.0
    %141 = vmatpush1.msra.mxu0 0.0
    %142 = vmatprep.subr.mxu0 0.0
    %143 = vmatpush1.msra.mxu0 0.0
    %144 = vmatprep.subr.mxu0 0.0
    %145 = vmatpush1.msra.mxu0 0.0
    %146 = vmatprep.subr.mxu0 0.0
    %147 = vmatpush1.msra.mxu0 0.0
    %148 = vmatprep.subr.mxu0 0.0
    %149 = vmatpush1.msra.mxu0 0.0
    %150 = vmatprep.subr.mxu0 0.0
    %151 = vmatpush1.msra.mxu0 0.0
    %152 = vmatprep.subr.mxu0 0.0
    %153 = vmatpush1.msra.mxu0 0.0
    %154 = vmatprep.subr.mxu0 0.0
    %155 = vmatpush1.msra.mxu0 0.0
    %156 = vmatprep.subr.mxu0 0.0
    %157 = vmatpush1.msra.mxu0 0.0
    %158 = vmatprep.subr.mxu0 0.0
    %159 = vmatpush1.msra.mxu0 0.0
    %160 = vmatprep.subr.mxu0 0.0
    %161 = vmatpush1.msra.mxu0 0.0
    %162 = vmatprep.subr.mxu0 0.0
    %163 = vmatpush1.msra.mxu0 0.0
    %164 = vmatprep.subr.mxu0 0.0
    %165 = vmatpush1.msra.mxu0 0.0
    %166 = vmatprep.subr.mxu0 0.0
    %167 = vmatpush1.msra.mxu0 0.0
    %168 = vmatprep.subr.mxu0 0.0
    %169 = vmatpush1.msra.mxu0 0.0
    %170 = vmatprep.subr.mxu0 0.0
    %171 = vmatpush1.msra.mxu0 0.0
    %172 = vmatprep.subr.mxu0 0.0
    %173 = vmatpush1.msra.mxu0 0.0
    %174 = vmatprep.subr.mxu0 0.0
    %175 = vmatpush1.msra.mxu0 0.0
    %176 = vmatprep.mubr.f32.mxu0 0.0
    %177 = vmatmul.mubr.f32.gmra.mrb[0].mxu0 %v107
    %v178 = vpop.f32.mrb[0].mxu0
    %v179 = vadd.f32 %v104, %v178
    %v180 = vpop.f32.mrb[0].mxu0
    %181 = vmatprep.mubr.f32.mxu0 0.0
    %182 = vmatmul.mubr.f32.gmra.mrb[0].mxu0 %v110
    %v183 = vpop.f32.mrb[0].mxu0
    %v184 = vadd.f32 %v104, %v183
    %v185 = vpop.f32.mrb[0].mxu0
    %186 = vdwg.mxu0
    %v188 = vsel %vm105, 0.0, 0
    %190 = vmatprep.subr.mxu0 0.0
    %191 = vmatpush1.msra.mxu0 %v60
    %192 = vmatprep.subr.mxu0 0.0
    %193 = vmatpush1.msra.mxu0 %v61
    %194 = vmatprep.subr.mxu0 0.0
    %195 = vmatpush1.msra.mxu0 %v62
    %196 = vmatprep.subr.mxu0 0.0
    %197 = vmatpush1.msra.mxu0 %v63
    %198 = vmatprep.subr.mxu0 0.0
    %199 = vmatpush1.msra.mxu0 0.0
    %200 = vmatprep.subr.mxu0 0.0
    %201 = vmatpush1.msra.mxu0 0.0
    %202 = vmatprep.subr.mxu0 0.0
    %203 = vmatpush1.msra.mxu0 0.0
    %204 = vmatprep.subr.mxu0 0.0
    %205 = vmatpush1.msra.mxu0 0.0
    %206 = vmatprep.subr.mxu0 0.0
    %207 = vmatpush1.msra.mxu0 0.0
    %208 = vmatprep.subr.mxu0 0.0
    %209 = vmatpush1.msra.mxu0 0.0
    %210 = vmatprep.subr.mxu0 0.0
    %211 = vmatpush1.msra.mxu0 0.0
    %212 = vmatprep.subr.mxu0 0.0
    %213 = vmatpush1.msra.mxu0 0.0
    %214 = vmatprep.subr.mxu0 0.0
    %215 = vmatpush1.msra.mxu0 0.0
    %216 = vmatprep.subr.mxu0 0.0
    %217 = vmatpush1.msra.mxu0 0.0
    %218 = vmatprep.subr.mxu0 0.0
    %219 = vmatpush1.msra.mxu0 0.0
    %220 = vmatprep.subr.mxu0 0.0
    %221 = vmatpush1.msra.mxu0 0.0
    %222 = vmatprep.subr.mxu0 0.0
    %223 = vmatpush1.msra.mxu0 0.0
    %224 = vmatprep.subr.mxu0 0.0
    %225 = vmatpush1.msra.mxu0 0.0
    %226 = vmatprep.subr.mxu0 0.0
    %227 = vmatpush1.msra.mxu0 0.0
    %228 = vmatprep.subr.mxu0 0.0
    %229 = vmatpush1.msra.mxu0 0.0
    %230 = vmatprep.subr.mxu0 0.0
    %231 = vmatpush1.msra.mxu0 0.0
    %232 = vmatprep.subr.mxu0 0.0
    %233 = vmatpush1.msra.mxu0 0.0
    %234 = vmatprep.subr.mxu0 0.0
    %235 = vmatpush1.msra.mxu0 0.0
    %236 = vmatprep.subr.mxu0 0.0
    %237 = vmatpush1.msra.mxu0 0.0
    %238 = vmatprep.subr.mxu0 0.0
    %239 = vmatpush1.msra.mxu0 0.0
    %240 = vmatprep.subr.mxu0 0.0
    %241 = vmatpush1.msra.mxu0 0.0
    %242 = vmatprep.subr.mxu0 0.0
    %243 = vmatpush1.msra.mxu0 0.0
    %244 = vmatprep.subr.mxu0 0.0
    %245 = vmatpush1.msra.mxu0 0.0
    %246 = vmatprep.subr.mxu0 0.0
    %247 = vmatpush1.msra.mxu0 0.0
    %248 = vmatprep.subr.mxu0 0.0
    %249 = vmatpush1.msra.mxu0 0.0
    %250 = vmatprep.subr.mxu0 0.0
    %251 = vmatpush1.msra.mxu0 0.0
    %252 = vmatprep.subr.mxu0 0.0
    %253 = vmatpush1.msra.mxu0 0.0
    %254 = vmatprep.mubr.f32.mxu0 0.0
    %255 = vmatmul.mubr.f32.gmra.mrb[0].mxu0 %v188
    %v256 = vpop.f32.mrb[0].mxu0
    %v257 = vadd.f32 0.0, %v256
    %v258 = vpop.f32.mrb[0].mxu0
    %259 = vdwg.mxu0
    %v260 = vadd.f32 %v179, %v257
    %v261 = vxor.u32 %v260, 2147483648
    %v262 = vmul.f32 %v261, 1.442695
    %v263 = vpow.pop %v262
    %v264 = vadd.f32 %v263, 1.0
    %v265 = vrcp.pop %v264
    %v266 = vmul.f32 1.0, %v265
    %268 = vrot.lane.b32.xlu0 %v95, 64
    %v269 = vpop.permute.xlu0 %268
    %v271 = vadd.f32 %v257, %v269
    %273 = vrot.lane.b32.xlu0 %v271, 64
    %v274 = vpop.permute.xlu0 %273
    %v276 = vmul.f32 %v266, %v274
    %278 = vrot.lane.b32.xlu0 %v276, 64
    %v279 = vpop.permute.xlu0 %278
    %v281 = vadd.f32 %v179, %v279
    %v282 = vtanh.pop %v281
    %v283 = vsub.f32 1.0, %v266
    %285 = vrot.lane.b32.xlu0 %v282, 96
    %v286 = vpop.permute.xlu0 %285
    %v288 = vmul.f32 %v283, %v286
    %v289 = vmul.f32 %v266, 0.0
    %v290 = vadd.f32 %v288, %v289
    %292 = vrot.lane.b32.xlu0 %v290, 96
    %v293 = vpop.permute.xlu0 %292
    %v294 = vsel %vm105, %v293, 0
    %296 = vmatprep.subr.mxu0 0.0
    %297 = vmatpush1.msra.mxu0 %v60
    %298 = vmatprep.subr.mxu0 0.0
    %299 = vmatpush1.msra.mxu0 %v61
    %300 = vmatprep.subr.mxu0 0.0
    %301 = vmatpush1.msra.mxu0 %v62
    %302 = vmatprep.subr.mxu0 0.0
    %303 = vmatpush1.msra.mxu0 %v63
    %304 = vmatprep.subr.mxu0 0.0
    %305 = vmatpush1.msra.mxu0 0.0
    %306 = vmatprep.subr.mxu0 0.0
    %307 = vmatpush1.msra.mxu0 0.0
    %308 = vmatprep.subr.mxu0 0.0
    %309 = vmatpush1.msra.mxu0 0.0
    %310 = vmatprep.subr.mxu0 0.0
    %311 = vmatpush1.msra.mxu0 0.0
    %312 = vmatprep.subr.mxu0 0.0
    %313 = vmatpush1.msra.mxu0 0.0
    %314 = vmatprep.subr.mxu0 0.0
    %315 = vmatpush1.msra.mxu0 0.0
    %316 = vmatprep.subr.mxu0 0.0
    %317 = vmatpush1.msra.mxu0 0.0
    %318 = vmatprep.subr.mxu0 0.0
    %319 = vmatpush1.msra.mxu0 0.0
    %320 = vmatprep.subr.mxu0 0.0
    %321 = vmatpush1.msra.mxu0 0.0
    %322 = vmatprep.subr.mxu0 0.0
    %323 = vmatpush1.msra.mxu0 0.0
    %324 = vmatprep.subr.mxu0 0.0
    %325 = vmatpush1.msra.mxu0 0.0
    %326 = vmatprep.subr.mxu0 0.0
    %327 = vmatpush1.msra.mxu0 0.0
    %328 = vmatprep.subr.mxu0 0.0
    %329 = vmatpush1.msra.mxu0 0.0
    %330 = vmatprep.subr.mxu0 0.0
    %331 = vmatpush1.msra.mxu0 0.0
    %332 = vmatprep.subr.mxu0 0.0
    %333 = vmatpush1.msra.mxu0 0.0
    %334 = vmatprep.subr.mxu0 0.0
    %335 = vmatpush1.msra.mxu0 0.0
    %336 = vmatprep.subr.mxu0 0.0
    %337 = vmatpush1.msra.mxu0 0.0
    %338 = vmatprep.subr.mxu0 0.0
    %339 = vmatpush1.msra.mxu0 0.0
    %340 = vmatprep.subr.mxu0 0.0
    %341 = vmatpush1.msra.mxu0 0.0
    %342 = vmatprep.subr.mxu0 0.0
    %343 = vmatpush1.msra.mxu0 0.0
    %344 = vmatprep.subr.mxu0 0.0
    %345 = vmatpush1.msra.mxu0 0.0
    %346 = vmatprep.subr.mxu0 0.0
    %347 = vmatpush1.msra.mxu0 0.0
    %348 = vmatprep.subr.mxu0 0.0
    %349 = vmatpush1.msra.mxu0 0.0
    %350 = vmatprep.subr.mxu0 0.0
    %351 = vmatpush1.msra.mxu0 0.0
    %352 = vmatprep.subr.mxu0 0.0
    %353 = vmatpush1.msra.mxu0 0.0
    %354 = vmatprep.subr.mxu0 0.0
    %355 = vmatpush1.msra.mxu0 0.0
    %356 = vmatprep.subr.mxu0 0.0
    %357 = vmatpush1.msra.mxu0 0.0
    %358 = vmatprep.subr.mxu0 0.0
    %359 = vmatpush1.msra.mxu0 0.0
    %360 = vmatprep.mubr.f32.mxu0 0.0
    %361 = vmatmul.mubr.f32.gmra.mrb[0].mxu0 %v294
    %v362 = vpop.f32.mrb[0].mxu0
    %v363 = vadd.f32 0.0, %v362
    %v364 = vpop.f32.mrb[0].mxu0
    %365 = vdwg.mxu0
    %v367 = vrot.slane %v363, 6
    %v369 = vadd.f32 %v179, %v367
    %v370 = vxor.u32 %v369, 2147483648
    %v371 = vmul.f32 %v370, 1.442695
    %v372 = vpow.pop %v371
    %v373 = vadd.f32 %v372, 1.0
    %v374 = vrcp.pop %v373
    %v375 = vmul.f32 1.0, %v374
    %v376 = vadd.f32 %v363, %v269
    %v378 = vrot.slane %v376, 6
    %379 = vrot.lane.b32.xlu0 %v378, 64
    %v380 = vpop.permute.xlu0 %379
    %v382 = vmul.f32 %v375, %v380
    %384 = vrot.lane.b32.xlu0 %v382, 64
    %v385 = vpop.permute.xlu0 %384
    %v387 = vadd.f32 %v179, %v385
    %v388 = vtanh.pop %v387
    %v389 = vsub.f32 1.0, %v375
    %391 = vrot.lane.b32.xlu0 %v388, 96
    %v392 = vpop.permute.xlu0 %391
    %v394 = vmul.f32 %v389, %v392
    %v395 = vrot.slane %v290, 6
    %v397 = vmul.f32 %v375, %v395
    %v398 = vadd.f32 %v394, %v397
    %v400 = vrot.slane %v398, 2
    %401 = vrot.lane.b32.xlu0 %v400, 96
    %v402 = vpop.permute.xlu0 %401
    %v403 = vsel %vm105, %v402, 0
    %405 = vmatprep.subr.mxu0 0.0
    %406 = vmatpush1.msra.mxu0 %v60
    %407 = vmatprep.subr.mxu0 0.0
    %408 = vmatpush1.msra.mxu0 %v61
    %409 = vmatprep.subr.mxu0 0.0
    %410 = vmatpush1.msra.mxu0 %v62
    %411 = vmatprep.subr.mxu0 0.0
    %412 = vmatpush1.msra.mxu0 %v63
    %413 = vmatprep.subr.mxu0 0.0
    %414 = vmatpush1.msra.mxu0 0.0
    %415 = vmatprep.subr.mxu0 0.0
    %416 = vmatpush1.msra.mxu0 0.0
    %417 = vmatprep.subr.mxu0 0.0
    %418 = vmatpush1.msra.mxu0 0.0
    %419 = vmatprep.subr.mxu0 0.0
    %420 = vmatpush1.msra.mxu0 0.0
    %421 = vmatprep.subr.mxu0 0.0
    %422 = vmatpush1.msra.mxu0 0.0
    %423 = vmatprep.subr.mxu0 0.0
    %424 = vmatpush1.msra.mxu0 0.0
    %425 = vmatprep.subr.mxu0 0.0
    %426 = vmatpush1.msra.mxu0 0.0
    %427 = vmatprep.subr.mxu0 0.0
    %428 = vmatpush1.msra.mxu0 0.0
    %429 = vmatprep.subr.mxu0 0.0
    %430 = vmatpush1.msra.mxu0 0.0
    %431 = vmatprep.subr.mxu0 0.0
    %432 = vmatpush1.msra.mxu0 0.0
    %433 = vmatprep.subr.mxu0 0.0
    %434 = vmatpush1.msra.mxu0 0.0
    %435 = vmatprep.subr.mxu0 0.0
    %436 = vmatpush1.msra.mxu0 0.0
    %437 = vmatprep.subr.mxu0 0.0
    %438 = vmatpush1.msra.mxu0 0.0
    %439 = vmatprep.subr.mxu0 0.0
    %440 = vmatpush1.msra.mxu0 0.0
    %441 = vmatprep.subr.mxu0 0.0
    %442 = vmatpush1.msra.mxu0 0.0
    %443 = vmatprep.subr.mxu0 0.0
    %444 = vmatpush1.msra.mxu0 0.0
    %445 = vmatprep.subr.mxu0 0.0
    %446 = vmatpush1.msra.mxu0 0.0
    %447 = vmatprep.subr.mxu0 0.0
    %448 = vmatpush1.msra.mxu0 0.0
    %449 = vmatprep.subr.mxu0 0.0
    %450 = vmatpush1.msra.mxu0 0.0
    %451 = vmatprep.subr.mxu0 0.0
    %452 = vmatpush1.msra.mxu0 0.0
    %453 = vmatprep.subr.mxu0 0.0
    %454 = vmatpush1.msra.mxu0 0.0
    %455 = vmatprep.subr.mxu0 0.0
    %456 = vmatpush1.msra.mxu0 0.0
    %457 = vmatprep.subr.mxu0 0.0
    %458 = vmatpush1.msra.mxu0 0.0
    %459 = vmatprep.subr.mxu0 0.0
    %460 = vmatpush1.msra.mxu0 0.0
    %461 = vmatprep.subr.mxu0 0.0
    %462 = vmatpush1.msra.mxu0 0.0
    %463 = vmatprep.subr.mxu0 0.0
    %464 = vmatpush1.msra.mxu0 0.0
    %465 = vmatprep.subr.mxu0 0.0
    %466 = vmatpush1.msra.mxu0 0.0
    %467 = vmatprep.subr.mxu0 0.0
    %468 = vmatpush1.msra.mxu0 0.0
    %469 = vmatprep.mubr.f32.mxu0 0.0
    %470 = vmatmul.mubr.f32.gmra.mrb[0].mxu0 %v403
    %v471 = vpop.f32.mrb[0].mxu0
    %v472 = vadd.f32 0.0, %v471
    %v473 = vpop.f32.mrb[0].mxu0
    %474 = vdwg.mxu0
    %v476 = vrot.slane %v472, 4
    %v478 = vadd.f32 %v179, %v476
    %v479 = vxor.u32 %v478, 2147483648
    %v480 = vmul.f32 %v479, 1.442695
    %v481 = vpow.pop %v480
    %v482 = vadd.f32 %v481, 1.0
    %v483 = vrcp.pop %v482
    %v484 = vmul.f32 1.0, %v483
    %v485 = vadd.f32 %v472, %v269
    %v487 = vrot.slane %v485, 4
    %488 = vrot.lane.b32.xlu0 %v487, 64
    %v489 = vpop.permute.xlu0 %488
    %v491 = vmul.f32 %v484, %v489
    %493 = vrot.lane.b32.xlu0 %v491, 64
    %v494 = vpop.permute.xlu0 %493
    %v496 = vadd.f32 %v179, %v494
    %v497 = vtanh.pop %v496
    %v498 = vsub.f32 1.0, %v484
    %500 = vrot.lane.b32.xlu0 %v497, 96
    %v501 = vpop.permute.xlu0 %500
    %v503 = vmul.f32 %v498, %v501
    %v504 = vrot.slane %v398, 6
    %v506 = vmul.f32 %v484, %v504
    %v507 = vadd.f32 %v503, %v506
    %v509 = vrot.slane %v507, 4
    %510 = vrot.lane.b32.xlu0 %v509, 96
    %v511 = vpop.permute.xlu0 %510
    %v512 = vsel %vm105, %v511, 0
    %514 = vmatprep.subr.mxu0 0.0
    %515 = vmatpush1.msra.mxu0 %v60
    %516 = vmatprep.subr.mxu0 0.0
    %517 = vmatpush1.msra.mxu0 %v61
    %518 = vmatprep.subr.mxu0 0.0
    %519 = vmatpush1.msra.mxu0 %v62
    %520 = vmatprep.subr.mxu0 0.0
    %521 = vmatpush1.msra.mxu0 %v63
    %522 = vmatprep.subr.mxu0 0.0
    %523 = vmatpush1.msra.mxu0 0.0
    %524 = vmatprep.subr.mxu0 0.0
    %525 = vmatpush1.msra.mxu0 0.0
    %526 = vmatprep.subr.mxu0 0.0
    %527 = vmatpush1.msra.mxu0 0.0
    %528 = vmatprep.subr.mxu0 0.0
    %529 = vmatpush1.msra.mxu0 0.0
    %530 = vmatprep.subr.mxu0 0.0
    %531 = vmatpush1.msra.mxu0 0.0
    %532 = vmatprep.subr.mxu0 0.0
    %533 = vmatpush1.msra.mxu0 0.0
    %534 = vmatprep.subr.mxu0 0.0
    %535 = vmatpush1.msra.mxu0 0.0
    %536 = vmatprep.subr.mxu0 0.0
    %537 = vmatpush1.msra.mxu0 0.0
    %538 = vmatprep.subr.mxu0 0.0
    %539 = vmatpush1.msra.mxu0 0.0
    %540 = vmatprep.subr.mxu0 0.0
    %541 = vmatpush1.msra.mxu0 0.0
    %542 = vmatprep.subr.mxu0 0.0
    %543 = vmatpush1.msra.mxu0 0.0
    %544 = vmatprep.subr.mxu0 0.0
    %545 = vmatpush1.msra.mxu0 0.0
    %546 = vmatprep.subr.mxu0 0.0
    %547 = vmatpush1.msra.mxu0 0.0
    %548 = vmatprep.subr.mxu0 0.0
    %549 = vmatpush1.msra.mxu0 0.0
    %550 = vmatprep.subr.mxu0 0.0
    %551 = vmatpush1.msra.mxu0 0.0
    %552 = vmatprep.subr.mxu0 0.0
    %553 = vmatpush1.msra.mxu0 0.0
    %554 = vmatprep.subr.mxu0 0.0
    %555 = vmatpush1.msra.mxu0 0.0
    %556 = vmatprep.subr.mxu0 0.0
    %557 = vmatpush1.msra.mxu0 0.0
    %558 = vmatprep.subr.mxu0 0.0
    %559 = vmatpush1.msra.mxu0 0.0
    %560 = vmatprep.subr.mxu0 0.0
    %561 = vmatpush1.msra.mxu0 0.0
    %562 = vmatprep.subr.mxu0 0.0
    %563 = vmatpush1.msra.mxu0 0.0
    %564 = vmatprep.subr.mxu0 0.0
    %565 = vmatpush1.msra.mxu0 0.0
    %566 = vmatprep.subr.mxu0 0.0
    %567 = vmatpush1.msra.mxu0 0.0
    %568 = vmatprep.subr.mxu0 0.0
    %569 = vmatpush1.msra.mxu0 0.0
    %570 = vmatprep.subr.mxu0 0.0
    %571 = vmatpush1.msra.mxu0 0.0
    %572 = vmatprep.subr.mxu0 0.0
    %573 = vmatpush1.msra.mxu0 0.0
    %574 = vmatprep.subr.mxu0 0.0
    %575 = vmatpush1.msra.mxu0 0.0
    %576 = vmatprep.subr.mxu0 0.0
    %577 = vmatpush1.msra.mxu0 0.0
    %578 = vmatprep.mubr.f32.mxu0 0.0
    %579 = vmatmul.mubr.f32.gmra.mrb[0].mxu0 %v512
    %v580 = vpop.f32.mrb[0].mxu0
    %v581 = vadd.f32 0.0, %v580
    %v582 = vpop.f32.mrb[0].mxu0
    %583 = vdwg.mxu0
    %v585 = vrot.slane %v581, 2
    %v587 = vadd.f32 %v179, %v585
    %v588 = vxor.u32 %v587, 2147483648
    %v589 = vmul.f32 %v588, 1.442695
    %v590 = vpow.pop %v589
    %v591 = vadd.f32 %v590, 1.0
    %v592 = vrcp.pop %v591
    %v593 = vmul.f32 1.0, %v592
    %v594 = vadd.f32 %v581, %v269
    %v596 = vrot.slane %v594, 2
    %597 = vrot.lane.b32.xlu0 %v596, 64
    %v598 = vpop.permute.xlu0 %597
    %v600 = vmul.f32 %v593, %v598
    %602 = vrot.lane.b32.xlu0 %v600, 64
    %v603 = vpop.permute.xlu0 %602
    %v605 = vadd.f32 %v179, %v603
    %v606 = vtanh.pop %v605
    %v607 = vsub.f32 1.0, %v593
    %609 = vrot.lane.b32.xlu0 %v606, 96
    %v610 = vpop.permute.xlu0 %609
    %v612 = vmul.f32 %v607, %v610
    %v613 = vrot.slane %v507, 6
    %v615 = vmul.f32 %v593, %v613
    %v616 = vadd.f32 %v612, %v615
    %v618 = vrot.slane %v616, 6
    %619 = vrot.lane.b32.xlu0 %v618, 96
    %v620 = vpop.permute.xlu0 %619
    %v621 = vsel %vm105, %v620, 0
    %623 = vmatprep.subr.mxu0 0.0
    %624 = vmatpush1.msra.mxu0 %v60
    %625 = vmatprep.subr.mxu0 0.0
    %626 = vmatpush1.msra.mxu0 %v61
    %627 = vmatprep.subr.mxu0 0.0
    %628 = vmatpush1.msra.mxu0 %v62
    %629 = vmatprep.subr.mxu0 0.0
    %630 = vmatpush1.msra.mxu0 %v63
    %631 = vmatprep.subr.mxu0 0.0
    %632 = vmatpush1.msra.mxu0 0.0
    %633 = vmatprep.subr.mxu0 0.0
    %634 = vmatpush1.msra.mxu0 0.0
    %635 = vmatprep.subr.mxu0 0.0
    %636 = vmatpush1.msra.mxu0 0.0
    %637 = vmatprep.subr.mxu0 0.0
    %638 = vmatpush1.msra.mxu0 0.0
    %639 = vmatprep.subr.mxu0 0.0
    %640 = vmatpush1.msra.mxu0 0.0
    %641 = vmatprep.subr.mxu0 0.0
    %642 = vmatpush1.msra.mxu0 0.0
    %643 = vmatprep.subr.mxu0 0.0
    %644 = vmatpush1.msra.mxu0 0.0
    %645 = vmatprep.subr.mxu0 0.0
    %646 = vmatpush1.msra.mxu0 0.0
    %647 = vmatprep.subr.mxu0 0.0
    %648 = vmatpush1.msra.mxu0 0.0
    %649 = vmatprep.subr.mxu0 0.0
    %650 = vmatpush1.msra.mxu0 0.0
    %651 = vmatprep.subr.mxu0 0.0
    %652 = vmatpush1.msra.mxu0 0.0
    %653 = vmatprep.subr.mxu0 0.0
    %654 = vmatpush1.msra.mxu0 0.0
    %655 = vmatprep.subr.mxu0 0.0
    %656 = vmatpush1.msra.mxu0 0.0
    %657 = vmatprep.subr.mxu0 0.0
    %658 = vmatpush1.msra.mxu0 0.0
    %659 = vmatprep.subr.mxu0 0.0
    %660 = vmatpush1.msra.mxu0 0.0
    %661 = vmatprep.subr.mxu0 0.0
    %662 = vmatpush1.msra.mxu0 0.0
    %663 = vmatprep.subr.mxu0 0.0
    %664 = vmatpush1.msra.mxu0 0.0
    %665 = vmatprep.subr.mxu0 0.0
    %666 = vmatpush1.msra.mxu0 0.0
    %667 = vmatprep.subr.mxu0 0.0
    %668 = vmatpush1.msra.mxu0 0.0
    %669 = vmatprep.subr.mxu0 0.0
    %670 = vmatpush1.msra.mxu0 0.0
    %671 = vmatprep.subr.mxu0 0.0
    %672 = vmatpush1.msra.mxu0 0.0
    %673 = vmatprep.subr.mxu0 0.0
    %674 = vmatpush1.msra.mxu0 0.0
    %675 = vmatprep.subr.mxu0 0.0
    %676 = vmatpush1.msra.mxu0 0.0
    %677 = vmatprep.subr.mxu0 0.0
    %678 = vmatpush1.msra.mxu0 0.0
    %679 = vmatprep.subr.mxu0 0.0
    %680 = vmatpush1.msra.mxu0 0.0
    %681 = vmatprep.subr.mxu0 0.0
    %682 = vmatpush1.msra.mxu0 0.0
    %683 = vmatprep.subr.mxu0 0.0
    %684 = vmatpush1.msra.mxu0 0.0
    %685 = vmatprep.subr.mxu0 0.0
    %686 = vmatpush1.msra.mxu0 0.0
    %687 = vmatprep.mubr.f32.mxu0 0.0
    %688 = vmatmul.mubr.f32.gmra.mrb[0].mxu0 %v621
    %v689 = vpop.f32.mrb[0].mxu0
    %v690 = vadd.f32 0.0, %v689
    %v691 = vpop.f32.mrb[0].mxu0
    %692 = vdwg.mxu0
    %v693 = vadd.f32 %v184, %v690
    %v694 = vxor.u32 %v693, 2147483648
    %v695 = vmul.f32 %v694, 1.442695
    %v696 = vpow.pop %v695
    %v697 = vadd.f32 %v696, 1.0
    %v698 = vrcp.pop %v697
    %v699 = vmul.f32 1.0, %v698
    %v700 = vadd.f32 %v690, %v269
    %702 = vrot.lane.b32.xlu0 %v700, 64
    %v703 = vpop.permute.xlu0 %702
    %v705 = vmul.f32 %v699, %v703
    %707 = vrot.lane.b32.xlu0 %v705, 64
    %v708 = vpop.permute.xlu0 %707
    %v710 = vadd.f32 %v184, %v708
    %v711 = vtanh.pop %v710
    %v712 = vsub.f32 1.0, %v699
    %714 = vrot.lane.b32.xlu0 %v711, 96
    %v715 = vpop.permute.xlu0 %714
    %v717 = vmul.f32 %v712, %v715
    %v719 = vmul.f32 %v699, %v618
    %v720 = vadd.f32 %v717, %v719
    %722 = vrot.lane.b32.xlu0 %v720, 96
    %v723 = vpop.permute.xlu0 %722
    %v724 = vsel %vm105, %v723, 0
    %726 = vmatprep.subr.mxu0 0.0
    %727 = vmatpush1.msra.mxu0 %v60
    %728 = vmatprep.subr.mxu0 0.0
    %729 = vmatpush1.msra.mxu0 %v61
    %730 = vmatprep.subr.mxu0 0.0
    %731 = vmatpush1.msra.mxu0 %v62
    %732 = vmatprep.subr.mxu0 0.0
    %733 = vmatpush1.msra.mxu0 %v63
    %734 = vmatprep.subr.mxu0 0.0
    %735 = vmatpush1.msra.mxu0 0.0
    %736 = vmatprep.subr.mxu0 0.0
    %737 = vmatpush1.msra.mxu0 0.0
    %738 = vmatprep.subr.mxu0 0.0
    %739 = vmatpush1.msra.mxu0 0.0
    %740 = vmatprep.subr.mxu0 0.0
    %741 = vmatpush1.msra.mxu0 0.0
    %742 = vmatprep.subr.mxu0 0.0
    %743 = vmatpush1.msra.mxu0 0.0
    %744 = vmatprep.subr.mxu0 0.0
    %745 = vmatpush1.msra.mxu0 0.0
    %746 = vmatprep.subr.mxu0 0.0
    %747 = vmatpush1.msra.mxu0 0.0
    %748 = vmatprep.subr.mxu0 0.0
    %749 = vmatpush1.msra.mxu0 0.0
    %750 = vmatprep.subr.mxu0 0.0
    %751 = vmatpush1.msra.mxu0 0.0
    %752 = vmatprep.subr.mxu0 0.0
    %753 = vmatpush1.msra.mxu0 0.0
    %754 = vmatprep.subr.mxu0 0.0
    %755 = vmatpush1.msra.mxu0 0.0
    %756 = vmatprep.subr.mxu0 0.0
    %757 = vmatpush1.msra.mxu0 0.0
    %758 = vmatprep.subr.mxu0 0.0
    %759 = vmatpush1.msra.mxu0 0.0
    %760 = vmatprep.subr.mxu0 0.0
    %761 = vmatpush1.msra.mxu0 0.0
    %762 = vmatprep.subr.mxu0 0.0
    %763 = vmatpush1.msra.mxu0 0.0
    %764 = vmatprep.subr.mxu0 0.0
    %765 = vmatpush1.msra.mxu0 0.0
    %766 = vmatprep.subr.mxu0 0.0
    %767 = vmatpush1.msra.mxu0 0.0
    %768 = vmatprep.subr.mxu0 0.0
    %769 = vmatpush1.msra.mxu0 0.0
    %770 = vmatprep.subr.mxu0 0.0
    %771 = vmatpush1.msra.mxu0 0.0
    %772 = vmatprep.subr.mxu0 0.0
    %773 = vmatpush1.msra.mxu0 0.0
    %774 = vmatprep.subr.mxu0 0.0
    %775 = vmatpush1.msra.mxu0 0.0
    %776 = vmatprep.subr.mxu0 0.0
    %777 = vmatpush1.msra.mxu0 0.0
    %778 = vmatprep.subr.mxu0 0.0
    %779 = vmatpush1.msra.mxu0 0.0
    %780 = vmatprep.subr.mxu0 0.0
    %781 = vmatpush1.msra.mxu0 0.0
    %782 = vmatprep.subr.mxu0 0.0
    %783 = vmatpush1.msra.mxu0 0.0
    %784 = vmatprep.subr.mxu0 0.0
    %785 = vmatpush1.msra.mxu0 0.0
    %786 = vmatprep.subr.mxu0 0.0
    %787 = vmatpush1.msra.mxu0 0.0
    %788 = vmatprep.subr.mxu0 0.0
    %789 = vmatpush1.msra.mxu0 0.0
    %790 = vmatprep.mubr.f32.mxu0 0.0
    %791 = vmatmul.mubr.f32.gmra.mrb[0].mxu0 %v724
    %v792 = vpop.f32.mrb[0].mxu0
    %v793 = vadd.f32 0.0, %v792
    %v794 = vpop.f32.mrb[0].mxu0
    %795 = vdwg.mxu0
    %v797 = vrot.slane %v793, 6
    %v799 = vadd.f32 %v184, %v797
    %v800 = vxor.u32 %v799, 2147483648
    %v801 = vmul.f32 %v800, 1.442695
    %v802 = vpow.pop %v801
    %v803 = vadd.f32 %v802, 1.0
    %v804 = vrcp.pop %v803
    %v805 = vmul.f32 1.0, %v804
    %v806 = vadd.f32 %v793, %v269
    %v808 = vrot.slane %v806, 6
    %809 = vrot.lane.b32.xlu0 %v808, 64
    %v810 = vpop.permute.xlu0 %809
    %v812 = vmul.f32 %v805, %v810
    %814 = vrot.lane.b32.xlu0 %v812, 64
    %v815 = vpop.permute.xlu0 %814
    %v817 = vadd.f32 %v184, %v815
    %v818 = vtanh.pop %v817
    %v819 = vsub.f32 1.0, %v805
    %821 = vrot.lane.b32.xlu0 %v818, 96
    %v822 = vpop.permute.xlu0 %821
    %v824 = vmul.f32 %v819, %v822
    %v825 = vrot.slane %v720, 6
    %v827 = vmul.f32 %v805, %v825
    %v828 = vadd.f32 %v824, %v827
    %v830 = vrot.slane %v828, 2
    %831 = vrot.lane.b32.xlu0 %v830, 96
    %v832 = vpop.permute.xlu0 %831
    %v833 = vsel %vm105, %v832, 0
    %835 = vmatprep.subr.mxu0 0.0
    %836 = vmatpush1.msra.mxu0 %v60
    %837 = vmatprep.subr.mxu0 0.0
    %838 = vmatpush1.msra.mxu0 %v61
    %839 = vmatprep.subr.mxu0 0.0
    %840 = vmatpush1.msra.mxu0 %v62
    %841 = vmatprep.subr.mxu0 0.0
    %842 = vmatpush1.msra.mxu0 %v63
    %843 = vmatprep.subr.mxu0 0.0
    %844 = vmatpush1.msra.mxu0 0.0
    %845 = vmatprep.subr.mxu0 0.0
    %846 = vmatpush1.msra.mxu0 0.0
    %847 = vmatprep.subr.mxu0 0.0
    %848 = vmatpush1.msra.mxu0 0.0
    %849 = vmatprep.subr.mxu0 0.0
    %850 = vmatpush1.msra.mxu0 0.0
    %851 = vmatprep.subr.mxu0 0.0
    %852 = vmatpush1.msra.mxu0 0.0
    %853 = vmatprep.subr.mxu0 0.0
    %854 = vmatpush1.msra.mxu0 0.0
    %855 = vmatprep.subr.mxu0 0.0
    %856 = vmatpush1.msra.mxu0 0.0
    %857 = vmatprep.subr.mxu0 0.0
    %858 = vmatpush1.msra.mxu0 0.0
    %859 = vmatprep.subr.mxu0 0.0
    %860 = vmatpush1.msra.mxu0 0.0
    %861 = vmatprep.subr.mxu0 0.0
    %862 = vmatpush1.msra.mxu0 0.0
    %863 = vmatprep.subr.mxu0 0.0
    %864 = vmatpush1.msra.mxu0 0.0
    %865 = vmatprep.subr.mxu0 0.0
    %866 = vmatpush1.msra.mxu0 0.0
    %867 = vmatprep.subr.mxu0 0.0
    %868 = vmatpush1.msra.mxu0 0.0
    %869 = vmatprep.subr.mxu0 0.0
    %870 = vmatpush1.msra.mxu0 0.0
    %871 = vmatprep.subr.mxu0 0.0
    %872 = vmatpush1.msra.mxu0 0.0
    %873 = vmatprep.subr.mxu0 0.0
    %874 = vmatpush1.msra.mxu0 0.0
    %875 = vmatprep.subr.mxu0 0.0
    %876 = vmatpush1.msra.mxu0 0.0
    %877 = vmatprep.subr.mxu0 0.0
    %878 = vmatpush1.msra.mxu0 0.0
    %879 = vmatprep.subr.mxu0 0.0
    %880 = vmatpush1.msra.mxu0 0.0
    %881 = vmatprep.subr.mxu0 0.0
    %882 = vmatpush1.msra.mxu0 0.0
    %883 = vmatprep.subr.mxu0 0.0
    %884 = vmatpush1.msra.mxu0 0.0
    %885 = vmatprep.subr.mxu0 0.0
    %886 = vmatpush1.msra.mxu0 0.0
    %887 = vmatprep.subr.mxu0 0.0
    %888 = vmatpush1.msra.mxu0 0.0
    %889 = vmatprep.subr.mxu0 0.0
    %890 = vmatpush1.msra.mxu0 0.0
    %891 = vmatprep.subr.mxu0 0.0
    %892 = vmatpush1.msra.mxu0 0.0
    %893 = vmatprep.subr.mxu0 0.0
    %894 = vmatpush1.msra.mxu0 0.0
    %895 = vmatprep.subr.mxu0 0.0
    %896 = vmatpush1.msra.mxu0 0.0
    %897 = vmatprep.subr.mxu0 0.0
    %898 = vmatpush1.msra.mxu0 0.0
    %899 = vmatprep.mubr.f32.mxu0 0.0
    %900 = vmatmul.mubr.f32.gmra.mrb[0].mxu0 %v833
    %v901 = vpop.f32.mrb[0].mxu0
    %v902 = vadd.f32 0.0, %v901
    %v903 = vpop.f32.mrb[0].mxu0
    %904 = vdwg.mxu0
    %v906 = vrot.slane %v902, 4
    %v908 = vadd.f32 %v184, %v906
    %v909 = vxor.u32 %v908, 2147483648
    %v910 = vmul.f32 %v909, 1.442695
    %v911 = vpow.pop %v910
    %v912 = vadd.f32 %v911, 1.0
    %v913 = vrcp.pop %v912
    %v914 = vmul.f32 1.0, %v913
    %v915 = vadd.f32 %v902, %v269
    %v917 = vrot.slane %v915, 4
    %918 = vrot.lane.b32.xlu0 %v917, 64
    %v919 = vpop.permute.xlu0 %918
    %v921 = vmul.f32 %v914, %v919
    %923 = vrot.lane.b32.xlu0 %v921, 64
    %v924 = vpop.permute.xlu0 %923
    %v926 = vadd.f32 %v184, %v924
    %v927 = vtanh.pop %v926
    %v928 = vsub.f32 1.0, %v914
    %930 = vrot.lane.b32.xlu0 %v927, 96
    %v931 = vpop.permute.xlu0 %930
    %v933 = vmul.f32 %v928, %v931
    %v934 = vrot.slane %v828, 6
    %v936 = vmul.f32 %v914, %v934
    %v937 = vadd.f32 %v933, %v936
    %v939 = vrot.slane %v937, 4
    %940 = vrot.lane.b32.xlu0 %v939, 96
    %v941 = vpop.permute.xlu0 %940
    %v942 = vsel %vm105, %v941, 0
    %944 = vmatprep.subr.mxu0 0.0
    %945 = vmatpush1.msra.mxu0 %v60
    %946 = vmatprep.subr.mxu0 0.0
    %947 = vmatpush1.msra.mxu0 %v61
    %948 = vmatprep.subr.mxu0 0.0
    %949 = vmatpush1.msra.mxu0 %v62
    %950 = vmatprep.subr.mxu0 0.0
    %951 = vmatpush1.msra.mxu0 %v63
    %952 = vmatprep.subr.mxu0 0.0
    %953 = vmatpush1.msra.mxu0 0.0
    %954 = vmatprep.subr.mxu0 0.0
    %955 = vmatpush1.msra.mxu0 0.0
    %956 = vmatprep.subr.mxu0 0.0
    %957 = vmatpush1.msra.mxu0 0.0
    %958 = vmatprep.subr.mxu0 0.0
    %959 = vmatpush1.msra.mxu0 0.0
    %960 = vmatprep.subr.mxu0 0.0
    %961 = vmatpush1.msra.mxu0 0.0
    %962 = vmatprep.subr.mxu0 0.0
    %963 = vmatpush1.msra.mxu0 0.0
    %964 = vmatprep.subr.mxu0 0.0
    %965 = vmatpush1.msra.mxu0 0.0
    %966 = vmatprep.subr.mxu0 0.0
    %967 = vmatpush1.msra.mxu0 0.0
    %968 = vmatprep.subr.mxu0 0.0
    %969 = vmatpush1.msra.mxu0 0.0
    %970 = vmatprep.subr.mxu0 0.0
    %971 = vmatpush1.msra.mxu0 0.0
    %972 = vmatprep.subr.mxu0 0.0
    %973 = vmatpush1.msra.mxu0 0.0
    %974 = vmatprep.subr.mxu0 0.0
    %975 = vmatpush1.msra.mxu0 0.0
    %976 = vmatprep.subr.mxu0 0.0
    %977 = vmatpush1.msra.mxu0 0.0
    %978 = vmatprep.subr.mxu0 0.0
    %979 = vmatpush1.msra.mxu0 0.0
    %980 = vmatprep.subr.mxu0 0.0
    %981 = vmatpush1.msra.mxu0 0.0
    %982 = vmatprep.subr.mxu0 0.0
    %983 = vmatpush1.msra.mxu0 0.0
    %984 = vmatprep.subr.mxu0 0.0
    %985 = vmatpush1.msra.mxu0 0.0
    %986 = vmatprep.subr.mxu0 0.0
    %987 = vmatpush1.msra.mxu0 0.0
    %988 = vmatprep.subr.mxu0 0.0
    %989 = vmatpush1.msra.mxu0 0.0
    %990 = vmatprep.subr.mxu0 0.0
    %991 = vmatpush1.msra.mxu0 0.0
    %992 = vmatprep.subr.mxu0 0.0
    %993 = vmatpush1.msra.mxu0 0.0
    %994 = vmatprep.subr.mxu0 0.0
    %995 = vmatpush1.msra.mxu0 0.0
    %996 = vmatprep.subr.mxu0 0.0
    %997 = vmatpush1.msra.mxu0 0.0
    %998 = vmatprep.subr.mxu0 0.0
    %999 = vmatpush1.msra.mxu0 0.0
    %1000 = vmatprep.subr.mxu0 0.0
    %1001 = vmatpush1.msra.mxu0 0.0
    %1002 = vmatprep.subr.mxu0 0.0
    %1003 = vmatpush1.msra.mxu0 0.0
    %1004 = vmatprep.subr.mxu0 0.0
    %1005 = vmatpush1.msra.mxu0 0.0
    %1006 = vmatprep.subr.mxu0 0.0
    %1007 = vmatpush1.msra.mxu0 0.0
    %1008 = vmatprep.mubr.f32.mxu0 0.0
    %1009 = vmatmul.mubr.f32.gmra.mrb[0].mxu0 %v942
    %v1010 = vpop.f32.mrb[0].mxu0
    %v1011 = vadd.f32 0.0, %v1010
    %v1012 = vpop.f32.mrb[0].mxu0
    %1013 = vdwg.mxu0
    %v1015 = vrot.slane %v1011, 2
    %v1017 = vadd.f32 %v184, %v1015
    %v1018 = vxor.u32 %v1017, 2147483648
    %v1019 = vmul.f32 %v1018, 1.442695
    %v1020 = vpow.pop %v1019
    %v1021 = vadd.f32 %v1020, 1.0
    %v1022 = vrcp.pop %v1021
    %v1023 = vmul.f32 1.0, %v1022
    %v1024 = vadd.f32 %v1011, %v269
    %v1026 = vrot.slane %v1024, 2
    %1027 = vrot.lane.b32.xlu0 %v1026, 64
    %v1028 = vpop.permute.xlu0 %1027
    %v1030 = vmul.f32 %v1023, %v1028
    %1032 = vrot.lane.b32.xlu0 %v1030, 64
    %v1033 = vpop.permute.xlu0 %1032
    %v1035 = vadd.f32 %v184, %v1033
    %v1036 = vtanh.pop %v1035
    %v1037 = vsub.f32 1.0, %v1023
    %1039 = vrot.lane.b32.xlu0 %v1036, 96
    %v1040 = vpop.permute.xlu0 %1039
    %v1042 = vmul.f32 %v1037, %v1040
    %v1043 = vrot.slane %v937, 6
    %v1045 = vmul.f32 %v1023, %v1043
    %v1046 = vadd.f32 %v1042, %v1045
    %v1047 = vlaneseq
    %v1048 = vshrl.u32 %v1047, 7
    %v1049 = vsub.s32 0, %v1048
    %v1050 = vrot.slane %v88, %v1049
    %v1052 = vrot.slane %v1046, 6
    %1053 = vrot.lane.b32.xlu0 %v1052, 96
    %v1054 = vpop.permute.xlu0 %1053
    %v1055 = vsel %vm105, %v1054, 0
    %1057 = vmatprep.subr.mxu0 0.0
    %1058 = vmatpush1.msra.mxu0 %v77
    %1059 = vmatprep.subr.mxu0 0.0
    %1060 = vmatpush1.msra.mxu0 %v78
    %1061 = vmatprep.subr.mxu0 0.0
    %1062 = vmatpush1.msra.mxu0 %v79
    %1063 = vmatprep.subr.mxu0 0.0
    %1064 = vmatpush1.msra.mxu0 %v80
    %1065 = vmatprep.subr.mxu0 0.0
    %1066 = vmatpush1.msra.mxu0 0.0
    %1067 = vmatprep.subr.mxu0 0.0
    %1068 = vmatpush1.msra.mxu0 0.0
    %1069 = vmatprep.subr.mxu0 0.0
    %1070 = vmatpush1.msra.mxu0 0.0
    %1071 = vmatprep.subr.mxu0 0.0
    %1072 = vmatpush1.msra.mxu0 0.0
    %1073 = vmatprep.subr.mxu0 0.0
    %1074 = vmatpush1.msra.mxu0 0.0
    %1075 = vmatprep.subr.mxu0 0.0
    %1076 = vmatpush1.msra.mxu0 0.0
    %1077 = vmatprep.subr.mxu0 0.0
    %1078 = vmatpush1.msra.mxu0 0.0
    %1079 = vmatprep.subr.mxu0 0.0
    %1080 = vmatpush1.msra.mxu0 0.0
    %1081 = vmatprep.subr.mxu0 0.0
    %1082 = vmatpush1.msra.mxu0 0.0
    %1083 = vmatprep.subr.mxu0 0.0
    %1084 = vmatpush1.msra.mxu0 0.0
    %1085 = vmatprep.subr.mxu0 0.0
    %1086 = vmatpush1.msra.mxu0 0.0
    %1087 = vmatprep.subr.mxu0 0.0
    %1088 = vmatpush1.msra.mxu0 0.0
    %1089 = vmatprep.subr.mxu0 0.0
    %1090 = vmatpush1.msra.mxu0 0.0
    %1091 = vmatprep.subr.mxu0 0.0
    %1092 = vmatpush1.msra.mxu0 0.0
    %1093 = vmatprep.subr.mxu0 0.0
    %1094 = vmatpush1.msra.mxu0 0.0
    %1095 = vmatprep.subr.mxu0 0.0
    %1096 = vmatpush1.msra.mxu0 0.0
    %1097 = vmatprep.subr.mxu0 0.0
    %1098 = vmatpush1.msra.mxu0 0.0
    %1099 = vmatprep.subr.mxu0 0.0
    %1100 = vmatpush1.msra.mxu0 0.0
    %1101 = vmatprep.subr.mxu0 0.0
    %1102 = vmatpush1.msra.mxu0 0.0
    %1103 = vmatprep.subr.mxu0 0.0
    %1104 = vmatpush1.msra.mxu0 0.0
    %1105 = vmatprep.subr.mxu0 0.0
    %1106 = vmatpush1.msra.mxu0 0.0
    %1107 = vmatprep.subr.mxu0 0.0
    %1108 = vmatpush1.msra.mxu0 0.0
    %1109 = vmatprep.subr.mxu0 0.0
    %1110 = vmatpush1.msra.mxu0 0.0
    %1111 = vmatprep.subr.mxu0 0.0
    %1112 = vmatpush1.msra.mxu0 0.0
    %1113 = vmatprep.subr.mxu0 0.0
    %1114 = vmatpush1.msra.mxu0 0.0
    %1115 = vmatprep.subr.mxu0 0.0
    %1116 = vmatpush1.msra.mxu0 0.0
    %1117 = vmatprep.subr.mxu0 0.0
    %1118 = vmatpush1.msra.mxu0 0.0
    %1119 = vmatprep.subr.mxu0 0.0
    %1120 = vmatpush1.msra.mxu0 0.0
    %1121 = vmatprep.mubr.f32.mxu0 0.0
    %1122 = vmatmul.mubr.f32.gmra.mrb[0].mxu0 %v1055
    %v1123 = vpop.f32.mrb[0].mxu0
    %v1124 = vadd.f32 %v1050, %v1123
    %v1125 = vpop.f32.mrb[0].mxu0
    %1126 = vdwg.mxu0
    %v1127 = vmul.f32 %v1124, 0.5
    %v1128 = vmul.f32 %v1127, 1.442695
    %v1129 = vpow.pop %v1128
    %1131 = vrot.lane.b32.xlu0 %v55, 12
    %v1132 = vpop.permute.xlu0 %1131
    %v1134 = vmul.f32 %v1129, %v1132
    %1136 = vrot.lane.b32.xlu0 %v1134, 112
    %v1137 = vpop.permute.xlu0 %1136
    %v1139 = vadd.f32 %v1124, %v1137
    %vm1140 = vcmask 254976
    %1141 = vst.msk [vmem:[%s5] sm:$0x3] %vm1140, %v1124
    %1143 = vrot.lane.b32.xlu0 %v1139, 32
    %v1144 = vpop.permute.xlu0 %1143
    %vm1146 = vcmask 386304
    %1147 = vst.msk [vmem:[%s5] sm:$0x3] %vm1146, %v1144
    %vm1148 = vcmask 31744
    %v1149 = vsel %vm1148, %v55, 0
    %vm1151 = vcmask 1043456
    %v1153 = vsel %vm1151, %v83, 0
    %1155 = vmatprep.subr.mxu0 0.0
    %1156 = vmatpush1.msra.mxu0 %v1153
    %1157 = vmatprep.subr.mxu0 0.0
    %1158 = vmatpush1.msra.mxu0 0.0
    %1159 = vmatprep.subr.mxu0 0.0
    %1160 = vmatpush1.msra.mxu0 0.0
    %1161 = vmatprep.subr.mxu0 0.0
    %1162 = vmatpush1.msra.mxu0 0.0
    %1163 = vmatprep.subr.mxu0 0.0
    %1164 = vmatpush1.msra.mxu0 0.0
    %1165 = vmatprep.subr.mxu0 0.0
    %1166 = vmatpush1.msra.mxu0 0.0
    %1167 = vmatprep.subr.mxu0 0.0
    %1168 = vmatpush1.msra.mxu0 0.0
    %1169 = vmatprep.subr.mxu0 0.0
    %1170 = vmatpush1.msra.mxu0 0.0
    %1171 = vmatprep.subr.mxu0 0.0
    %1172 = vmatpush1.msra.mxu0 0.0
    %1173 = vmatprep.subr.mxu0 0.0
    %1174 = vmatpush1.msra.mxu0 0.0
    %1175 = vmatprep.subr.mxu0 0.0
    %1176 = vmatpush1.msra.mxu0 0.0
    %1177 = vmatprep.subr.mxu0 0.0
    %1178 = vmatpush1.msra.mxu0 0.0
    %1179 = vmatprep.subr.mxu0 0.0
    %1180 = vmatpush1.msra.mxu0 0.0
    %1181 = vmatprep.subr.mxu0 0.0
    %1182 = vmatpush1.msra.mxu0 0.0
    %1183 = vmatprep.subr.mxu0 0.0
    %1184 = vmatpush1.msra.mxu0 0.0
    %1185 = vmatprep.subr.mxu0 0.0
    %1186 = vmatpush1.msra.mxu0 0.0
    %1187 = vmatprep.subr.mxu0 0.0
    %1188 = vmatpush1.msra.mxu0 0.0
    %1189 = vmatprep.subr.mxu0 0.0
    %1190 = vmatpush1.msra.mxu0 0.0
    %1191 = vmatprep.subr.mxu0 0.0
    %1192 = vmatpush1.msra.mxu0 0.0
    %1193 = vmatprep.subr.mxu0 0.0
    %1194 = vmatpush1.msra.mxu0 0.0
    %1195 = vmatprep.subr.mxu0 0.0
    %1196 = vmatpush1.msra.mxu0 0.0
    %1197 = vmatprep.subr.mxu0 0.0
    %1198 = vmatpush1.msra.mxu0 0.0
    %1199 = vmatprep.subr.mxu0 0.0
    %1200 = vmatpush1.msra.mxu0 0.0
    %1201 = vmatprep.subr.mxu0 0.0
    %1202 = vmatpush1.msra.mxu0 0.0
    %1203 = vmatprep.subr.mxu0 0.0
    %1204 = vmatpush1.msra.mxu0 0.0
    %1205 = vmatprep.subr.mxu0 0.0
    %1206 = vmatpush1.msra.mxu0 0.0
    %1207 = vmatprep.subr.mxu0 0.0
    %1208 = vmatpush1.msra.mxu0 0.0
    %1209 = vmatprep.subr.mxu0 0.0
    %1210 = vmatpush1.msra.mxu0 0.0
    %1211 = vmatprep.subr.mxu0 0.0
    %1212 = vmatpush1.msra.mxu0 0.0
    %1213 = vmatprep.subr.mxu0 0.0
    %1214 = vmatpush1.msra.mxu0 0.0
    %1215 = vmatprep.subr.mxu0 0.0
    %1216 = vmatpush1.msra.mxu0 0.0
    %1217 = vmatprep.subr.mxu0 0.0
    %1218 = vmatpush1.msra.mxu0 0.0
    %1219 = vmatprep.mubr.f32.mxu0 0.0
    %1220 = vmatmul.mubr.f32.gmra.mrb[0].mxu0 %v1149
    %v1221 = vpop.f32.mrb[0].mxu0
    %v1222 = vadd.f32 0.0, %v1221
    %v1223 = vpop.f32.mrb[0].mxu0
    %1224 = vdwg.mxu0
    %vm1225 = vcmask 130048
    %v1226 = vsel %vm1225, %v1139, 0
    %1228 = vmatprep.subr.mxu0 0.0
    %1229 = vmatpush1.msra.mxu0 %v81
    %1230 = vmatprep.subr.mxu0 0.0
    %1231 = vmatpush1.msra.mxu0 %v82
    %1232 = vmatprep.subr.mxu0 0.0
    %1233 = vmatpush1.msra.mxu0 0.0
    %1234 = vmatprep.subr.mxu0 0.0
    %1235 = vmatpush1.msra.mxu0 0.0
    %1236 = vmatprep.subr.mxu0 0.0
    %1237 = vmatpush1.msra.mxu0 0.0
    %1238 = vmatprep.subr.mxu0 0.0
    %1239 = vmatpush1.msra.mxu0 0.0
    %1240 = vmatprep.subr.mxu0 0.0
    %1241 = vmatpush1.msra.mxu0 0.0
    %1242 = vmatprep.subr.mxu0 0.0
    %1243 = vmatpush1.msra.mxu0 0.0
    %1244 = vmatprep.subr.mxu0 0.0
    %1245 = vmatpush1.msra.mxu0 0.0
    %1246 = vmatprep.subr.mxu0 0.0
    %1247 = vmatpush1.msra.mxu0 0.0
    %1248 = vmatprep.subr.mxu0 0.0
    %1249 = vmatpush1.msra.mxu0 0.0
    %1250 = vmatprep.subr.mxu0 0.0
    %1251 = vmatpush1.msra.mxu0 0.0
    %1252 = vmatprep.subr.mxu0 0.0
    %1253 = vmatpush1.msra.mxu0 0.0
    %1254 = vmatprep.subr.mxu0 0.0
    %1255 = vmatpush1.msra.mxu0 0.0
    %1256 = vmatprep.subr.mxu0 0.0
    %1257 = vmatpush1.msra.mxu0 0.0
    %1258 = vmatprep.subr.mxu0 0.0
    %1259 = vmatpush1.msra.mxu0 0.0
    %1260 = vmatprep.subr.mxu0 0.0
    %1261 = vmatpush1.msra.mxu0 0.0
    %1262 = vmatprep.subr.mxu0 0.0
    %1263 = vmatpush1.msra.mxu0 0.0
    %1264 = vmatprep.subr.mxu0 0.0
    %1265 = vmatpush1.msra.mxu0 0.0
    %1266 = vmatprep.subr.mxu0 0.0
    %1267 = vmatpush1.msra.mxu0 0.0
    %1268 = vmatprep.subr.mxu0 0.0
    %1269 = vmatpush1.msra.mxu0 0.0
    %1270 = vmatprep.subr.mxu0 0.0
    %1271 = vmatpush1.msra.mxu0 0.0
    %1272 = vmatprep.subr.mxu0 0.0
    %1273 = vmatpush1.msra.mxu0 0.0
    %1274 = vmatprep.subr.mxu0 0.0
    %1275 = vmatpush1.msra.mxu0 0.0
    %1276 = vmatprep.subr.mxu0 0.0
    %1277 = vmatpush1.msra.mxu0 0.0
    %1278 = vmatprep.subr.mxu0 0.0
    %1279 = vmatpush1.msra.mxu0 0.0
    %1280 = vmatprep.subr.mxu0 0.0
    %1281 = vmatpush1.msra.mxu0 0.0
    %1282 = vmatprep.subr.mxu0 0.0
    %1283 = vmatpush1.msra.mxu0 0.0
    %1284 = vmatprep.subr.mxu0 0.0
    %1285 = vmatpush1.msra.mxu0 0.0
    %1286 = vmatprep.subr.mxu0 0.0
    %1287 = vmatpush1.msra.mxu0 0.0
    %1288 = vmatprep.subr.mxu0 0.0
    %1289 = vmatpush1.msra.mxu0 0.0
    %1290 = vmatprep.subr.mxu0 0.0
    %1291 = vmatpush1.msra.mxu0 0.0
    %1292 = vmatprep.mubr.f32.mxu0 0.0
    %1293 = vmatmul.mubr.f32.gmra.mrb[0].mxu0 %v1226
    %v1294 = vpop.f32.mrb[0].mxu0
    %v1295 = vadd.f32 %v1222, %v1294
    %v1296 = vpop.f32.mrb[0].mxu0
    %1297 = vdwg.mxu0
    %v1298 = vlaneseq
    %v1299 = vshrl.u32 %v1298, 7
    %v1300 = vsub.s32 0, %v1299
    %v1301 = vrot.slane %v89, %v1300
    %v1302 = vadd.f32 %v1295, %v1301
    %v1303 = vtanh.pop %v1302
    %v1305 = vsel %vm1151, %v74, 0
    %1307 = vmatprep.subr.mxu0 0.0
    %1308 = vmatpush1.msra.mxu0 %v1305
    %1309 = vmatprep.subr.mxu0 0.0
    %1310 = vmatpush1.msra.mxu0 0.0
    %1311 = vmatprep.subr.mxu0 0.0
    %1312 = vmatpush1.msra.mxu0 0.0
    %1313 = vmatprep.subr.mxu0 0.0
    %1314 = vmatpush1.msra.mxu0 0.0
    %1315 = vmatprep.subr.mxu0 0.0
    %1316 = vmatpush1.msra.mxu0 0.0
    %1317 = vmatprep.subr.mxu0 0.0
    %1318 = vmatpush1.msra.mxu0 0.0
    %1319 = vmatprep.subr.mxu0 0.0
    %1320 = vmatpush1.msra.mxu0 0.0
    %1321 = vmatprep.subr.mxu0 0.0
    %1322 = vmatpush1.msra.mxu0 0.0
    %1323 = vmatprep.subr.mxu0 0.0
    %1324 = vmatpush1.msra.mxu0 0.0
    %1325 = vmatprep.subr.mxu0 0.0
    %1326 = vmatpush1.msra.mxu0 0.0
    %1327 = vmatprep.subr.mxu0 0.0
    %1328 = vmatpush1.msra.mxu0 0.0
    %1329 = vmatprep.subr.mxu0 0.0
    %1330 = vmatpush1.msra.mxu0 0.0
    %1331 = vmatprep.subr.mxu0 0.0
    %1332 = vmatpush1.msra.mxu0 0.0
    %1333 = vmatprep.subr.mxu0 0.0
    %1334 = vmatpush1.msra.mxu0 0.0
    %1335 = vmatprep.subr.mxu0 0.0
    %1336 = vmatpush1.msra.mxu0 0.0
    %1337 = vmatprep.subr.mxu0 0.0
    %1338 = vmatpush1.msra.mxu0 0.0
    %1339 = vmatprep.subr.mxu0 0.0
    %1340 = vmatpush1.msra.mxu0 0.0
    %1341 = vmatprep.subr.mxu0 0.0
    %1342 = vmatpush1.msra.mxu0 0.0
    %1343 = vmatprep.subr.mxu0 0.0
    %1344 = vmatpush1.msra.mxu0 0.0
    %1345 = vmatprep.subr.mxu0 0.0
    %1346 = vmatpush1.msra.mxu0 0.0
    %1347 = vmatprep.subr.mxu0 0.0
    %1348 = vmatpush1.msra.mxu0 0.0
    %1349 = vmatprep.subr.mxu0 0.0
    %1350 = vmatpush1.msra.mxu0 0.0
    %1351 = vmatprep.subr.mxu0 0.0
    %1352 = vmatpush1.msra.mxu0 0.0
    %1353 = vmatprep.subr.mxu0 0.0
    %1354 = vmatpush1.msra.mxu0 0.0
    %1355 = vmatprep.subr.mxu0 0.0
    %1356 = vmatpush1.msra.mxu0 0.0
    %1357 = vmatprep.subr.mxu0 0.0
    %1358 = vmatpush1.msra.mxu0 0.0
    %1359 = vmatprep.subr.mxu0 0.0
    %1360 = vmatpush1.msra.mxu0 0.0
    %1361 = vmatprep.subr.mxu0 0.0
    %1362 = vmatpush1.msra.mxu0 0.0
    %1363 = vmatprep.subr.mxu0 0.0
    %1364 = vmatpush1.msra.mxu0 0.0
    %1365 = vmatprep.subr.mxu0 0.0
    %1366 = vmatpush1.msra.mxu0 0.0
    %1367 = vmatprep.subr.mxu0 0.0
    %1368 = vmatpush1.msra.mxu0 0.0
    %1369 = vmatprep.subr.mxu0 0.0
    %1370 = vmatpush1.msra.mxu0 0.0
    %1371 = vmatprep.mubr.f32.mxu0 0.0
    %1372 = vmatmul.mubr.f32.gmra.mrb[0].mxu0 %v1149
    %v1373 = vpop.f32.mrb[0].mxu0
    %v1374 = vadd.f32 0.0, %v1373
    %v1375 = vpop.f32.mrb[0].mxu0
    %1376 = vdwg.mxu0
    %1377 = vmatprep.subr.mxu0 0.0
    %1378 = vmatpush1.msra.mxu0 %v72
    %1379 = vmatprep.subr.mxu0 0.0
    %1380 = vmatpush1.msra.mxu0 %v73
    %1381 = vmatprep.subr.mxu0 0.0
    %1382 = vmatpush1.msra.mxu0 0.0
    %1383 = vmatprep.subr.mxu0 0.0
    %1384 = vmatpush1.msra.mxu0 0.0
    %1385 = vmatprep.subr.mxu0 0.0
    %1386 = vmatpush1.msra.mxu0 0.0
    %1387 = vmatprep.subr.mxu0 0.0
    %1388 = vmatpush1.msra.mxu0 0.0
    %1389 = vmatprep.subr.mxu0 0.0
    %1390 = vmatpush1.msra.mxu0 0.0
    %1391 = vmatprep.subr.mxu0 0.0
    %1392 = vmatpush1.msra.mxu0 0.0
    %1393 = vmatprep.subr.mxu0 0.0
    %1394 = vmatpush1.msra.mxu0 0.0
    %1395 = vmatprep.subr.mxu0 0.0
    %1396 = vmatpush1.msra.mxu0 0.0
    %1397 = vmatprep.subr.mxu0 0.0
    %1398 = vmatpush1.msra.mxu0 0.0
    %1399 = vmatprep.subr.mxu0 0.0
    %1400 = vmatpush1.msra.mxu0 0.0
    %1401 = vmatprep.subr.mxu0 0.0
    %1402 = vmatpush1.msra.mxu0 0.0
    %1403 = vmatprep.subr.mxu0 0.0
    %1404 = vmatpush1.msra.mxu0 0.0
    %1405 = vmatprep.subr.mxu0 0.0
    %1406 = vmatpush1.msra.mxu0 0.0
    %1407 = vmatprep.subr.mxu0 0.0
    %1408 = vmatpush1.msra.mxu0 0.0
    %1409 = vmatprep.subr.mxu0 0.0
    %1410 = vmatpush1.msra.mxu0 0.0
    %1411 = vmatprep.subr.mxu0 0.0
    %1412 = vmatpush1.msra.mxu0 0.0
    %1413 = vmatprep.subr.mxu0 0.0
    %1414 = vmatpush1.msra.mxu0 0.0
    %1415 = vmatprep.subr.mxu0 0.0
    %1416 = vmatpush1.msra.mxu0 0.0
    %1417 = vmatprep.subr.mxu0 0.0
    %1418 = vmatpush1.msra.mxu0 0.0
    %1419 = vmatprep.subr.mxu0 0.0
    %1420 = vmatpush1.msra.mxu0 0.0
    %1421 = vmatprep.subr.mxu0 0.0
    %1422 = vmatpush1.msra.mxu0 0.0
    %1423 = vmatprep.subr.mxu0 0.0
    %1424 = vmatpush1.msra.mxu0 0.0
    %1425 = vmatprep.subr.mxu0 0.0
    %1426 = vmatpush1.msra.mxu0 0.0
    %1427 = vmatprep.subr.mxu0 0.0
    %1428 = vmatpush1.msra.mxu0 0.0
    %1429 = vmatprep.subr.mxu0 0.0
    %1430 = vmatpush1.msra.mxu0 0.0
    %1431 = vmatprep.subr.mxu0 0.0
    %1432 = vmatpush1.msra.mxu0 0.0
    %1433 = vmatprep.subr.mxu0 0.0
    %1434 = vmatpush1.msra.mxu0 0.0
    %1435 = vmatprep.subr.mxu0 0.0
    %1436 = vmatpush1.msra.mxu0 0.0
    %1437 = vmatprep.subr.mxu0 0.0
    %1438 = vmatpush1.msra.mxu0 0.0
    %1439 = vmatprep.subr.mxu0 0.0
    %1440 = vmatpush1.msra.mxu0 0.0
    %1441 = vmatprep.mubr.f32.mxu0 0.0
    %1442 = vmatmul.mubr.f32.gmra.mrb[0].mxu0 %v1226
    %v1443 = vpop.f32.mrb[0].mxu0
    %v1444 = vadd.f32 %v1374, %v1443
    %v1445 = vpop.f32.mrb[0].mxu0
    %1446 = vdwg.mxu0
    %v1447 = vlaneseq
    %v1448 = vshrl.u32 %v1447, 7
    %v1449 = vsub.s32 0, %v1448
    %v1450 = vrot.slane %v76, %v1449
    %v1452 = vsel %vm105, %v53, 0
    %v1455 = vsel %vm105, %v54, 0
    %1457 = vmatprep.subr.mxu0 0.0
    %1458 = vmatpush1.msra.mxu0 %v64
    %1459 = vmatprep.subr.mxu0 0.0
    %1460 = vmatpush1.msra.mxu0 %v65
    %1461 = vmatprep.subr.mxu0 0.0
    %1462 = vmatpush1.msra.mxu0 %v66
    %1463 = vmatprep.subr.mxu0 0.0
    %1464 = vmatpush1.msra.mxu0 %v67
    %1465 = vmatprep.subr.mxu0 0.0
    %1466 = vmatpush1.msra.mxu0 0.0
    %1467 = vmatprep.subr.mxu0 0.0
    %1468 = vmatpush1.msra.mxu0 0.0
    %1469 = vmatprep.subr.mxu0 0.0
    %1470 = vmatpush1.msra.mxu0 0.0
    %1471 = vmatprep.subr.mxu0 0.0
    %1472 = vmatpush1.msra.mxu0 0.0
    %1473 = vmatprep.subr.mxu0 0.0
    %1474 = vmatpush1.msra.mxu0 0.0
    %1475 = vmatprep.subr.mxu0 0.0
    %1476 = vmatpush1.msra.mxu0 0.0
    %1477 = vmatprep.subr.mxu0 0.0
    %1478 = vmatpush1.msra.mxu0 0.0
    %1479 = vmatprep.subr.mxu0 0.0
    %1480 = vmatpush1.msra.mxu0 0.0
    %1481 = vmatprep.subr.mxu0 0.0
    %1482 = vmatpush1.msra.mxu0 0.0
    %1483 = vmatprep.subr.mxu0 0.0
    %1484 = vmatpush1.msra.mxu0 0.0
    %1485 = vmatprep.subr.mxu0 0.0
    %1486 = vmatpush1.msra.mxu0 0.0
    %1487 = vmatprep.subr.mxu0 0.0
    %1488 = vmatpush1.msra.mxu0 0.0
    %1489 = vmatprep.subr.mxu0 0.0
    %1490 = vmatpush1.msra.mxu0 0.0
    %1491 = vmatprep.subr.mxu0 0.0
    %1492 = vmatpush1.msra.mxu0 0.0
    %1493 = vmatprep.subr.mxu0 0.0
    %1494 = vmatpush1.msra.mxu0 0.0
    %1495 = vmatprep.subr.mxu0 0.0
    %1496 = vmatpush1.msra.mxu0 0.0
    %1497 = vmatprep.subr.mxu0 0.0
    %1498 = vmatpush1.msra.mxu0 0.0
    %1499 = vmatprep.subr.mxu0 0.0
    %1500 = vmatpush1.msra.mxu0 0.0
    %1501 = vmatprep.subr.mxu0 0.0
    %1502 = vmatpush1.msra.mxu0 0.0
    %1503 = vmatprep.subr.mxu0 0.0
    %1504 = vmatpush1.msra.mxu0 0.0
    %1505 = vmatprep.subr.mxu0 0.0
    %1506 = vmatpush1.msra.mxu0 0.0
    %1507 = vmatprep.subr.mxu0 0.0
    %1508 = vmatpush1.msra.mxu0 0.0
    %1509 = vmatprep.subr.mxu0 0.0
    %1510 = vmatpush1.msra.mxu0 0.0
    %1511 = vmatprep.subr.mxu0 0.0
    %1512 = vmatpush1.msra.mxu0 0.0
    %1513 = vmatprep.subr.mxu0 0.0
    %1514 = vmatpush1.msra.mxu0 0.0
    %1515 = vmatprep.subr.mxu0 0.0
    %1516 = vmatpush1.msra.mxu0 0.0
    %1517 = vmatprep.subr.mxu0 0.0
    %1518 = vmatpush1.msra.mxu0 0.0
    %1519 = vmatprep.subr.mxu0 0.0
    %1520 = vmatpush1.msra.mxu0 0.0
    %1521 = vmatprep.mubr.f32.mxu0 0.0
    %1522 = vmatmul.mubr.f32.gmra.mrb[0].mxu0 %v1452
    %v1523 = vpop.f32.mrb[0].mxu0
    %v1524 = vadd.f32 %v1450, %v1523
    %v1525 = vpop.f32.mrb[0].mxu0
    %1526 = vmatprep.mubr.f32.mxu0 0.0
    %1527 = vmatmul.mubr.f32.gmra.mrb[0].mxu0 %v1455
    %v1528 = vpop.f32.mrb[0].mxu0
    %v1529 = vadd.f32 %v1450, %v1528
    %v1530 = vpop.f32.mrb[0].mxu0
    %1531 = vdwg.mxu0
    %v1532 = vadd.f32 %v1524, %v1444
    %v1534 = vsel %vm105, %v1303, 0
    %1536 = vmatprep.subr.mxu0 0.0
    %1537 = vmatpush1.msra.mxu0 %v68
    %1538 = vmatprep.subr.mxu0 0.0
    %1539 = vmatpush1.msra.mxu0 %v69
    %1540 = vmatprep.subr.mxu0 0.0
    %1541 = vmatpush1.msra.mxu0 %v70
    %1542 = vmatprep.subr.mxu0 0.0
    %1543 = vmatpush1.msra.mxu0 %v71
    %1544 = vmatprep.subr.mxu0 0.0
    %1545 = vmatpush1.msra.mxu0 0.0
    %1546 = vmatprep.subr.mxu0 0.0
    %1547 = vmatpush1.msra.mxu0 0.0
    %1548 = vmatprep.subr.mxu0 0.0
    %1549 = vmatpush1.msra.mxu0 0.0
    %1550 = vmatprep.subr.mxu0 0.0
    %1551 = vmatpush1.msra.mxu0 0.0
    %1552 = vmatprep.subr.mxu0 0.0
    %1553 = vmatpush1.msra.mxu0 0.0
    %1554 = vmatprep.subr.mxu0 0.0
    %1555 = vmatpush1.msra.mxu0 0.0
    %1556 = vmatprep.subr.mxu0 0.0
    %1557 = vmatpush1.msra.mxu0 0.0
    %1558 = vmatprep.subr.mxu0 0.0
    %1559 = vmatpush1.msra.mxu0 0.0
    %1560 = vmatprep.subr.mxu0 0.0
    %1561 = vmatpush1.msra.mxu0 0.0
    %1562 = vmatprep.subr.mxu0 0.0
    %1563 = vmatpush1.msra.mxu0 0.0
    %1564 = vmatprep.subr.mxu0 0.0
    %1565 = vmatpush1.msra.mxu0 0.0
    %1566 = vmatprep.subr.mxu0 0.0
    %1567 = vmatpush1.msra.mxu0 0.0
    %1568 = vmatprep.subr.mxu0 0.0
    %1569 = vmatpush1.msra.mxu0 0.0
    %1570 = vmatprep.subr.mxu0 0.0
    %1571 = vmatpush1.msra.mxu0 0.0
    %1572 = vmatprep.subr.mxu0 0.0
    %1573 = vmatpush1.msra.mxu0 0.0
    %1574 = vmatprep.subr.mxu0 0.0
    %1575 = vmatpush1.msra.mxu0 0.0
    %1576 = vmatprep.subr.mxu0 0.0
    %1577 = vmatpush1.msra.mxu0 0.0
    %1578 = vmatprep.subr.mxu0 0.0
    %1579 = vmatpush1.msra.mxu0 0.0
    %1580 = vmatprep.subr.mxu0 0.0
    %1581 = vmatpush1.msra.mxu0 0.0
    %1582 = vmatprep.subr.mxu0 0.0
    %1583 = vmatpush1.msra.mxu0 0.0
    %1584 = vmatprep.subr.mxu0 0.0
    %1585 = vmatpush1.msra.mxu0 0.0
    %1586 = vmatprep.subr.mxu0 0.0
    %1587 = vmatpush1.msra.mxu0 0.0
    %1588 = vmatprep.subr.mxu0 0.0
    %1589 = vmatpush1.msra.mxu0 0.0
    %1590 = vmatprep.subr.mxu0 0.0
    %1591 = vmatpush1.msra.mxu0 0.0
    %1592 = vmatprep.subr.mxu0 0.0
    %1593 = vmatpush1.msra.mxu0 0.0
    %1594 = vmatprep.subr.mxu0 0.0
    %1595 = vmatpush1.msra.mxu0 0.0
    %1596 = vmatprep.subr.mxu0 0.0
    %1597 = vmatpush1.msra.mxu0 0.0
    %1598 = vmatprep.subr.mxu0 0.0
    %1599 = vmatpush1.msra.mxu0 0.0
    %1600 = vmatprep.mubr.f32.mxu0 0.0
    %1601 = vmatmul.mubr.f32.gmra.mrb[0].mxu0 %v1534
    %v1602 = vpop.f32.mrb[0].mxu0
    %v1603 = vadd.f32 0.0, %v1602
    %v1604 = vpop.f32.mrb[0].mxu0
    %1605 = vdwg.mxu0
    %v1606 = vadd.f32 %v1532, %v1603
    %v1607 = vxor.u32 %v1606, 2147483648
    %v1608 = vmul.f32 %v1607, 1.442695
    %v1609 = vpow.pop %v1608
    %v1610 = vadd.f32 %v1609, 1.0
    %v1611 = vrcp.pop %v1610
    %v1612 = vmul.f32 1.0, %v1611
    %1614 = vrot.lane.b32.xlu0 %v100, 64
    %v1615 = vpop.permute.xlu0 %1614
    %v1617 = vadd.f32 %v1603, %v1615
    %1619 = vrot.lane.b32.xlu0 %v1617, 64
    %v1620 = vpop.permute.xlu0 %1619
    %v1622 = vmul.f32 %v1612, %v1620
    %1624 = vrot.lane.b32.xlu0 %v1622, 64
    %v1625 = vpop.permute.xlu0 %1624
    %v1627 = vadd.f32 %v1532, %v1625
    %v1628 = vtanh.pop %v1627
    %v1629 = vsub.f32 1.0, %v1612
    %1631 = vrot.lane.b32.xlu0 %v1628, 96
    %v1632 = vpop.permute.xlu0 %1631
    %v1634 = vmul.f32 %v1629, %v1632
    %1635 = vrot.lane.b32.xlu0 %v1303, 32
    %v1636 = vpop.permute.xlu0 %1635
    %v1638 = vmul.f32 %v1612, %v1636
    %v1639 = vadd.f32 %v1634, %v1638
    %1641 = vrot.lane.b32.xlu0 %v1639, 96
    %v1642 = vpop.permute.xlu0 %1641
    %1644 = vst.msk [vmem:[#allocation2] sm:$0x3] %vm1140, %v1642
    %v1646 = vrot.slane %v1444, 6
    %v1648 = vadd.f32 %v1524, %v1646
    %v1649 = vsel %vm105, %v1642, 0
    %1651 = vmatprep.subr.mxu0 0.0
    %1652 = vmatpush1.msra.mxu0 %v68
    %1653 = vmatprep.subr.mxu0 0.0
    %1654 = vmatpush1.msra.mxu0 %v69
    %1655 = vmatprep.subr.mxu0 0.0
    %1656 = vmatpush1.msra.mxu0 %v70
    %1657 = vmatprep.subr.mxu0 0.0
    %1658 = vmatpush1.msra.mxu0 %v71
    %1659 = vmatprep.subr.mxu0 0.0
    %1660 = vmatpush1.msra.mxu0 0.0
    %1661 = vmatprep.subr.mxu0 0.0
    %1662 = vmatpush1.msra.mxu0 0.0
    %1663 = vmatprep.subr.mxu0 0.0
    %1664 = vmatpush1.msra.mxu0 0.0
    %1665 = vmatprep.subr.mxu0 0.0
    %1666 = vmatpush1.msra.mxu0 0.0
    %1667 = vmatprep.subr.mxu0 0.0
    %1668 = vmatpush1.msra.mxu0 0.0
    %1669 = vmatprep.subr.mxu0 0.0
    %1670 = vmatpush1.msra.mxu0 0.0
    %1671 = vmatprep.subr.mxu0 0.0
    %1672 = vmatpush1.msra.mxu0 0.0
    %1673 = vmatprep.subr.mxu0 0.0
    %1674 = vmatpush1.msra.mxu0 0.0
    %1675 = vmatprep.subr.mxu0 0.0
    %1676 = vmatpush1.msra.mxu0 0.0
    %1677 = vmatprep.subr.mxu0 0.0
    %1678 = vmatpush1.msra.mxu0 0.0
    %1679 = vmatprep.subr.mxu0 0.0
    %1680 = vmatpush1.msra.mxu0 0.0
    %1681 = vmatprep.subr.mxu0 0.0
    %1682 = vmatpush1.msra.mxu0 0.0
    %1683 = vmatprep.subr.mxu0 0.0
    %1684 = vmatpush1.msra.mxu0 0.0
    %1685 = vmatprep.subr.mxu0 0.0
    %1686 = vmatpush1.msra.mxu0 0.0
    %1687 = vmatprep.subr.mxu0 0.0
    %1688 = vmatpush1.msra.mxu0 0.0
    %1689 = vmatprep.subr.mxu0 0.0
    %1690 = vmatpush1.msra.mxu0 0.0
    %1691 = vmatprep.subr.mxu0 0.0
    %1692 = vmatpush1.msra.mxu0 0.0
    %1693 = vmatprep.subr.mxu0 0.0
    %1694 = vmatpush1.msra.mxu0 0.0
    %1695 = vmatprep.subr.mxu0 0.0
    %1696 = vmatpush1.msra.mxu0 0.0
    %1697 = vmatprep.subr.mxu0 0.0
    %1698 = vmatpush1.msra.mxu0 0.0
    %1699 = vmatprep.subr.mxu0 0.0
    %1700 = vmatpush1.msra.mxu0 0.0
    %1701 = vmatprep.subr.mxu0 0.0
    %1702 = vmatpush1.msra.mxu0 0.0
    %1703 = vmatprep.subr.mxu0 0.0
    %1704 = vmatpush1.msra.mxu0 0.0
    %1705 = vmatprep.subr.mxu0 0.0
    %1706 = vmatpush1.msra.mxu0 0.0
    %1707 = vmatprep.subr.mxu0 0.0
    %1708 = vmatpush1.msra.mxu0 0.0
    %1709 = vmatprep.subr.mxu0 0.0
    %1710 = vmatpush1.msra.mxu0 0.0
    %1711 = vmatprep.subr.mxu0 0.0
    %1712 = vmatpush1.msra.mxu0 0.0
    %1713 = vmatprep.subr.mxu0 0.0
    %1714 = vmatpush1.msra.mxu0 0.0
    %1715 = vmatprep.mubr.f32.mxu0 0.0
    %1716 = vmatmul.mubr.f32.gmra.mrb[0].mxu0 %v1649
    %v1717 = vpop.f32.mrb[0].mxu0
    %v1718 = vadd.f32 0.0, %v1717
    %v1719 = vpop.f32.mrb[0].mxu0
    %1720 = vdwg.mxu0
    %v1722 = vrot.slane %v1718, 6
    %v1724 = vadd.f32 %v1648, %v1722
    %v1725 = vxor.u32 %v1724, 2147483648
    %v1726 = vmul.f32 %v1725, 1.442695
    %v1727 = vpow.pop %v1726
    %v1728 = vadd.f32 %v1727, 1.0
    %v1729 = vrcp.pop %v1728
    %v1730 = vmul.f32 1.0, %v1729
    %v1731 = vadd.f32 %v1718, %v1615
    %v1733 = vrot.slane %v1731, 6
    %1734 = vrot.lane.b32.xlu0 %v1733, 64
    %v1735 = vpop.permute.xlu0 %1734
    %v1737 = vmul.f32 %v1730, %v1735
    %1739 = vrot.lane.b32.xlu0 %v1737, 64
    %v1740 = vpop.permute.xlu0 %1739
    %v1742 = vadd.f32 %v1648, %v1740
    %v1743 = vtanh.pop %v1742
    %v1744 = vsub.f32 1.0, %v1730
    %1746 = vrot.lane.b32.xlu0 %v1743, 96
    %v1747 = vpop.permute.xlu0 %1746
    %v1749 = vmul.f32 %v1744, %v1747
    %v1750 = vrot.slane %v1639, 6
    %v1752 = vmul.f32 %v1730, %v1750
    %v1753 = vadd.f32 %v1749, %v1752
    %1755 = vrot.lane.b32.xlu0 %v1753, 96
    %v1756 = vpop.permute.xlu0 %1755
    %vm1758 = vcmask 257026
    %1759 = vst.msk [vmem:[#allocation2] sm:$0xc] %vm1758, %v1756
    %v1760 = vrot.slane %v1444, 4
    %v1762 = vadd.f32 %v1524, %v1760
    %v1763 = vrot.slane %v1753, 2
    %1764 = vrot.lane.b32.xlu0 %v1763, 96
    %v1765 = vpop.permute.xlu0 %1764
    %v1766 = vsel %vm105, %v1765, 0
    %1768 = vmatprep.subr.mxu0 0.0
    %1769 = vmatpush1.msra.mxu0 %v68
    %1770 = vmatprep.subr.mxu0 0.0
    %1771 = vmatpush1.msra.mxu0 %v69
    %1772 = vmatprep.subr.mxu0 0.0
    %1773 = vmatpush1.msra.mxu0 %v70
    %1774 = vmatprep.subr.mxu0 0.0
    %1775 = vmatpush1.msra.mxu0 %v71
    %1776 = vmatprep.subr.mxu0 0.0
    %1777 = vmatpush1.msra.mxu0 0.0
    %1778 = vmatprep.subr.mxu0 0.0
    %1779 = vmatpush1.msra.mxu0 0.0
    %1780 = vmatprep.subr.mxu0 0.0
    %1781 = vmatpush1.msra.mxu0 0.0
    %1782 = vmatprep.subr.mxu0 0.0
    %1783 = vmatpush1.msra.mxu0 0.0
    %1784 = vmatprep.subr.mxu0 0.0
    %1785 = vmatpush1.msra.mxu0 0.0
    %1786 = vmatprep.subr.mxu0 0.0
    %1787 = vmatpush1.msra.mxu0 0.0
    %1788 = vmatprep.subr.mxu0 0.0
    %1789 = vmatpush1.msra.mxu0 0.0
    %1790 = vmatprep.subr.mxu0 0.0
    %1791 = vmatpush1.msra.mxu0 0.0
    %1792 = vmatprep.subr.mxu0 0.0
    %1793 = vmatpush1.msra.mxu0 0.0
    %1794 = vmatprep.subr.mxu0 0.0
    %1795 = vmatpush1.msra.mxu0 0.0
    %1796 = vmatprep.subr.mxu0 0.0
    %1797 = vmatpush1.msra.mxu0 0.0
    %1798 = vmatprep.subr.mxu0 0.0
    %1799 = vmatpush1.msra.mxu0 0.0
    %1800 = vmatprep.subr.mxu0 0.0
    %1801 = vmatpush1.msra.mxu0 0.0
    %1802 = vmatprep.subr.mxu0 0.0
    %1803 = vmatpush1.msra.mxu0 0.0
    %1804 = vmatprep.subr.mxu0 0.0
    %1805 = vmatpush1.msra.mxu0 0.0
    %1806 = vmatprep.subr.mxu0 0.0
    %1807 = vmatpush1.msra.mxu0 0.0
    %1808 = vmatprep.subr.mxu0 0.0
    %1809 = vmatpush1.msra.mxu0 0.0
    %1810 = vmatprep.subr.mxu0 0.0
    %1811 = vmatpush1.msra.mxu0 0.0
    %1812 = vmatprep.subr.mxu0 0.0
    %1813 = vmatpush1.msra.mxu0 0.0
    %1814 = vmatprep.subr.mxu0 0.0
    %1815 = vmatpush1.msra.mxu0 0.0
    %1816 = vmatprep.subr.mxu0 0.0
    %1817 = vmatpush1.msra.mxu0 0.0
    %1818 = vmatprep.subr.mxu0 0.0
    %1819 = vmatpush1.msra.mxu0 0.0
    %1820 = vmatprep.subr.mxu0 0.0
    %1821 = vmatpush1.msra.mxu0 0.0
    %1822 = vmatprep.subr.mxu0 0.0
    %1823 = vmatpush1.msra.mxu0 0.0
    %1824 = vmatprep.subr.mxu0 0.0
    %1825 = vmatpush1.msra.mxu0 0.0
    %1826 = vmatprep.subr.mxu0 0.0
    %1827 = vmatpush1.msra.mxu0 0.0
    %1828 = vmatprep.subr.mxu0 0.0
    %1829 = vmatpush1.msra.mxu0 0.0
    %1830 = vmatprep.subr.mxu0 0.0
    %1831 = vmatpush1.msra.mxu0 0.0
    %1832 = vmatprep.mubr.f32.mxu0 0.0
    %1833 = vmatmul.mubr.f32.gmra.mrb[0].mxu0 %v1766
    %v1834 = vpop.f32.mrb[0].mxu0
    %v1835 = vadd.f32 0.0, %v1834
    %v1836 = vpop.f32.mrb[0].mxu0
    %1837 = vdwg.mxu0
    %v1839 = vrot.slane %v1835, 4
    %v1841 = vadd.f32 %v1762, %v1839
    %v1842 = vxor.u32 %v1841, 2147483648
    %v1843 = vmul.f32 %v1842, 1.442695
    %v1844 = vpow.pop %v1843
    %v1845 = vadd.f32 %v1844, 1.0
    %v1846 = vrcp.pop %v1845
    %v1847 = vmul.f32 1.0, %v1846
    %v1848 = vadd.f32 %v1835, %v1615
    %v1850 = vrot.slane %v1848, 4
    %1851 = vrot.lane.b32.xlu0 %v1850, 64
    %v1852 = vpop.permute.xlu0 %1851
    %v1854 = vmul.f32 %v1847, %v1852
    %1856 = vrot.lane.b32.xlu0 %v1854, 64
    %v1857 = vpop.permute.xlu0 %1856
    %v1859 = vadd.f32 %v1762, %v1857
    %v1860 = vtanh.pop %v1859
    %v1861 = vsub.f32 1.0, %v1847
    %1863 = vrot.lane.b32.xlu0 %v1860, 96
    %v1864 = vpop.permute.xlu0 %1863
    %v1866 = vmul.f32 %v1861, %v1864
    %v1867 = vrot.slane %v1753, 6
    %v1869 = vmul.f32 %v1847, %v1867
    %v1870 = vadd.f32 %v1866, %v1869
    %1872 = vrot.lane.b32.xlu0 %v1870, 96
    %v1873 = vpop.permute.xlu0 %1872
    %vm1875 = vcmask 259076
    %1876 = vst.msk [vmem:[#allocation2] sm:$0x30] %vm1875, %v1873
    %v1877 = vrot.slane %v1444, 2
    %v1879 = vadd.f32 %v1524, %v1877
    %v1880 = vrot.slane %v1870, 4
    %1881 = vrot.lane.b32.xlu0 %v1880, 96
    %v1882 = vpop.permute.xlu0 %1881
    %v1883 = vsel %vm105, %v1882, 0
    %1885 = vmatprep.subr.mxu0 0.0
    %1886 = vmatpush1.msra.mxu0 %v68
    %1887 = vmatprep.subr.mxu0 0.0
    %1888 = vmatpush1.msra.mxu0 %v69
    %1889 = vmatprep.subr.mxu0 0.0
    %1890 = vmatpush1.msra.mxu0 %v70
    %1891 = vmatprep.subr.mxu0 0.0
    %1892 = vmatpush1.msra.mxu0 %v71
    %1893 = vmatprep.subr.mxu0 0.0
    %1894 = vmatpush1.msra.mxu0 0.0
    %1895 = vmatprep.subr.mxu0 0.0
    %1896 = vmatpush1.msra.mxu0 0.0
    %1897 = vmatprep.subr.mxu0 0.0
    %1898 = vmatpush1.msra.mxu0 0.0
    %1899 = vmatprep.subr.mxu0 0.0
    %1900 = vmatpush1.msra.mxu0 0.0
    %1901 = vmatprep.subr.mxu0 0.0
    %1902 = vmatpush1.msra.mxu0 0.0
    %1903 = vmatprep.subr.mxu0 0.0
    %1904 = vmatpush1.msra.mxu0 0.0
    %1905 = vmatprep.subr.mxu0 0.0
    %1906 = vmatpush1.msra.mxu0 0.0
    %1907 = vmatprep.subr.mxu0 0.0
    %1908 = vmatpush1.msra.mxu0 0.0
    %1909 = vmatprep.subr.mxu0 0.0
    %1910 = vmatpush1.msra.mxu0 0.0
    %1911 = vmatprep.subr.mxu0 0.0
    %1912 = vmatpush1.msra.mxu0 0.0
    %1913 = vmatprep.subr.mxu0 0.0
    %1914 = vmatpush1.msra.mxu0 0.0
    %1915 = vmatprep.subr.mxu0 0.0
    %1916 = vmatpush1.msra.mxu0 0.0
    %1917 = vmatprep.subr.mxu0 0.0
    %1918 = vmatpush1.msra.mxu0 0.0
    %1919 = vmatprep.subr.mxu0 0.0
    %1920 = vmatpush1.msra.mxu0 0.0
    %1921 = vmatprep.subr.mxu0 0.0
    %1922 = vmatpush1.msra.mxu0 0.0
    %1923 = vmatprep.subr.mxu0 0.0
    %1924 = vmatpush1.msra.mxu0 0.0
    %1925 = vmatprep.subr.mxu0 0.0
    %1926 = vmatpush1.msra.mxu0 0.0
    %1927 = vmatprep.subr.mxu0 0.0
    %1928 = vmatpush1.msra.mxu0 0.0
    %1929 = vmatprep.subr.mxu0 0.0
    %1930 = vmatpush1.msra.mxu0 0.0
    %1931 = vmatprep.subr.mxu0 0.0
    %1932 = vmatpush1.msra.mxu0 0.0
    %1933 = vmatprep.subr.mxu0 0.0
    %1934 = vmatpush1.msra.mxu0 0.0
    %1935 = vmatprep.subr.mxu0 0.0
    %1936 = vmatpush1.msra.mxu0 0.0
    %1937 = vmatprep.subr.mxu0 0.0
    %1938 = vmatpush1.msra.mxu0 0.0
    %1939 = vmatprep.subr.mxu0 0.0
    %1940 = vmatpush1.msra.mxu0 0.0
    %1941 = vmatprep.subr.mxu0 0.0
    %1942 = vmatpush1.msra.mxu0 0.0
    %1943 = vmatprep.subr.mxu0 0.0
    %1944 = vmatpush1.msra.mxu0 0.0
    %1945 = vmatprep.subr.mxu0 0.0
    %1946 = vmatpush1.msra.mxu0 0.0
    %1947 = vmatprep.subr.mxu0 0.0
    %1948 = vmatpush1.msra.mxu0 0.0
    %1949 = vmatprep.mubr.f32.mxu0 0.0
    %1950 = vmatmul.mubr.f32.gmra.mrb[0].mxu0 %v1883
    %v1951 = vpop.f32.mrb[0].mxu0
    %v1952 = vadd.f32 0.0, %v1951
    %v1953 = vpop.f32.mrb[0].mxu0
    %1954 = vdwg.mxu0
    %v1956 = vrot.slane %v1952, 2
    %v1958 = vadd.f32 %v1879, %v1956
    %v1959 = vxor.u32 %v1958, 2147483648
    %v1960 = vmul.f32 %v1959, 1.442695
    %v1961 = vpow.pop %v1960
    %v1962 = vadd.f32 %v1961, 1.0
    %v1963 = vrcp.pop %v1962
    %v1964 = vmul.f32 1.0, %v1963
    %v1965 = vadd.f32 %v1952, %v1615
    %v1967 = vrot.slane %v1965, 2
    %1968 = vrot.lane.b32.xlu0 %v1967, 64
    %v1969 = vpop.permute.xlu0 %1968
    %v1971 = vmul.f32 %v1964, %v1969
    %1973 = vrot.lane.b32.xlu0 %v1971, 64
    %v1974 = vpop.permute.xlu0 %1973
    %v1976 = vadd.f32 %v1879, %v1974
    %v1977 = vtanh.pop %v1976
    %v1978 = vsub.f32 1.0, %v1964
    %1980 = vrot.lane.b32.xlu0 %v1977, 96
    %v1981 = vpop.permute.xlu0 %1980
    %v1983 = vmul.f32 %v1978, %v1981
    %v1984 = vrot.slane %v1870, 6
    %v1986 = vmul.f32 %v1964, %v1984
    %v1987 = vadd.f32 %v1983, %v1986
    %1989 = vrot.lane.b32.xlu0 %v1987, 96
    %v1990 = vpop.permute.xlu0 %1989
    %vm1992 = vcmask 261126
    %1993 = vst.msk [vmem:[#allocation2] sm:$0xc0] %vm1992, %v1990
    %v1994 = vadd.f32 %v1529, %v1444
    %v1995 = vrot.slane %v1987, 6
    %1996 = vrot.lane.b32.xlu0 %v1995, 96
    %v1997 = vpop.permute.xlu0 %1996
    %v1998 = vsel %vm105, %v1997, 0
    %2000 = vmatprep.subr.mxu0 0.0
    %2001 = vmatpush1.msra.mxu0 %v68
    %2002 = vmatprep.subr.mxu0 0.0
    %2003 = vmatpush1.msra.mxu0 %v69
    %2004 = vmatprep.subr.mxu0 0.0
    %2005 = vmatpush1.msra.mxu0 %v70
    %2006 = vmatprep.subr.mxu0 0.0
    %2007 = vmatpush1.msra.mxu0 %v71
    %2008 = vmatprep.subr.mxu0 0.0
    %2009 = vmatpush1.msra.mxu0 0.0
    %2010 = vmatprep.subr.mxu0 0.0
    %2011 = vmatpush1.msra.mxu0 0.0
    %2012 = vmatprep.subr.mxu0 0.0
    %2013 = vmatpush1.msra.mxu0 0.0
    %2014 = vmatprep.subr.mxu0 0.0
    %2015 = vmatpush1.msra.mxu0 0.0
    %2016 = vmatprep.subr.mxu0 0.0
    %2017 = vmatpush1.msra.mxu0 0.0
    %2018 = vmatprep.subr.mxu0 0.0
    %2019 = vmatpush1.msra.mxu0 0.0
    %2020 = vmatprep.subr.mxu0 0.0
    %2021 = vmatpush1.msra.mxu0 0.0
    %2022 = vmatprep.subr.mxu0 0.0
    %2023 = vmatpush1.msra.mxu0 0.0
    %2024 = vmatprep.subr.mxu0 0.0
    %2025 = vmatpush1.msra.mxu0 0.0
    %2026 = vmatprep.subr.mxu0 0.0
    %2027 = vmatpush1.msra.mxu0 0.0
    %2028 = vmatprep.subr.mxu0 0.0
    %2029 = vmatpush1.msra.mxu0 0.0
    %2030 = vmatprep.subr.mxu0 0.0
    %2031 = vmatpush1.msra.mxu0 0.0
    %2032 = vmatprep.subr.mxu0 0.0
    %2033 = vmatpush1.msra.mxu0 0.0
    %2034 = vmatprep.subr.mxu0 0.0
    %2035 = vmatpush1.msra.mxu0 0.0
    %2036 = vmatprep.subr.mxu0 0.0
    %2037 = vmatpush1.msra.mxu0 0.0
    %2038 = vmatprep.subr.mxu0 0.0
    %2039 = vmatpush1.msra.mxu0 0.0
    %2040 = vmatprep.subr.mxu0 0.0
    %2041 = vmatpush1.msra.mxu0 0.0
    %2042 = vmatprep.subr.mxu0 0.0
    %2043 = vmatpush1.msra.mxu0 0.0
    %2044 = vmatprep.subr.mxu0 0.0
    %2045 = vmatpush1.msra.mxu0 0.0
    %2046 = vmatprep.subr.mxu0 0.0
    %2047 = vmatpush1.msra.mxu0 0.0
    %2048 = vmatprep.subr.mxu0 0.0
    %2049 = vmatpush1.msra.mxu0 0.0
    %2050 = vmatprep.subr.mxu0 0.0
    %2051 = vmatpush1.msra.mxu0 0.0
    %2052 = vmatprep.subr.mxu0 0.0
    %2053 = vmatpush1.msra.mxu0 0.0
    %2054 = vmatprep.subr.mxu0 0.0
    %2055 = vmatpush1.msra.mxu0 0.0
    %2056 = vmatprep.subr.mxu0 0.0
    %2057 = vmatpush1.msra.mxu0 0.0
    %2058 = vmatprep.subr.mxu0 0.0
    %2059 = vmatpush1.msra.mxu0 0.0
    %2060 = vmatprep.subr.mxu0 0.0
    %2061 = vmatpush1.msra.mxu0 0.0
    %2062 = vmatprep.subr.mxu0 0.0
    %2063 = vmatpush1.msra.mxu0 0.0
    %2064 = vmatprep.mubr.f32.mxu0 0.0
    %2065 = vmatmul.mubr.f32.gmra.mrb[0].mxu0 %v1998
    %v2066 = vpop.f32.mrb[0].mxu0
    %v2067 = vadd.f32 0.0, %v2066
    %v2068 = vpop.f32.mrb[0].mxu0
    %2069 = vdwg.mxu0
    %v2070 = vadd.f32 %v1994, %v2067
    %v2071 = vxor.u32 %v2070, 2147483648
    %v2072 = vmul.f32 %v2071, 1.442695
    %v2073 = vpow.pop %v2072
    %v2074 = vadd.f32 %v2073, 1.0
    %v2075 = vrcp.pop %v2074
    %v2076 = vmul.f32 1.0, %v2075
    %v2077 = vadd.f32 %v2067, %v1615
    %2079 = vrot.lane.b32.xlu0 %v2077, 64
    %v2080 = vpop.permute.xlu0 %2079
    %v2082 = vmul.f32 %v2076, %v2080
    %2084 = vrot.lane.b32.xlu0 %v2082, 64
    %v2085 = vpop.permute.xlu0 %2084
    %v2087 = vadd.f32 %v1994, %v2085
    %v2088 = vtanh.pop %v2087
    %v2089 = vsub.f32 1.0, %v2076
    %2091 = vrot.lane.b32.xlu0 %v2088, 96
    %v2092 = vpop.permute.xlu0 %2091
    %v2094 = vmul.f32 %v2089, %v2092
    %v2096 = vmul.f32 %v2076, %v1995
    %v2097 = vadd.f32 %v2094, %v2096
    %2099 = vrot.lane.b32.xlu0 %v2097, 96
    %v2100 = vpop.permute.xlu0 %2099
    %2102 = vst.msk [vmem:[#allocation2 + $0x8] sm:$0x3] %vm1140, %v2100
    %v2103 = vadd.f32 %v1529, %v1646
    %v2104 = vsel %vm105, %v2100, 0
    %2106 = vmatprep.subr.mxu0 0.0
    %2107 = vmatpush1.msra.mxu0 %v68
    %2108 = vmatprep.subr.mxu0 0.0
    %2109 = vmatpush1.msra.mxu0 %v69
    %2110 = vmatprep.subr.mxu0 0.0
    %2111 = vmatpush1.msra.mxu0 %v70
    %2112 = vmatprep.subr.mxu0 0.0
    %2113 = vmatpush1.msra.mxu0 %v71
    %2114 = vmatprep.subr.mxu0 0.0
    %2115 = vmatpush1.msra.mxu0 0.0
    %2116 = vmatprep.subr.mxu0 0.0
    %2117 = vmatpush1.msra.mxu0 0.0
    %2118 = vmatprep.subr.mxu0 0.0
    %2119 = vmatpush1.msra.mxu0 0.0
    %2120 = vmatprep.subr.mxu0 0.0
    %2121 = vmatpush1.msra.mxu0 0.0
    %2122 = vmatprep.subr.mxu0 0.0
    %2123 = vmatpush1.msra.mxu0 0.0
    %2124 = vmatprep.subr.mxu0 0.0
    %2125 = vmatpush1.msra.mxu0 0.0
    %2126 = vmatprep.subr.mxu0 0.0
    %2127 = vmatpush1.msra.mxu0 0.0
    %2128 = vmatprep.subr.mxu0 0.0
    %2129 = vmatpush1.msra.mxu0 0.0
    %2130 = vmatprep.subr.mxu0 0.0
    %2131 = vmatpush1.msra.mxu0 0.0
    %2132 = vmatprep.subr.mxu0 0.0
    %2133 = vmatpush1.msra.mxu0 0.0
    %2134 = vmatprep.subr.mxu0 0.0
    %2135 = vmatpush1.msra.mxu0 0.0
    %2136 = vmatprep.subr.mxu0 0.0
    %2137 = vmatpush1.msra.mxu0 0.0
    %2138 = vmatprep.subr.mxu0 0.0
    %2139 = vmatpush1.msra.mxu0 0.0
    %2140 = vmatprep.subr.mxu0 0.0
    %2141 = vmatpush1.msra.mxu0 0.0
    %2142 = vmatprep.subr.mxu0 0.0
    %2143 = vmatpush1.msra.mxu0 0.0
    %2144 = vmatprep.subr.mxu0 0.0
    %2145 = vmatpush1.msra.mxu0 0.0
    %2146 = vmatprep.subr.mxu0 0.0
    %2147 = vmatpush1.msra.mxu0 0.0
    %2148 = vmatprep.subr.mxu0 0.0
    %2149 = vmatpush1.msra.mxu0 0.0
    %2150 = vmatprep.subr.mxu0 0.0
    %2151 = vmatpush1.msra.mxu0 0.0
    %2152 = vmatprep.subr.mxu0 0.0
    %2153 = vmatpush1.msra.mxu0 0.0
    %2154 = vmatprep.subr.mxu0 0.0
    %2155 = vmatpush1.msra.mxu0 0.0
    %2156 = vmatprep.subr.mxu0 0.0
    %2157 = vmatpush1.msra.mxu0 0.0
    %2158 = vmatprep.subr.mxu0 0.0
    %2159 = vmatpush1.msra.mxu0 0.0
    %2160 = vmatprep.subr.mxu0 0.0
    %2161 = vmatpush1.msra.mxu0 0.0
    %2162 = vmatprep.subr.mxu0 0.0
    %2163 = vmatpush1.msra.mxu0 0.0
    %2164 = vmatprep.subr.mxu0 0.0
    %2165 = vmatpush1.msra.mxu0 0.0
    %2166 = vmatprep.subr.mxu0 0.0
    %2167 = vmatpush1.msra.mxu0 0.0
    %2168 = vmatprep.subr.mxu0 0.0
    %2169 = vmatpush1.msra.mxu0 0.0
    %2170 = vmatprep.mubr.f32.mxu0 0.0
    %2171 = vmatmul.mubr.f32.gmra.mrb[0].mxu0 %v2104
    %v2172 = vpop.f32.mrb[0].mxu0
    %v2173 = vadd.f32 0.0, %v2172
    %v2174 = vpop.f32.mrb[0].mxu0
    %2175 = vdwg.mxu0
    %v2177 = vrot.slane %v2173, 6
    %v2179 = vadd.f32 %v2103, %v2177
    %v2180 = vxor.u32 %v2179, 2147483648
    %v2181 = vmul.f32 %v2180, 1.442695
    %v2182 = vpow.pop %v2181
    %v2183 = vadd.f32 %v2182, 1.0
    %v2184 = vrcp.pop %v2183
    %v2185 = vmul.f32 1.0, %v2184
    %v2186 = vadd.f32 %v2173, %v1615
    %v2188 = vrot.slane %v2186, 6
    %2189 = vrot.lane.b32.xlu0 %v2188, 64
    %v2190 = vpop.permute.xlu0 %2189
    %v2192 = vmul.f32 %v2185, %v2190
    %2194 = vrot.lane.b32.xlu0 %v2192, 64
    %v2195 = vpop.permute.xlu0 %2194
    %v2197 = vadd.f32 %v2103, %v2195
    %v2198 = vtanh.pop %v2197
    %v2199 = vsub.f32 1.0, %v2185
    %2201 = vrot.lane.b32.xlu0 %v2198, 96
    %v2202 = vpop.permute.xlu0 %2201
    %v2204 = vmul.f32 %v2199, %v2202
    %v2205 = vrot.slane %v2097, 6
    %v2207 = vmul.f32 %v2185, %v2205
    %v2208 = vadd.f32 %v2204, %v2207
    %2210 = vrot.lane.b32.xlu0 %v2208, 96
    %v2211 = vpop.permute.xlu0 %2210
    %2213 = vst.msk [vmem:[#allocation2 + $0x8] sm:$0xc] %vm1758, %v2211
    %v2214 = vadd.f32 %v1529, %v1760
    %v2215 = vrot.slane %v2208, 2
    %2216 = vrot.lane.b32.xlu0 %v2215, 96
    %v2217 = vpop.permute.xlu0 %2216
    %v2218 = vsel %vm105, %v2217, 0
    %2220 = vmatprep.subr.mxu0 0.0
    %2221 = vmatpush1.msra.mxu0 %v68
    %2222 = vmatprep.subr.mxu0 0.0
    %2223 = vmatpush1.msra.mxu0 %v69
    %2224 = vmatprep.subr.mxu0 0.0
    %2225 = vmatpush1.msra.mxu0 %v70
    %2226 = vmatprep.subr.mxu0 0.0
    %2227 = vmatpush1.msra.mxu0 %v71
    %2228 = vmatprep.subr.mxu0 0.0
    %2229 = vmatpush1.msra.mxu0 0.0
    %2230 = vmatprep.subr.mxu0 0.0
    %2231 = vmatpush1.msra.mxu0 0.0
    %2232 = vmatprep.subr.mxu0 0.0
    %2233 = vmatpush1.msra.mxu0 0.0
    %2234 = vmatprep.subr.mxu0 0.0
    %2235 = vmatpush1.msra.mxu0 0.0
    %2236 = vmatprep.subr.mxu0 0.0
    %2237 = vmatpush1.msra.mxu0 0.0
    %2238 = vmatprep.subr.mxu0 0.0
    %2239 = vmatpush1.msra.mxu0 0.0
    %2240 = vmatprep.subr.mxu0 0.0
    %2241 = vmatpush1.msra.mxu0 0.0
    %2242 = vmatprep.subr.mxu0 0.0
    %2243 = vmatpush1.msra.mxu0 0.0
    %2244 = vmatprep.subr.mxu0 0.0
    %2245 = vmatpush1.msra.mxu0 0.0
    %2246 = vmatprep.subr.mxu0 0.0
    %2247 = vmatpush1.msra.mxu0 0.0
    %2248 = vmatprep.subr.mxu0 0.0
    %2249 = vmatpush1.msra.mxu0 0.0
    %2250 = vmatprep.subr.mxu0 0.0
    %2251 = vmatpush1.msra.mxu0 0.0
    %2252 = vmatprep.subr.mxu0 0.0
    %2253 = vmatpush1.msra.mxu0 0.0
    %2254 = vmatprep.subr.mxu0 0.0
    %2255 = vmatpush1.msra.mxu0 0.0
    %2256 = vmatprep.subr.mxu0 0.0
    %2257 = vmatpush1.msra.mxu0 0.0
    %2258 = vmatprep.subr.mxu0 0.0
    %2259 = vmatpush1.msra.mxu0 0.0
    %2260 = vmatprep.subr.mxu0 0.0
    %2261 = vmatpush1.msra.mxu0 0.0
    %2262 = vmatprep.subr.mxu0 0.0
    %2263 = vmatpush1.msra.mxu0 0.0
    %2264 = vmatprep.subr.mxu0 0.0
    %2265 = vmatpush1.msra.mxu0 0.0
    %2266 = vmatprep.subr.mxu0 0.0
    %2267 = vmatpush1.msra.mxu0 0.0
    %2268 = vmatprep.subr.mxu0 0.0
    %2269 = vmatpush1.msra.mxu0 0.0
    %2270 = vmatprep.subr.mxu0 0.0
    %2271 = vmatpush1.msra.mxu0 0.0
    %2272 = vmatprep.subr.mxu0 0.0
    %2273 = vmatpush1.msra.mxu0 0.0
    %2274 = vmatprep.subr.mxu0 0.0
    %2275 = vmatpush1.msra.mxu0 0.0
    %2276 = vmatprep.subr.mxu0 0.0
    %2277 = vmatpush1.msra.mxu0 0.0
    %2278 = vmatprep.subr.mxu0 0.0
    %2279 = vmatpush1.msra.mxu0 0.0
    %2280 = vmatprep.subr.mxu0 0.0
    %2281 = vmatpush1.msra.mxu0 0.0
    %2282 = vmatprep.subr.mxu0 0.0
    %2283 = vmatpush1.msra.mxu0 0.0
    %2284 = vmatprep.mubr.f32.mxu0 0.0
    %2285 = vmatmul.mubr.f32.gmra.mrb[0].mxu0 %v2218
    %v2286 = vpop.f32.mrb[0].mxu0
    %v2287 = vadd.f32 0.0, %v2286
    %v2288 = vpop.f32.mrb[0].mxu0
    %2289 = vdwg.mxu0
    %v2291 = vrot.slane %v2287, 4
    %v2293 = vadd.f32 %v2214, %v2291
    %v2294 = vxor.u32 %v2293, 2147483648
    %v2295 = vmul.f32 %v2294, 1.442695
    %v2296 = vpow.pop %v2295
    %v2297 = vadd.f32 %v2296, 1.0
    %v2298 = vrcp.pop %v2297
    %v2299 = vmul.f32 1.0, %v2298
    %v2300 = vadd.f32 %v2287, %v1615
    %v2302 = vrot.slane %v2300, 4
    %2303 = vrot.lane.b32.xlu0 %v2302, 64
    %v2304 = vpop.permute.xlu0 %2303
    %v2306 = vmul.f32 %v2299, %v2304
    %2308 = vrot.lane.b32.xlu0 %v2306, 64
    %v2309 = vpop.permute.xlu0 %2308
    %v2311 = vadd.f32 %v2214, %v2309
    %v2312 = vtanh.pop %v2311
    %v2313 = vsub.f32 1.0, %v2299
    %2315 = vrot.lane.b32.xlu0 %v2312, 96
    %v2316 = vpop.permute.xlu0 %2315
    %v2318 = vmul.f32 %v2313, %v2316
    %v2319 = vrot.slane %v2208, 6
    %v2321 = vmul.f32 %v2299, %v2319
    %v2322 = vadd.f32 %v2318, %v2321
    %2324 = vrot.lane.b32.xlu0 %v2322, 96
    %v2325 = vpop.permute.xlu0 %2324
    %2327 = vst.msk [vmem:[#allocation2 + $0x8] sm:$0x30] %vm1875, %v2325
    %v2328 = vadd.f32 %v1529, %v1877
    %v2329 = vrot.slane %v2322, 4
    %2330 = vrot.lane.b32.xlu0 %v2329, 96
    %v2331 = vpop.permute.xlu0 %2330
    %v2332 = vsel %vm105, %v2331, 0
    %2334 = vmatprep.subr.mxu0 0.0
    %2335 = vmatpush1.msra.mxu0 %v68
    %2336 = vmatprep.subr.mxu0 0.0
    %2337 = vmatpush1.msra.mxu0 %v69
    %2338 = vmatprep.subr.mxu0 0.0
    %2339 = vmatpush1.msra.mxu0 %v70
    %2340 = vmatprep.subr.mxu0 0.0
    %2341 = vmatpush1.msra.mxu0 %v71
    %2342 = vmatprep.subr.mxu0 0.0
    %2343 = vmatpush1.msra.mxu0 0.0
    %2344 = vmatprep.subr.mxu0 0.0
    %2345 = vmatpush1.msra.mxu0 0.0
    %2346 = vmatprep.subr.mxu0 0.0
    %2347 = vmatpush1.msra.mxu0 0.0
    %2348 = vmatprep.subr.mxu0 0.0
    %2349 = vmatpush1.msra.mxu0 0.0
    %2350 = vmatprep.subr.mxu0 0.0
    %2351 = vmatpush1.msra.mxu0 0.0
    %2352 = vmatprep.subr.mxu0 0.0
    %2353 = vmatpush1.msra.mxu0 0.0
    %2354 = vmatprep.subr.mxu0 0.0
    %2355 = vmatpush1.msra.mxu0 0.0
    %2356 = vmatprep.subr.mxu0 0.0
    %2357 = vmatpush1.msra.mxu0 0.0
    %2358 = vmatprep.subr.mxu0 0.0
    %2359 = vmatpush1.msra.mxu0 0.0
    %2360 = vmatprep.subr.mxu0 0.0
    %2361 = vmatpush1.msra.mxu0 0.0
    %2362 = vmatprep.subr.mxu0 0.0
    %2363 = vmatpush1.msra.mxu0 0.0
    %2364 = vmatprep.subr.mxu0 0.0
    %2365 = vmatpush1.msra.mxu0 0.0
    %2366 = vmatprep.subr.mxu0 0.0
    %2367 = vmatpush1.msra.mxu0 0.0
    %2368 = vmatprep.subr.mxu0 0.0
    %2369 = vmatpush1.msra.mxu0 0.0
    %2370 = vmatprep.subr.mxu0 0.0
    %2371 = vmatpush1.msra.mxu0 0.0
    %2372 = vmatprep.subr.mxu0 0.0
    %2373 = vmatpush1.msra.mxu0 0.0
    %2374 = vmatprep.subr.mxu0 0.0
    %2375 = vmatpush1.msra.mxu0 0.0
    %2376 = vmatprep.subr.mxu0 0.0
    %2377 = vmatpush1.msra.mxu0 0.0
    %2378 = vmatprep.subr.mxu0 0.0
    %2379 = vmatpush1.msra.mxu0 0.0
    %2380 = vmatprep.subr.mxu0 0.0
    %2381 = vmatpush1.msra.mxu0 0.0
    %2382 = vmatprep.subr.mxu0 0.0
    %2383 = vmatpush1.msra.mxu0 0.0
    %2384 = vmatprep.subr.mxu0 0.0
    %2385 = vmatpush1.msra.mxu0 0.0
    %2386 = vmatprep.subr.mxu0 0.0
    %2387 = vmatpush1.msra.mxu0 0.0
    %2388 = vmatprep.subr.mxu0 0.0
    %2389 = vmatpush1.msra.mxu0 0.0
    %2390 = vmatprep.subr.mxu0 0.0
    %2391 = vmatpush1.msra.mxu0 0.0
    %2392 = vmatprep.subr.mxu0 0.0
    %2393 = vmatpush1.msra.mxu0 0.0
    %2394 = vmatprep.subr.mxu0 0.0
    %2395 = vmatpush1.msra.mxu0 0.0
    %2396 = vmatprep.subr.mxu0 0.0
    %2397 = vmatpush1.msra.mxu0 0.0
    %2398 = vmatprep.mubr.f32.mxu0 0.0
    %2399 = vmatmul.mubr.f32.gmra.mrb[0].mxu0 %v2332
    %v2400 = vpop.f32.mrb[0].mxu0
    %v2401 = vadd.f32 0.0, %v2400
    %v2402 = vpop.f32.mrb[0].mxu0
    %2403 = vdwg.mxu0
    %v2405 = vrot.slane %v2401, 2
    %v2407 = vadd.f32 %v2328, %v2405
    %v2408 = vxor.u32 %v2407, 2147483648
    %v2409 = vmul.f32 %v2408, 1.442695
    %v2410 = vpow.pop %v2409
    %v2411 = vadd.f32 %v2410, 1.0
    %v2412 = vrcp.pop %v2411
    %v2413 = vmul.f32 1.0, %v2412
    %v2414 = vadd.f32 %v2401, %v1615
    %v2416 = vrot.slane %v2414, 2
    %2417 = vrot.lane.b32.xlu0 %v2416, 64
    %v2418 = vpop.permute.xlu0 %2417
    %v2420 = vmul.f32 %v2413, %v2418
    %2422 = vrot.lane.b32.xlu0 %v2420, 64
    %v2423 = vpop.permute.xlu0 %2422
    %v2425 = vadd.f32 %v2328, %v2423
    %v2426 = vtanh.pop %v2425
    %v2427 = vsub.f32 1.0, %v2413
    %2429 = vrot.lane.b32.xlu0 %v2426, 96
    %v2430 = vpop.permute.xlu0 %2429
    %v2432 = vmul.f32 %v2427, %v2430
    %v2433 = vrot.slane %v2322, 6
    %v2435 = vmul.f32 %v2413, %v2433
    %v2436 = vadd.f32 %v2432, %v2435
    %2438 = vrot.lane.b32.xlu0 %v2436, 96
    %v2439 = vpop.permute.xlu0 %2438
    %2441 = vst.msk [vmem:[#allocation2 + $0x8] sm:$0xc0] %vm1992, %v2439
    %v2442 = vld [vmem:[#allocation2] sm:$0xff]
    %v2443 = vld [vmem:[#allocation2 + $0x8] sm:$0xff]
    %v2444 = vlaneseq
    %v2445 = vshrl.u32 %v2444, 7
    %v2446 = vsub.s32 0, %v2445
    %v2447 = vrot.slane %v90, %v2446
    %v2449 = vsel %vm105, %v2442, 0
    %v2452 = vsel %vm105, %v2443, 0
    %2454 = vmatprep.subr.mxu0 0.0
    %2455 = vmatpush1.msra.mxu0 %v84
    %2456 = vmatprep.subr.mxu0 0.0
    %2457 = vmatpush1.msra.mxu0 %v85
    %2458 = vmatprep.subr.mxu0 0.0
    %2459 = vmatpush1.msra.mxu0 %v86
    %2460 = vmatprep.subr.mxu0 0.0
    %2461 = vmatpush1.msra.mxu0 %v87
    %2462 = vmatprep.subr.mxu0 0.0
    %2463 = vmatpush1.msra.mxu0 0.0
    %2464 = vmatprep.subr.mxu0 0.0
    %2465 = vmatpush1.msra.mxu0 0.0
    %2466 = vmatprep.subr.mxu0 0.0
    %2467 = vmatpush1.msra.mxu0 0.0
    %2468 = vmatprep.subr.mxu0 0.0
    %2469 = vmatpush1.msra.mxu0 0.0
    %2470 = vmatprep.subr.mxu0 0.0
    %2471 = vmatpush1.msra.mxu0 0.0
    %2472 = vmatprep.subr.mxu0 0.0
    %2473 = vmatpush1.msra.mxu0 0.0
    %2474 = vmatprep.subr.mxu0 0.0
    %2475 = vmatpush1.msra.mxu0 0.0
    %2476 = vmatprep.subr.mxu0 0.0
    %2477 = vmatpush1.msra.mxu0 0.0
    %2478 = vmatprep.subr.mxu0 0.0
    %2479 = vmatpush1.msra.mxu0 0.0
    %2480 = vmatprep.subr.mxu0 0.0
    %2481 = vmatpush1.msra.mxu0 0.0
    %2482 = vmatprep.subr.mxu0 0.0
    %2483 = vmatpush1.msra.mxu0 0.0
    %2484 = vmatprep.subr.mxu0 0.0
    %2485 = vmatpush1.msra.mxu0 0.0
    %2486 = vmatprep.subr.mxu0 0.0
    %2487 = vmatpush1.msra.mxu0 0.0
    %2488 = vmatprep.subr.mxu0 0.0
    %2489 = vmatpush1.msra.mxu0 0.0
    %2490 = vmatprep.subr.mxu0 0.0
    %2491 = vmatpush1.msra.mxu0 0.0
    %2492 = vmatprep.subr.mxu0 0.0
    %2493 = vmatpush1.msra.mxu0 0.0
    %2494 = vmatprep.subr.mxu0 0.0
    %2495 = vmatpush1.msra.mxu0 0.0
    %2496 = vmatprep.subr.mxu0 0.0
    %2497 = vmatpush1.msra.mxu0 0.0
    %2498 = vmatprep.subr.mxu0 0.0
    %2499 = vmatpush1.msra.mxu0 0.0
    %2500 = vmatprep.subr.mxu0 0.0
    %2501 = vmatpush1.msra.mxu0 0.0
    %2502 = vmatprep.subr.mxu0 0.0
    %2503 = vmatpush1.msra.mxu0 0.0
    %2504 = vmatprep.subr.mxu0 0.0
    %2505 = vmatpush1.msra.mxu0 0.0
    %2506 = vmatprep.subr.mxu0 0.0
    %2507 = vmatpush1.msra.mxu0 0.0
    %2508 = vmatprep.subr.mxu0 0.0
    %2509 = vmatpush1.msra.mxu0 0.0
    %2510 = vmatprep.subr.mxu0 0.0
    %2511 = vmatpush1.msra.mxu0 0.0
    %2512 = vmatprep.subr.mxu0 0.0
    %2513 = vmatpush1.msra.mxu0 0.0
    %2514 = vmatprep.subr.mxu0 0.0
    %2515 = vmatpush1.msra.mxu0 0.0
    %2516 = vmatprep.subr.mxu0 0.0
    %2517 = vmatpush1.msra.mxu0 0.0
    %2518 = vmatprep.mubr.f32.mxu0 0.0
    %2519 = vmatmul.mubr.f32.gmra.mrb[0].mxu0 %v2449
    %v2520 = vpop.f32.mrb[0].mxu0
    %v2521 = vadd.f32 %v2447, %v2520
    %v2522 = vpop.f32.mrb[0].mxu0
    %2523 = vmatprep.mubr.f32.mxu0 0.0
    %2524 = vmatmul.mubr.f32.gmra.mrb[0].mxu0 %v2452
    %v2525 = vpop.f32.mrb[0].mxu0
    %v2526 = vadd.f32 %v2447, %v2525
    %v2527 = vpop.f32.mrb[0].mxu0
    %2528 = vdwg.mxu0
    %v2529 = vld [vmem:[#allocation3] sm:$0x1]
    %v2531 = vlaneseq
    %v2532 = vshrl.u32 %v2531, 7
    %v2533 = vsub.s32 0, %v2532
    %v2534 = vrot.slane %v2529, %v2533
    %2535 = vset.pattern.permute.xlu0 0
    %2536 = vperm.xlu0 %2535, %v2534
    %v2537 = vpop.permute.xlu0 %2536
    %v2539 = vmul.f32 %v2521, %v2537
    %v2540 = vmul.f32 %v2526, %v2537
    %v2541 = vsel %vm105, %v2539, -inf
    %2542 = vmax.xlane.f32.xlu0 %v2541
    %v2543 = vpop.xlane.xlu0 %2542
    %v2544 = vsel %vm105, %v2540, -inf
    %2545 = vmax.xlane.f32.xlu0 %v2544
    %v2546 = vpop.xlane.xlu0 %2545
    %v2547 = vsub.f32 %v2539, %v2543
    %v2548 = vsub.f32 %v2540, %v2546
    %v2549 = vmul.f32 %v2547, 1.442695
    %v2550 = vpow.pop %v2549
    %v2551 = vmul.f32 %v2548, 1.442695
    %v2552 = vpow.pop %v2551
    %v2553 = vsel %vm105, %v2550, 0.0
    %2554 = vadd.xlane.f32.xlu0 %v2553
    %v2555 = vpop.xlane.xlu0 %2554
    %v2556 = vsel %vm105, %v2552, 0.0
    %2557 = vadd.xlane.f32.xlu0 %v2556
    %v2558 = vpop.xlane.xlu0 %2557
    %v2559 = vlog2.pop %v2555
    %v2560 = vmul.f32 %v2559, 0.6931472
    %v2561 = vlog2.pop %v2558
    %v2562 = vmul.f32 %v2561, 0.6931472
    %v2563 = vadd.f32 %v2543, %v2560
    %v2564 = vadd.f32 %v2546, %v2562
    %v2565 = vsub.f32 %v2539, %v2563
    %v2566 = vsub.f32 %v2540, %v2564
    %2567 = vst.msk [vmem:[#allocation4] sm:$0xff] %vm105, %v2565
    %2568 = vst.msk [vmem:[#allocation4 + $0x8] sm:$0xff] %vm105, %v2566
    // Predicated region
    $region22: #{vae_forward.1} parent=1 // pred_check
      _
    $region23: #{vae_forward.1} parent=1 // pred_check_branch
      %2570 = sbr.rel (0) target = $region25
    $region24: #{vae_forward.1} parent=1 // pred_region
      _
    $region25: #{vae_forward.1} parent=1 // pred_fallthru
      _
    // Predicated region
    $region26: #{vae_forward.1} parent=1 // pred_check
      _
    $region27: #{vae_forward.1} parent=1 // pred_check_branch
      %2572 = sbr.rel (0) target = $region29
    $region28: #{vae_forward.1} parent=1 // pred_region
      %s2574 = ssub.s32 256, 256
      %2575 = vsyncadd [#allocation5], %s2574
      %s2576 = sshll.u32 [#allocation4], 4
      %s2577 = int_to_ptr.vmem [resolvable:$true] %s2576
      %2582 = dma.vmem_to_hbm [thread:$0]  %s2577, 256, %s6, [#allocation5], 128, 128, 8
    $region29: #{vae_forward.1} parent=1 // pred_fallthru
      _
    // Predicated region
    $region30: #{vae_forward.1} parent=1 // pred_check
      _
    $region31: #{vae_forward.1} parent=1 // pred_check_branch
      %2584 = sbr.rel (0) target = $region33
    $region32: #{vae_forward.1} parent=1 // pred_region
      _
    $region33: #{vae_forward.1} parent=1 // pred_fallthru
      _
    // Predicated region
    $region34: #{vae_forward.1} parent=1 // pred_check
      _
    $region35: #{vae_forward.1} parent=1 // pred_check_branch
      %2586 = sbr.rel (0) target = $region37
    $region36: #{vae_forward.1} parent=1 // pred_region
      %2587 = dma.done [#allocation5], 256
    $region37: #{vae_forward.1} parent=1 // pred_fallthru
      _
    %2588 = vsyncpa [#allocation5], 1

</llo_original>
